<compile_context>
chip_gen: v7x
topology: tpu7x:2x2x1
jax: 0.10.0
libtpu: 0.0.40
codegen_flags: <defaults>
</compile_context>

<pallas_src>
import functools

import jax
import jax.numpy as jnp
from jax import lax
from jax.experimental import pallas as pl
from jax.experimental.pallas import tpu as pltpu


def _round_up(n, m):
    return ((n + m - 1) // m) * m


def _vmem_budget_bytes(T, bt, Dinp, Hp, Op, L):
    """Explicit VMEM budget: blocks (double-buffered) + scratch + weights + headroom."""
    bf16, f32 = 2, 4
    x_blk = 2 * T * bt * Dinp * f32            # input block, double-buffered
    out_blk = 2 * bt * Op * f32
    scratch = T * bt * Hp * bf16               # single bf16 projection scratch
    weights = (Dinp * Hp + max(L - 1, 1) * Hp * Hp + L * Hp * Hp + Hp * Op) * bf16
    biases = (2 * L * Hp + Op) * f32
    est = x_blk + out_blk + scratch + 2 * (weights + biases)  # assume double-buffered
    return int(min(max(2 * est, 16 * 2**20), 64 * 2**20))


def rnn_kernel(x_ref, wih0_ref, wihr_ref, whh_ref, bih_ref, bhh_ref,
               fcw_ref, fcb_ref, out_ref, proj_ref, *, num_layers, seq_len):
    """One batch-tile of the full forward pass.

    x_ref   : (T, Bt, Dinp) time-major, zero-padded input tile (f32)
    proj_ref: (T, Bt, Hp)   bf16 scratch: hoisted layer-0 input projection (+bias)
    weights : bf16 (MXU operands), biases f32
    """
    T = seq_len
    Bt = x_ref.shape[1]
    Dinp = x_ref.shape[-1]
    Hp = whh_ref.shape[-1]
    f32, bf16 = jnp.float32, jnp.bfloat16

    # ---- hoisted layer-0 projection: one batched (T*Bt, Dinp) @ (Dinp, Hp) matmul ----
    b0 = bih_ref[0] + bhh_ref[0]                                   # (1, Hp) f32
    inp = x_ref[...].reshape(T * Bt, Dinp).astype(bf16)
    proj0 = jnp.dot(inp, wih0_ref[...], preferred_element_type=f32) + b0
    proj_ref[...] = proj0.reshape(T, Bt, Hp).astype(proj_ref.dtype)

    # ---- per-layer bias broadcasts hoisted out of the time loop (layers > 0) ----
    biases = [None] + [jnp.broadcast_to(bih_ref[l] + bhh_ref[l], (Bt, Hp))
                       for l in range(1, num_layers)]

    # ---- skewed wavefront: layer l processes timestep i-l at iteration i.
    #      All layers' updates within an iteration depend only on the previous
    #      iteration's carries -> independent matmul/tanh chains hide latency. ----
    total = T + num_layers - 1

    def step(i, hs):
        new_hs = []
        for l in range(num_layers):
            t = i - l
            if l == 0:
                pre = proj_ref[jnp.minimum(i, T - 1)].astype(f32)
            else:
                pre = biases[l] + jnp.dot(hs[l - 1].astype(bf16), wihr_ref[l - 1],
                                          preferred_element_type=f32)
            pre = pre + jnp.dot(hs[l].astype(bf16), whh_ref[l],
                                preferred_element_type=f32)
            h_new = jnp.tanh(pre)
            active = jnp.logical_and(t >= 0, t < T)
            new_hs.append(jnp.where(active, h_new, hs[l]))
        return tuple(new_hs)

    hs0 = tuple(jnp.zeros((Bt, Hp), f32) for _ in range(num_layers))
    unroll = True if total <= 16 else 8
    hs = lax.fori_loop(0, total, step, hs0, unroll=unroll)

    # out[:, -1, :] of the top layer -> ReLU -> Linear (lane-dense padded output)
    last = jnp.maximum(hs[num_layers - 1], 0.0)
    out_ref[...] = (jnp.dot(last.astype(bf16), fcw_ref[...],
                            preferred_element_type=f32) + fcb_ref[...])


def rnn_forward(x, params, *, num_layers, batch_splits=1):
    """batch_splits=1 (default) for single-TC v5e/v6e; set 2 on v7x (2 TensorCores)."""
    B, T, Din = x.shape
    H = params["whh"].shape[-1]
    O = params["fcw"].shape[-1]
    Hp, Op, Dinp = _round_up(H, 128), _round_up(O, 128), _round_up(Din, 128)
    Bp = _round_up(B, 8)
    if batch_splits < 1 or Bp % (8 * batch_splits) != 0:
        batch_splits = 1
    bt = Bp // batch_splits

    f32, bf16 = jnp.float32, jnp.bfloat16
    ph, po, pd = Hp - H, Op - O, Dinp - Din

    # Zero-pad hidden/output/input-feature dims (numerically exact) and cast the
    # MXU-side weights to bf16 once, outside the kernel.
    wih0 = jnp.pad(params["wih0"], ((0, pd), (0, ph))).astype(bf16)
    if num_layers > 1:
        wihr = jnp.pad(params["wihr"], ((0, 0), (0, ph), (0, ph))).astype(bf16)
    else:
        wihr = jnp.zeros((1, 8, 128), bf16)   # tiny dummy, never read
    whh = jnp.pad(params["whh"], ((0, 0), (0, ph), (0, ph))).astype(bf16)
    bih = jnp.pad(params["bih"], ((0, 0), (0, 0), (0, ph))).astype(f32)
    bhh = jnp.pad(params["bhh"], ((0, 0), (0, 0), (0, ph))).astype(f32)
    fcw = jnp.pad(params["fcw"], ((0, ph), (0, po))).astype(bf16)
    fcb = jnp.pad(params["fcb"], ((0, 0), (0, po))).astype(f32)

    # Time-major, batch- and feature-padded input: contiguous (Bt, Dinp) per step.
    xt = jnp.transpose(x, (1, 0, 2))
    xt = jnp.pad(xt, ((0, 0), (0, Bp - B), (0, pd))).astype(f32)

    grid = (batch_splits,)
    kernel = functools.partial(rnn_kernel, num_layers=num_layers, seq_len=T)
    vmem_limit = _vmem_budget_bytes(T, bt, Dinp, Hp, Op, num_layers)

    def build(single_buffer_weights):
        def wspec(a):
            nd = a.ndim
            if single_buffer_weights:
                # Grid-invariant operands: double-buffering is pure VMEM waste.
                return pl.BlockSpec(a.shape, lambda i, _nd=nd: (0,) * _nd,
                                    pipeline_mode=pl.Buffered(1))
            return pl.BlockSpec(a.shape, lambda i, _nd=nd: (0,) * _nd)

        return pl.pallas_call(
            kernel,
            out_shape=jax.ShapeDtypeStruct((Bp, Op), jnp.float32),
            grid=grid,
            in_specs=[
                pl.BlockSpec((T, bt, Dinp), lambda i: (0, i, 0)),   # x, tiled over batch
                wspec(wih0), wspec(wihr), wspec(whh),
                wspec(bih), wspec(bhh), wspec(fcw), wspec(fcb),
            ],
            out_specs=pl.BlockSpec((bt, Op), lambda i: (i, 0)),
            scratch_shapes=[pltpu.VMEM((T, bt, Hp), bf16)],         # layer-0 projection
            compiler_params=pltpu.CompilerParams(
                dimension_semantics=("parallel",),
                vmem_limit_bytes=vmem_limit),
        )

    args = (xt, wih0, wihr, whh, bih, bhh, fcw, fcb)
    try:
        out = build(True)(*args)
    except Exception:
        # Older JAX may reject pipeline_mode=pl.Buffered(1); fall back gracefully.
        out = build(False)(*args)
    return out[:B, :O]


def reference_forward(x, params, *, num_layers):
    """Pure-JAX f32 reference replicating PyTorch nn.RNN + relu + fc."""
    B, T, _ = x.shape
    H = params["whh"].shape[-1]
    seq = x
    h = None
    for l in range(num_layers):
        w_ih = params["wih0"] if l == 0 else params["wihr"][l - 1]
        w_hh = params["whh"][l]
        b = params["bih"][l] + params["bhh"][l]
        h = jnp.zeros((B, H), jnp.float32)
        outs = []
        for t in range(T):
            h = jnp.tanh(seq[:, t, :] @ w_ih + h @ w_hh + b)
            outs.append(h)
        seq = jnp.stack(outs, axis=1)
    last = jnp.maximum(h, 0.0)
    return last @ params["fcw"] + params["fcb"]


def init_params(key, input_dim, hidden_dim, num_layers, output_dim):
    """Deterministic init mirroring PyTorch's U(-1/sqrt(H), 1/sqrt(H))."""
    k = 1.0 / jnp.sqrt(jnp.float32(hidden_dim))
    keys = jax.random.split(key, 8)
    u = lambda kk, shape: jax.random.uniform(kk, shape, jnp.float32, -k, k)
    return {
        "wih0": u(keys[0], (input_dim, hidden_dim)),
        "wihr": u(keys[1], (max(num_layers - 1, 1), hidden_dim, hidden_dim)),
        "whh":  u(keys[2], (num_layers, hidden_dim, hidden_dim)),
        "bih":  u(keys[3], (num_layers, 1, hidden_dim)),
        "bhh":  u(keys[4], (num_layers, 1, hidden_dim)),
        "fcw":  u(keys[5], (hidden_dim, output_dim)),
        "fcb":  u(keys[6], (1, output_dim)),
    }


if __name__ == "__main__":
    batch, seq_len = 8, 8
    input_dim, hidden_dim, num_layers, output_dim = 8, 32, 2, 4

    key = jax.random.PRNGKey(0)
    kx, kp = jax.random.split(key)
    x = jax.random.normal(kx, (batch, seq_len, input_dim), jnp.float32)
    params = init_params(kp, input_dim, hidden_dim, num_layers, output_dim)

    out = jax.block_until_ready(rnn_forward(x, params, num_layers=num_layers))

    ref = reference_forward(x, params, num_layers=num_layers)
    assert out.shape == (batch, output_dim)
    max_err = float(jnp.max(jnp.abs(out - ref)))
    # bf16 MXU operands with f32 accumulation vs f32 reference -> loosened tolerance.
    assert jnp.allclose(out, ref, atol=5e-2, rtol=5e-2), \
        f"mismatch vs JAX reference (max abs err {max_err})"

    print("KERNEL_OK")
</pallas_src>

<mosaic_0001>
module attributes {stable_mosaic.version = 11 : i64} {
  func.func @rnn_kernel(%arg0: i32, %arg1: memref<8x8x128xf32, #tpu.memory_space<vmem>>, %arg2: memref<128x128xbf16, #tpu.memory_space<vmem>>, %arg3: memref<1x128x128xbf16, #tpu.memory_space<vmem>>, %arg4: memref<2x128x128xbf16, #tpu.memory_space<vmem>>, %arg5: memref<2x1x128xf32, #tpu.memory_space<vmem>>, %arg6: memref<2x1x128xf32, #tpu.memory_space<vmem>>, %arg7: memref<128x128xbf16, #tpu.memory_space<vmem>>, %arg8: memref<1x128xf32, #tpu.memory_space<vmem>>, %arg9: memref<8x128xf32, #tpu.memory_space<vmem>>, %arg10: memref<8x8x128xbf16, #tpu.memory_space<vmem>>) attributes {dimension_semantics = [#tpu.dimension_semantics<parallel>], iteration_bounds = array<i64: 1>, scalar_prefetch = 0 : i64, scratch_operands = 1 : i64, tpu.core_type = #tpu.core_type<tc>, window_params = [{transform_indices = @transform_0, window_bounds = array<i64: 8, 8, 128>}, {pipeline_mode = #tpu.pipeline_mode<synchronous>, transform_indices = @transform_1, window_bounds = array<i64: 128, 128>}, {pipeline_mode = #tpu.pipeline_mode<synchronous>, transform_indices = @transform_2, window_bounds = array<i64: 1, 128, 128>}, {pipeline_mode = #tpu.pipeline_mode<synchronous>, transform_indices = @transform_3, window_bounds = array<i64: 2, 128, 128>}, {pipeline_mode = #tpu.pipeline_mode<synchronous>, transform_indices = @transform_4, window_bounds = array<i64: 2, 1, 128>}, {pipeline_mode = #tpu.pipeline_mode<synchronous>, transform_indices = @transform_5, window_bounds = array<i64: 2, 1, 128>}, {pipeline_mode = #tpu.pipeline_mode<synchronous>, transform_indices = @transform_6, window_bounds = array<i64: 128, 128>}, {pipeline_mode = #tpu.pipeline_mode<synchronous>, transform_indices = @transform_7, window_bounds = array<i64: 1, 128>}, {transform_indices = @transform_8, window_bounds = array<i64: 8, 128>}]} {
    %c0 = arith.constant 0 : index
    %c0_0 = arith.constant 0 : index
    %c0_1 = arith.constant 0 : index
    %0 = vector.load %arg5[%c0, %c0_0, %c0_1] : memref<2x1x128xf32, #tpu.memory_space<vmem>>, vector<1x1x128xf32>
    %1 = vector.shape_cast %0 : vector<1x1x128xf32> to vector<1x128xf32>
    %c0_2 = arith.constant 0 : index
    %c0_3 = arith.constant 0 : index
    %c0_4 = arith.constant 0 : index
    %2 = vector.load %arg6[%c0_2, %c0_3, %c0_4] : memref<2x1x128xf32, #tpu.memory_space<vmem>>, vector<1x1x128xf32>
    %3 = vector.shape_cast %2 : vector<1x1x128xf32> to vector<1x128xf32>
    %4 = arith.addf %1, %3 : vector<1x128xf32>
    %c0_5 = arith.constant 0 : index
    %c0_6 = arith.constant 0 : index
    %c0_7 = arith.constant 0 : index
    %5 = vector.load %arg1[%c0_5, %c0_6, %c0_7] : memref<8x8x128xf32, #tpu.memory_space<vmem>>, vector<8x8x128xf32>
    %6 = vector.shape_cast %5 : vector<8x8x128xf32> to vector<64x128xf32>
    %7 = arith.truncf %6 : vector<64x128xf32> to vector<64x128xbf16>
    %c0_8 = arith.constant 0 : index
    %c0_9 = arith.constant 0 : index
    %8 = vector.load %arg2[%c0_8, %c0_9] : memref<128x128xbf16, #tpu.memory_space<vmem>>, vector<128x128xbf16>
    %cst = arith.constant dense<0.000000e+00> : vector<64x128xf32>
    %9 = tpu.matmul %7, %8, %cst {dimension_numbers = #tpu.dot_dimension_numbers<[1], [0], [0], [1], [0, 0, 1, 1], [], []>} : vector<64x128xbf16>, vector<128x128xbf16>, vector<64x128xf32> -> vector<64x128xf32>
    %10 = vector.broadcast %4 : vector<1x128xf32> to vector<64x128xf32>
    %11 = arith.addf %9, %10 : vector<64x128xf32>
    %12 = vector.shape_cast %11 : vector<64x128xf32> to vector<8x8x128xf32>
    %13 = arith.truncf %12 : vector<8x8x128xf32> to vector<8x8x128xbf16>
    %c0_10 = arith.constant 0 : index
    %c0_11 = arith.constant 0 : index
    %c0_12 = arith.constant 0 : index
    %14 = vector.load %arg10[%c0_10, %c0_11, %c0_12] : memref<8x8x128xbf16, #tpu.memory_space<vmem>>, vector<8x8x128xbf16>
    tpu.vector_store %arg10[%c0_10, %c0_11, %c0_12], %13 {strides = array<i32>} : memref<8x8x128xbf16, #tpu.memory_space<vmem>>, vector<8x8x128xbf16>,
    %c1 = arith.constant 1 : index
    %c0_13 = arith.constant 0 : index
    %c0_14 = arith.constant 0 : index
    %15 = vector.load %arg5[%c1, %c0_13, %c0_14] : memref<2x1x128xf32, #tpu.memory_space<vmem>>, vector<1x1x128xf32>
    %16 = vector.shape_cast %15 : vector<1x1x128xf32> to vector<1x128xf32>
    %c1_15 = arith.constant 1 : index
    %c0_16 = arith.constant 0 : index
    %c0_17 = arith.constant 0 : index
    %17 = vector.load %arg6[%c1_15, %c0_16, %c0_17] : memref<2x1x128xf32, #tpu.memory_space<vmem>>, vector<1x1x128xf32>
    %18 = vector.shape_cast %17 : vector<1x1x128xf32> to vector<1x128xf32>
    %19 = arith.addf %16, %18 : vector<1x128xf32>
    %20 = vector.shape_cast %19 : vector<1x128xf32> to vector<1x128xf32>
    %21 = vector.broadcast %20 : vector<1x128xf32> to vector<8x128xf32>
    %cst_18 = arith.constant 0.000000e+00 : f32
    %22 = vector.broadcast %cst_18 : f32 to vector<8x128xf32>
    %cst_19 = arith.constant 0.000000e+00 : f32
    %23 = vector.broadcast %cst_19 : f32 to vector<8x128xf32>
    %c0_i32 = arith.constant 0 : i32
    %c0_i32_20 = arith.constant 0 : i32
    %24 = arith.subi %c0_i32, %c0_i32_20 : i32
    %c7_i32 = arith.constant 7 : i32
    %25 = arith.minsi %c0_i32, %c7_i32 : i32
    %26 = arith.index_cast %25 : i32 to index
    %c0_21 = arith.constant 0 : index
    %c0_22 = arith.constant 0 : index
    %27 = vector.load %arg10[%26, %c0_21, %c0_22] : memref<8x8x128xbf16, #tpu.memory_space<vmem>>, vector<1x8x128xbf16>
    %28 = vector.shape_cast %27 : vector<1x8x128xbf16> to vector<8x128xbf16>
    %29 = arith.extf %28 : vector<8x128xbf16> to vector<8x128xf32>
    %30 = arith.truncf %22 : vector<8x128xf32> to vector<8x128xbf16>
    %c0_23 = arith.constant 0 : index
    %c0_24 = arith.constant 0 : index
    %c0_25 = arith.constant 0 : index
    %31 = vector.load %arg4[%c0_23, %c0_24, %c0_25] : memref<2x128x128xbf16, #tpu.memory_space<vmem>>, vector<1x128x128xbf16>
    %32 = vector.shape_cast %31 : vector<1x128x128xbf16> to vector<128x128xbf16>
    %cst_26 = arith.constant dense<0.000000e+00> : vector<8x128xf32>
    %33 = tpu.matmul %30, %32, %cst_26 {dimension_numbers = #tpu.dot_dimension_numbers<[1], [0], [0], [1], [0, 0, 1, 1], [], []>} : vector<8x128xbf16>, vector<128x128xbf16>, vector<8x128xf32> -> vector<8x128xf32>
    %34 = arith.addf %29, %33 : vector<8x128xf32>
    %35 = math.tanh %34 : vector<8x128xf32>
    %c0_i32_27 = arith.constant 0 : i32
    %36 = arith.cmpi sge, %24, %c0_i32_27 : i32
    %c8_i32 = arith.constant 8 : i32
    %37 = arith.cmpi slt, %24, %c8_i32 : i32
    %38 = arith.andi %36, %37 : i1
    %39 = arith.select %38, %35, %22 : vector<8x128xf32>
    %c1_i32 = arith.constant 1 : i32
    %40 = arith.subi %c0_i32, %c1_i32 : i32
    %41 = arith.truncf %22 : vector<8x128xf32> to vector<8x128xbf16>
    %c0_28 = arith.constant 0 : index
    %c0_29 = arith.constant 0 : index
    %c0_30 = arith.constant 0 : index
    %42 = vector.load %arg3[%c0_28, %c0_29, %c0_30] : memref<1x128x128xbf16, #tpu.memory_space<vmem>>, vector<1x128x128xbf16>
    %43 = vector.shape_cast %42 : vector<1x128x128xbf16> to vector<128x128xbf16>
    %cst_31 = arith.constant dense<0.000000e+00> : vector<8x128xf32>
    %44 = tpu.matmul %41, %43, %cst_31 {dimension_numbers = #tpu.dot_dimension_numbers<[1], [0], [0], [1], [0, 0, 1, 1], [], []>} : vector<8x128xbf16>, vector<128x128xbf16>, vector<8x128xf32> -> vector<8x128xf32>
    %45 = arith.addf %21, %44 : vector<8x128xf32>
    %46 = arith.truncf %23 : vector<8x128xf32> to vector<8x128xbf16>
    %c1_32 = arith.constant 1 : index
    %c0_33 = arith.constant 0 : index
    %c0_34 = arith.constant 0 : index
    %47 = vector.load %arg4[%c1_32, %c0_33, %c0_34] : memref<2x128x128xbf16, #tpu.memory_space<vmem>>, vector<1x128x128xbf16>
    %48 = vector.shape_cast %47 : vector<1x128x128xbf16> to vector<128x128xbf16>
    %cst_35 = arith.constant dense<0.000000e+00> : vector<8x128xf32>
    %49 = tpu.matmul %46, %48, %cst_35 {dimension_numbers = #tpu.dot_dimension_numbers<[1], [0], [0], [1], [0, 0, 1, 1], [], []>} : vector<8x128xbf16>, vector<128x128xbf16>, vector<8x128xf32> -> vector<8x128xf32>
    %50 = arith.addf %45, %49 : vector<8x128xf32>
    %51 = math.tanh %50 : vector<8x128xf32>
    %c0_i32_36 = arith.constant 0 : i32
    %52 = arith.cmpi sge, %40, %c0_i32_36 : i32
    %c8_i32_37 = arith.constant 8 : i32
    %53 = arith.cmpi slt, %40, %c8_i32_37 : i32
    %54 = arith.andi %52, %53 : i1
    %55 = arith.select %54, %51, %23 : vector<8x128xf32>
    %c1_i32_38 = arith.constant 1 : i32
    %c0_i32_39 = arith.constant 0 : i32
    %56 = arith.subi %c1_i32_38, %c0_i32_39 : i32
    %c7_i32_40 = arith.constant 7 : i32
    %57 = arith.minsi %c1_i32_38, %c7_i32_40 : i32
    %58 = arith.index_cast %57 : i32 to index
    %c0_41 = arith.constant 0 : index
    %c0_42 = arith.constant 0 : index
    %59 = vector.load %arg10[%58, %c0_41, %c0_42] : memref<8x8x128xbf16, #tpu.memory_space<vmem>>, vector<1x8x128xbf16>
    %60 = vector.shape_cast %59 : vector<1x8x128xbf16> to vector<8x128xbf16>
    %61 = arith.extf %60 : vector<8x128xbf16> to vector<8x128xf32>
    %62 = arith.truncf %39 : vector<8x128xf32> to vector<8x128xbf16>
    %c0_43 = arith.constant 0 : index
    %c0_44 = arith.constant 0 : index
    %c0_45 = arith.constant 0 : index
    %63 = vector.load %arg4[%c0_43, %c0_44, %c0_45] : memref<2x128x128xbf16, #tpu.memory_space<vmem>>, vector<1x128x128xbf16>
    %64 = vector.shape_cast %63 : vector<1x128x128xbf16> to vector<128x128xbf16>
    %cst_46 = arith.constant dense<0.000000e+00> : vector<8x128xf32>
    %65 = tpu.matmul %62, %64, %cst_46 {dimension_numbers = #tpu.dot_dimension_numbers<[1], [0], [0], [1], [0, 0, 1, 1], [], []>} : vector<8x128xbf16>, vector<128x128xbf16>, vector<8x128xf32> -> vector<8x128xf32>
    %66 = arith.addf %61, %65 : vector<8x128xf32>
    %67 = math.tanh %66 : vector<8x128xf32>
    %c0_i32_47 = arith.constant 0 : i32
    %68 = arith.cmpi sge, %56, %c0_i32_47 : i32
    %c8_i32_48 = arith.constant 8 : i32
    %69 = arith.cmpi slt, %56, %c8_i32_48 : i32
    %70 = arith.andi %68, %69 : i1
    %71 = arith.select %70, %67, %39 : vector<8x128xf32>
    %c1_i32_49 = arith.constant 1 : i32
    %72 = arith.subi %c1_i32_38, %c1_i32_49 : i32
    %73 = arith.truncf %39 : vector<8x128xf32> to vector<8x128xbf16>
    %c0_50 = arith.constant 0 : index
    %c0_51 = arith.constant 0 : index
    %c0_52 = arith.constant 0 : index
    %74 = vector.load %arg3[%c0_50, %c0_51, %c0_52] : memref<1x128x128xbf16, #tpu.memory_space<vmem>>, vector<1x128x128xbf16>
    %75 = vector.shape_cast %74 : vector<1x128x128xbf16> to vector<128x128xbf16>
    %cst_53 = arith.constant dense<0.000000e+00> : vector<8x128xf32>
    %76 = tpu.matmul %73, %75, %cst_53 {dimension_numbers = #tpu.dot_dimension_numbers<[1], [0], [0], [1], [0, 0, 1, 1], [], []>} : vector<8x128xbf16>, vector<128x128xbf16>, vector<8x128xf32> -> vector<8x128xf32>
    %77 = arith.addf %21, %76 : vector<8x128xf32>
    %78 = arith.truncf %55 : vector<8x128xf32> to vector<8x128xbf16>
    %c1_54 = arith.constant 1 : index
    %c0_55 = arith.constant 0 : index
    %c0_56 = arith.constant 0 : index
    %79 = vector.load %arg4[%c1_54, %c0_55, %c0_56] : memref<2x128x128xbf16, #tpu.memory_space<vmem>>, vector<1x128x128xbf16>
    %80 = vector.shape_cast %79 : vector<1x128x128xbf16> to vector<128x128xbf16>
    %cst_57 = arith.constant dense<0.000000e+00> : vector<8x128xf32>
    %81 = tpu.matmul %78, %80, %cst_57 {dimension_numbers = #tpu.dot_dimension_numbers<[1], [0], [0], [1], [0, 0, 1, 1], [], []>} : vector<8x128xbf16>, vector<128x128xbf16>, vector<8x128xf32> -> vector<8x128xf32>
    %82 = arith.addf %77, %81 : vector<8x128xf32>
    %83 = math.tanh %82 : vector<8x128xf32>
    %c0_i32_58 = arith.constant 0 : i32
    %84 = arith.cmpi sge, %72, %c0_i32_58 : i32
    %c8_i32_59 = arith.constant 8 : i32
    %85 = arith.cmpi slt, %72, %c8_i32_59 : i32
    %86 = arith.andi %84, %85 : i1
    %87 = arith.select %86, %83, %55 : vector<8x128xf32>
    %c2_i32 = arith.constant 2 : i32
    %c0_i32_60 = arith.constant 0 : i32
    %88 = arith.subi %c2_i32, %c0_i32_60 : i32
    %c7_i32_61 = arith.constant 7 : i32
    %89 = arith.minsi %c2_i32, %c7_i32_61 : i32
    %90 = arith.index_cast %89 : i32 to index
    %c0_62 = arith.constant 0 : index
    %c0_63 = arith.constant 0 : index
    %91 = vector.load %arg10[%90, %c0_62, %c0_63] : memref<8x8x128xbf16, #tpu.memory_space<vmem>>, vector<1x8x128xbf16>
    %92 = vector.shape_cast %91 : vector<1x8x128xbf16> to vector<8x128xbf16>
    %93 = arith.extf %92 : vector<8x128xbf16> to vector<8x128xf32>
    %94 = arith.truncf %71 : vector<8x128xf32> to vector<8x128xbf16>
    %c0_64 = arith.constant 0 : index
    %c0_65 = arith.constant 0 : index
    %c0_66 = arith.constant 0 : index
    %95 = vector.load %arg4[%c0_64, %c0_65, %c0_66] : memref<2x128x128xbf16, #tpu.memory_space<vmem>>, vector<1x128x128xbf16>
    %96 = vector.shape_cast %95 : vector<1x128x128xbf16> to vector<128x128xbf16>
    %cst_67 = arith.constant dense<0.000000e+00> : vector<8x128xf32>
    %97 = tpu.matmul %94, %96, %cst_67 {dimension_numbers = #tpu.dot_dimension_numbers<[1], [0], [0], [1], [0, 0, 1, 1], [], []>} : vector<8x128xbf16>, vector<128x128xbf16>, vector<8x128xf32> -> vector<8x128xf32>
    %98 = arith.addf %93, %97 : vector<8x128xf32>
    %99 = math.tanh %98 : vector<8x128xf32>
    %c0_i32_68 = arith.constant 0 : i32
    %100 = arith.cmpi sge, %88, %c0_i32_68 : i32
    %c8_i32_69 = arith.constant 8 : i32
    %101 = arith.cmpi slt, %88, %c8_i32_69 : i32
    %102 = arith.andi %100, %101 : i1
    %103 = arith.select %102, %99, %71 : vector<8x128xf32>
    %c1_i32_70 = arith.constant 1 : i32
    %104 = arith.subi %c2_i32, %c1_i32_70 : i32
    %105 = arith.truncf %71 : vector<8x128xf32> to vector<8x128xbf16>
    %c0_71 = arith.constant 0 : index
    %c0_72 = arith.constant 0 : index
    %c0_73 = arith.constant 0 : index
    %106 = vector.load %arg3[%c0_71, %c0_72, %c0_73] : memref<1x128x128xbf16, #tpu.memory_space<vmem>>, vector<1x128x128xbf16>
    %107 = vector.shape_cast %106 : vector<1x128x128xbf16> to vector<128x128xbf16>
    %cst_74 = arith.constant dense<0.000000e+00> : vector<8x128xf32>
    %108 = tpu.matmul %105, %107, %cst_74 {dimension_numbers = #tpu.dot_dimension_numbers<[1], [0], [0], [1], [0, 0, 1, 1], [], []>} : vector<8x128xbf16>, vector<128x128xbf16>, vector<8x128xf32> -> vector<8x128xf32>
    %109 = arith.addf %21, %108 : vector<8x128xf32>
    %110 = arith.truncf %87 : vector<8x128xf32> to vector<8x128xbf16>
    %c1_75 = arith.constant 1 : index
    %c0_76 = arith.constant 0 : index
    %c0_77 = arith.constant 0 : index
    %111 = vector.load %arg4[%c1_75, %c0_76, %c0_77] : memref<2x128x128xbf16, #tpu.memory_space<vmem>>, vector<1x128x128xbf16>
    %112 = vector.shape_cast %111 : vector<1x128x128xbf16> to vector<128x128xbf16>
    %cst_78 = arith.constant dense<0.000000e+00> : vector<8x128xf32>
    %113 = tpu.matmul %110, %112, %cst_78 {dimension_numbers = #tpu.dot_dimension_numbers<[1], [0], [0], [1], [0, 0, 1, 1], [], []>} : vector<8x128xbf16>, vector<128x128xbf16>, vector<8x128xf32> -> vector<8x128xf32>
    %114 = arith.addf %109, %113 : vector<8x128xf32>
    %115 = math.tanh %114 : vector<8x128xf32>
    %c0_i32_79 = arith.constant 0 : i32
    %116 = arith.cmpi sge, %104, %c0_i32_79 : i32
    %c8_i32_80 = arith.constant 8 : i32
    %117 = arith.cmpi slt, %104, %c8_i32_80 : i32
    %118 = arith.andi %116, %117 : i1
    %119 = arith.select %118, %115, %87 : vector<8x128xf32>
    %c3_i32 = arith.constant 3 : i32
    %c0_i32_81 = arith.constant 0 : i32
    %120 = arith.subi %c3_i32, %c0_i32_81 : i32
    %c7_i32_82 = arith.constant 7 : i32
    %121 = arith.minsi %c3_i32, %c7_i32_82 : i32
    %122 = arith.index_cast %121 : i32 to index
    %c0_83 = arith.constant 0 : index
    %c0_84 = arith.constant 0 : index
    %123 = vector.load %arg10[%122, %c0_83, %c0_84] : memref<8x8x128xbf16, #tpu.memory_space<vmem>>, vector<1x8x128xbf16>
    %124 = vector.shape_cast %123 : vector<1x8x128xbf16> to vector<8x128xbf16>
    %125 = arith.extf %124 : vector<8x128xbf16> to vector<8x128xf32>
    %126 = arith.truncf %103 : vector<8x128xf32> to vector<8x128xbf16>
    %c0_85 = arith.constant 0 : index
    %c0_86 = arith.constant 0 : index
    %c0_87 = arith.constant 0 : index
    %127 = vector.load %arg4[%c0_85, %c0_86, %c0_87] : memref<2x128x128xbf16, #tpu.memory_space<vmem>>, vector<1x128x128xbf16>
    %128 = vector.shape_cast %127 : vector<1x128x128xbf16> to vector<128x128xbf16>
    %cst_88 = arith.constant dense<0.000000e+00> : vector<8x128xf32>
    %129 = tpu.matmul %126, %128, %cst_88 {dimension_numbers = #tpu.dot_dimension_numbers<[1], [0], [0], [1], [0, 0, 1, 1], [], []>} : vector<8x128xbf16>, vector<128x128xbf16>, vector<8x128xf32> -> vector<8x128xf32>
    %130 = arith.addf %125, %129 : vector<8x128xf32>
    %131 = math.tanh %130 : vector<8x128xf32>
    %c0_i32_89 = arith.constant 0 : i32
    %132 = arith.cmpi sge, %120, %c0_i32_89 : i32
    %c8_i32_90 = arith.constant 8 : i32
    %133 = arith.cmpi slt, %120, %c8_i32_90 : i32
    %134 = arith.andi %132, %133 : i1
    %135 = arith.select %134, %131, %103 : vector<8x128xf32>
    %c1_i32_91 = arith.constant 1 : i32
    %136 = arith.subi %c3_i32, %c1_i32_91 : i32
    %137 = arith.truncf %103 : vector<8x128xf32> to vector<8x128xbf16>
    %c0_92 = arith.constant 0 : index
    %c0_93 = arith.constant 0 : index
    %c0_94 = arith.constant 0 : index
    %138 = vector.load %arg3[%c0_92, %c0_93, %c0_94] : memref<1x128x128xbf16, #tpu.memory_space<vmem>>, vector<1x128x128xbf16>
    %139 = vector.shape_cast %138 : vector<1x128x128xbf16> to vector<128x128xbf16>
    %cst_95 = arith.constant dense<0.000000e+00> : vector<8x128xf32>
    %140 = tpu.matmul %137, %139, %cst_95 {dimension_numbers = #tpu.dot_dimension_numbers<[1], [0], [0], [1], [0, 0, 1, 1], [], []>} : vector<8x128xbf16>, vector<128x128xbf16>, vector<8x128xf32> -> vector<8x128xf32>
    %141 = arith.addf %21, %140 : vector<8x128xf32>
    %142 = arith.truncf %119 : vector<8x128xf32> to vector<8x128xbf16>
    %c1_96 = arith.constant 1 : index
    %c0_97 = arith.constant 0 : index
    %c0_98 = arith.constant 0 : index
    %143 = vector.load %arg4[%c1_96, %c0_97, %c0_98] : memref<2x128x128xbf16, #tpu.memory_space<vmem>>, vector<1x128x128xbf16>
    %144 = vector.shape_cast %143 : vector<1x128x128xbf16> to vector<128x128xbf16>
    %cst_99 = arith.constant dense<0.000000e+00> : vector<8x128xf32>
    %145 = tpu.matmul %142, %144, %cst_99 {dimension_numbers = #tpu.dot_dimension_numbers<[1], [0], [0], [1], [0, 0, 1, 1], [], []>} : vector<8x128xbf16>, vector<128x128xbf16>, vector<8x128xf32> -> vector<8x128xf32>
    %146 = arith.addf %141, %145 : vector<8x128xf32>
    %147 = math.tanh %146 : vector<8x128xf32>
    %c0_i32_100 = arith.constant 0 : i32
    %148 = arith.cmpi sge, %136, %c0_i32_100 : i32
    %c8_i32_101 = arith.constant 8 : i32
    %149 = arith.cmpi slt, %136, %c8_i32_101 : i32
    %150 = arith.andi %148, %149 : i1
    %151 = arith.select %150, %147, %119 : vector<8x128xf32>
    %c4_i32 = arith.constant 4 : i32
    %c0_i32_102 = arith.constant 0 : i32
    %152 = arith.subi %c4_i32, %c0_i32_102 : i32
    %c7_i32_103 = arith.constant 7 : i32
    %153 = arith.minsi %c4_i32, %c7_i32_103 : i32
    %154 = arith.index_cast %153 : i32 to index
    %c0_104 = arith.constant 0 : index
    %c0_105 = arith.constant 0 : index
    %155 = vector.load %arg10[%154, %c0_104, %c0_105] : memref<8x8x128xbf16, #tpu.memory_space<vmem>>, vector<1x8x128xbf16>
    %156 = vector.shape_cast %155 : vector<1x8x128xbf16> to vector<8x128xbf16>
    %157 = arith.extf %156 : vector<8x128xbf16> to vector<8x128xf32>
    %158 = arith.truncf %135 : vector<8x128xf32> to vector<8x128xbf16>
    %c0_106 = arith.constant 0 : index
    %c0_107 = arith.constant 0 : index
    %c0_108 = arith.constant 0 : index
    %159 = vector.load %arg4[%c0_106, %c0_107, %c0_108] : memref<2x128x128xbf16, #tpu.memory_space<vmem>>, vector<1x128x128xbf16>
    %160 = vector.shape_cast %159 : vector<1x128x128xbf16> to vector<128x128xbf16>
    %cst_109 = arith.constant dense<0.000000e+00> : vector<8x128xf32>
    %161 = tpu.matmul %158, %160, %cst_109 {dimension_numbers = #tpu.dot_dimension_numbers<[1], [0], [0], [1], [0, 0, 1, 1], [], []>} : vector<8x128xbf16>, vector<128x128xbf16>, vector<8x128xf32> -> vector<8x128xf32>
    %162 = arith.addf %157, %161 : vector<8x128xf32>
    %163 = math.tanh %162 : vector<8x128xf32>
    %c0_i32_110 = arith.constant 0 : i32
    %164 = arith.cmpi sge, %152, %c0_i32_110 : i32
    %c8_i32_111 = arith.constant 8 : i32
    %165 = arith.cmpi slt, %152, %c8_i32_111 : i32
    %166 = arith.andi %164, %165 : i1
    %167 = arith.select %166, %163, %135 : vector<8x128xf32>
    %c1_i32_112 = arith.constant 1 : i32
    %168 = arith.subi %c4_i32, %c1_i32_112 : i32
    %169 = arith.truncf %135 : vector<8x128xf32> to vector<8x128xbf16>
    %c0_113 = arith.constant 0 : index
    %c0_114 = arith.constant 0 : index
    %c0_115 = arith.constant 0 : index
    %170 = vector.load %arg3[%c0_113, %c0_114, %c0_115] : memref<1x128x128xbf16, #tpu.memory_space<vmem>>, vector<1x128x128xbf16>
    %171 = vector.shape_cast %170 : vector<1x128x128xbf16> to vector<128x128xbf16>
    %cst_116 = arith.constant dense<0.000000e+00> : vector<8x128xf32>
    %172 = tpu.matmul %169, %171, %cst_116 {dimension_numbers = #tpu.dot_dimension_numbers<[1], [0], [0], [1], [0, 0, 1, 1], [], []>} : vector<8x128xbf16>, vector<128x128xbf16>, vector<8x128xf32> -> vector<8x128xf32>
    %173 = arith.addf %21, %172 : vector<8x128xf32>
    %174 = arith.truncf %151 : vector<8x128xf32> to vector<8x128xbf16>
    %c1_117 = arith.constant 1 : index
    %c0_118 = arith.constant 0 : index
    %c0_119 = arith.constant 0 : index
    %175 = vector.load %arg4[%c1_117, %c0_118, %c0_119] : memref<2x128x128xbf16, #tpu.memory_space<vmem>>, vector<1x128x128xbf16>
    %176 = vector.shape_cast %175 : vector<1x128x128xbf16> to vector<128x128xbf16>
    %cst_120 = arith.constant dense<0.000000e+00> : vector<8x128xf32>
    %177 = tpu.matmul %174, %176, %cst_120 {dimension_numbers = #tpu.dot_dimension_numbers<[1], [0], [0], [1], [0, 0, 1, 1], [], []>} : vector<8x128xbf16>, vector<128x128xbf16>, vector<8x128xf32> -> vector<8x128xf32>
    %178 = arith.addf %173, %177 : vector<8x128xf32>
    %179 = math.tanh %178 : vector<8x128xf32>
    %c0_i32_121 = arith.constant 0 : i32
    %180 = arith.cmpi sge, %168, %c0_i32_121 : i32
    %c8_i32_122 = arith.constant 8 : i32
    %181 = arith.cmpi slt, %168, %c8_i32_122 : i32
    %182 = arith.andi %180, %181 : i1
    %183 = arith.select %182, %179, %151 : vector<8x128xf32>
    %c5_i32 = arith.constant 5 : i32
    %c0_i32_123 = arith.constant 0 : i32
    %184 = arith.subi %c5_i32, %c0_i32_123 : i32
    %c7_i32_124 = arith.constant 7 : i32
    %185 = arith.minsi %c5_i32, %c7_i32_124 : i32
    %186 = arith.index_cast %185 : i32 to index
    %c0_125 = arith.constant 0 : index
    %c0_126 = arith.constant 0 : index
    %187 = vector.load %arg10[%186, %c0_125, %c0_126] : memref<8x8x128xbf16, #tpu.memory_space<vmem>>, vector<1x8x128xbf16>
    %188 = vector.shape_cast %187 : vector<1x8x128xbf16> to vector<8x128xbf16>
    %189 = arith.extf %188 : vector<8x128xbf16> to vector<8x128xf32>
    %190 = arith.truncf %167 : vector<8x128xf32> to vector<8x128xbf16>
    %c0_127 = arith.constant 0 : index
    %c0_128 = arith.constant 0 : index
    %c0_129 = arith.constant 0 : index
    %191 = vector.load %arg4[%c0_127, %c0_128, %c0_129] : memref<2x128x128xbf16, #tpu.memory_space<vmem>>, vector<1x128x128xbf16>
    %192 = vector.shape_cast %191 : vector<1x128x128xbf16> to vector<128x128xbf16>
    %cst_130 = arith.constant dense<0.000000e+00> : vector<8x128xf32>
    %193 = tpu.matmul %190, %192, %cst_130 {dimension_numbers = #tpu.dot_dimension_numbers<[1], [0], [0], [1], [0, 0, 1, 1], [], []>} : vector<8x128xbf16>, vector<128x128xbf16>, vector<8x128xf32> -> vector<8x128xf32>
    %194 = arith.addf %189, %193 : vector<8x128xf32>
    %195 = math.tanh %194 : vector<8x128xf32>
    %c0_i32_131 = arith.constant 0 : i32
    %196 = arith.cmpi sge, %184, %c0_i32_131 : i32
    %c8_i32_132 = arith.constant 8 : i32
    %197 = arith.cmpi slt, %184, %c8_i32_132 : i32
    %198 = arith.andi %196, %197 : i1
    %199 = arith.select %198, %195, %167 : vector<8x128xf32>
    %c1_i32_133 = arith.constant 1 : i32
    %200 = arith.subi %c5_i32, %c1_i32_133 : i32
    %201 = arith.truncf %167 : vector<8x128xf32> to vector<8x128xbf16>
    %c0_134 = arith.constant 0 : index
    %c0_135 = arith.constant 0 : index
    %c0_136 = arith.constant 0 : index
    %202 = vector.load %arg3[%c0_134, %c0_135, %c0_136] : memref<1x128x128xbf16, #tpu.memory_space<vmem>>, vector<1x128x128xbf16>
    %203 = vector.shape_cast %202 : vector<1x128x128xbf16> to vector<128x128xbf16>
    %cst_137 = arith.constant dense<0.000000e+00> : vector<8x128xf32>
    %204 = tpu.matmul %201, %203, %cst_137 {dimension_numbers = #tpu.dot_dimension_numbers<[1], [0], [0], [1], [0, 0, 1, 1], [], []>} : vector<8x128xbf16>, vector<128x128xbf16>, vector<8x128xf32> -> vector<8x128xf32>
    %205 = arith.addf %21, %204 : vector<8x128xf32>
    %206 = arith.truncf %183 : vector<8x128xf32> to vector<8x128xbf16>
    %c1_138 = arith.constant 1 : index
    %c0_139 = arith.constant 0 : index
    %c0_140 = arith.constant 0 : index
    %207 = vector.load %arg4[%c1_138, %c0_139, %c0_140] : memref<2x128x128xbf16, #tpu.memory_space<vmem>>, vector<1x128x128xbf16>
    %208 = vector.shape_cast %207 : vector<1x128x128xbf16> to vector<128x128xbf16>
    %cst_141 = arith.constant dense<0.000000e+00> : vector<8x128xf32>
    %209 = tpu.matmul %206, %208, %cst_141 {dimension_numbers = #tpu.dot_dimension_numbers<[1], [0], [0], [1], [0, 0, 1, 1], [], []>} : vector<8x128xbf16>, vector<128x128xbf16>, vector<8x128xf32> -> vector<8x128xf32>
    %210 = arith.addf %205, %209 : vector<8x128xf32>
    %211 = math.tanh %210 : vector<8x128xf32>
    %c0_i32_142 = arith.constant 0 : i32
    %212 = arith.cmpi sge, %200, %c0_i32_142 : i32
    %c8_i32_143 = arith.constant 8 : i32
    %213 = arith.cmpi slt, %200, %c8_i32_143 : i32
    %214 = arith.andi %212, %213 : i1
    %215 = arith.select %214, %211, %183 : vector<8x128xf32>
    %c6_i32 = arith.constant 6 : i32
    %c0_i32_144 = arith.constant 0 : i32
    %216 = arith.subi %c6_i32, %c0_i32_144 : i32
    %c7_i32_145 = arith.constant 7 : i32
    %217 = arith.minsi %c6_i32, %c7_i32_145 : i32
    %218 = arith.index_cast %217 : i32 to index
    %c0_146 = arith.constant 0 : index
    %c0_147 = arith.constant 0 : index
    %219 = vector.load %arg10[%218, %c0_146, %c0_147] : memref<8x8x128xbf16, #tpu.memory_space<vmem>>, vector<1x8x128xbf16>
    %220 = vector.shape_cast %219 : vector<1x8x128xbf16> to vector<8x128xbf16>
    %221 = arith.extf %220 : vector<8x128xbf16> to vector<8x128xf32>
    %222 = arith.truncf %199 : vector<8x128xf32> to vector<8x128xbf16>
    %c0_148 = arith.constant 0 : index
    %c0_149 = arith.constant 0 : index
    %c0_150 = arith.constant 0 : index
    %223 = vector.load %arg4[%c0_148, %c0_149, %c0_150] : memref<2x128x128xbf16, #tpu.memory_space<vmem>>, vector<1x128x128xbf16>
    %224 = vector.shape_cast %223 : vector<1x128x128xbf16> to vector<128x128xbf16>
    %cst_151 = arith.constant dense<0.000000e+00> : vector<8x128xf32>
    %225 = tpu.matmul %222, %224, %cst_151 {dimension_numbers = #tpu.dot_dimension_numbers<[1], [0], [0], [1], [0, 0, 1, 1], [], []>} : vector<8x128xbf16>, vector<128x128xbf16>, vector<8x128xf32> -> vector<8x128xf32>
    %226 = arith.addf %221, %225 : vector<8x128xf32>
    %227 = math.tanh %226 : vector<8x128xf32>
    %c0_i32_152 = arith.constant 0 : i32
    %228 = arith.cmpi sge, %216, %c0_i32_152 : i32
    %c8_i32_153 = arith.constant 8 : i32
    %229 = arith.cmpi slt, %216, %c8_i32_153 : i32
    %230 = arith.andi %228, %229 : i1
    %231 = arith.select %230, %227, %199 : vector<8x128xf32>
    %c1_i32_154 = arith.constant 1 : i32
    %232 = arith.subi %c6_i32, %c1_i32_154 : i32
    %233 = arith.truncf %199 : vector<8x128xf32> to vector<8x128xbf16>
    %c0_155 = arith.constant 0 : index
    %c0_156 = arith.constant 0 : index
    %c0_157 = arith.constant 0 : index
    %234 = vector.load %arg3[%c0_155, %c0_156, %c0_157] : memref<1x128x128xbf16, #tpu.memory_space<vmem>>, vector<1x128x128xbf16>
    %235 = vector.shape_cast %234 : vector<1x128x128xbf16> to vector<128x128xbf16>
    %cst_158 = arith.constant dense<0.000000e+00> : vector<8x128xf32>
    %236 = tpu.matmul %233, %235, %cst_158 {dimension_numbers = #tpu.dot_dimension_numbers<[1], [0], [0], [1], [0, 0, 1, 1], [], []>} : vector<8x128xbf16>, vector<128x128xbf16>, vector<8x128xf32> -> vector<8x128xf32>
    %237 = arith.addf %21, %236 : vector<8x128xf32>
    %238 = arith.truncf %215 : vector<8x128xf32> to vector<8x128xbf16>
    %c1_159 = arith.constant 1 : index
    %c0_160 = arith.constant 0 : index
    %c0_161 = arith.constant 0 : index
    %239 = vector.load %arg4[%c1_159, %c0_160, %c0_161] : memref<2x128x128xbf16, #tpu.memory_space<vmem>>, vector<1x128x128xbf16>
    %240 = vector.shape_cast %239 : vector<1x128x128xbf16> to vector<128x128xbf16>
    %cst_162 = arith.constant dense<0.000000e+00> : vector<8x128xf32>
    %241 = tpu.matmul %238, %240, %cst_162 {dimension_numbers = #tpu.dot_dimension_numbers<[1], [0], [0], [1], [0, 0, 1, 1], [], []>} : vector<8x128xbf16>, vector<128x128xbf16>, vector<8x128xf32> -> vector<8x128xf32>
    %242 = arith.addf %237, %241 : vector<8x128xf32>
    %243 = math.tanh %242 : vector<8x128xf32>
    %c0_i32_163 = arith.constant 0 : i32
    %244 = arith.cmpi sge, %232, %c0_i32_163 : i32
    %c8_i32_164 = arith.constant 8 : i32
    %245 = arith.cmpi slt, %232, %c8_i32_164 : i32
    %246 = arith.andi %244, %245 : i1
    %247 = arith.select %246, %243, %215 : vector<8x128xf32>
    %c7_i32_165 = arith.constant 7 : i32
    %c0_i32_166 = arith.constant 0 : i32
    %248 = arith.subi %c7_i32_165, %c0_i32_166 : i32
    %c7_i32_167 = arith.constant 7 : i32
    %249 = arith.minsi %c7_i32_165, %c7_i32_167 : i32
    %250 = arith.index_cast %249 : i32 to index
    %c0_168 = arith.constant 0 : index
    %c0_169 = arith.constant 0 : index
    %251 = vector.load %arg10[%250, %c0_168, %c0_169] : memref<8x8x128xbf16, #tpu.memory_space<vmem>>, vector<1x8x128xbf16>
    %252 = vector.shape_cast %251 : vector<1x8x128xbf16> to vector<8x128xbf16>
    %253 = arith.extf %252 : vector<8x128xbf16> to vector<8x128xf32>
    %254 = arith.truncf %231 : vector<8x128xf32> to vector<8x128xbf16>
    %c0_170 = arith.constant 0 : index
    %c0_171 = arith.constant 0 : index
    %c0_172 = arith.constant 0 : index
    %255 = vector.load %arg4[%c0_170, %c0_171, %c0_172] : memref<2x128x128xbf16, #tpu.memory_space<vmem>>, vector<1x128x128xbf16>
    %256 = vector.shape_cast %255 : vector<1x128x128xbf16> to vector<128x128xbf16>
    %cst_173 = arith.constant dense<0.000000e+00> : vector<8x128xf32>
    %257 = tpu.matmul %254, %256, %cst_173 {dimension_numbers = #tpu.dot_dimension_numbers<[1], [0], [0], [1], [0, 0, 1, 1], [], []>} : vector<8x128xbf16>, vector<128x128xbf16>, vector<8x128xf32> -> vector<8x128xf32>
    %258 = arith.addf %253, %257 : vector<8x128xf32>
    %259 = math.tanh %258 : vector<8x128xf32>
    %c0_i32_174 = arith.constant 0 : i32
    %260 = arith.cmpi sge, %248, %c0_i32_174 : i32
    %c8_i32_175 = arith.constant 8 : i32
    %261 = arith.cmpi slt, %248, %c8_i32_175 : i32
    %262 = arith.andi %260, %261 : i1
    %263 = arith.select %262, %259, %231 : vector<8x128xf32>
    %c1_i32_176 = arith.constant 1 : i32
    %264 = arith.subi %c7_i32_165, %c1_i32_176 : i32
    %265 = arith.truncf %231 : vector<8x128xf32> to vector<8x128xbf16>
    %c0_177 = arith.constant 0 : index
    %c0_178 = arith.constant 0 : index
    %c0_179 = arith.constant 0 : index
    %266 = vector.load %arg3[%c0_177, %c0_178, %c0_179] : memref<1x128x128xbf16, #tpu.memory_space<vmem>>, vector<1x128x128xbf16>
    %267 = vector.shape_cast %266 : vector<1x128x128xbf16> to vector<128x128xbf16>
    %cst_180 = arith.constant dense<0.000000e+00> : vector<8x128xf32>
    %268 = tpu.matmul %265, %267, %cst_180 {dimension_numbers = #tpu.dot_dimension_numbers<[1], [0], [0], [1], [0, 0, 1, 1], [], []>} : vector<8x128xbf16>, vector<128x128xbf16>, vector<8x128xf32> -> vector<8x128xf32>
    %269 = arith.addf %21, %268 : vector<8x128xf32>
    %270 = arith.truncf %247 : vector<8x128xf32> to vector<8x128xbf16>
    %c1_181 = arith.constant 1 : index
    %c0_182 = arith.constant 0 : index
    %c0_183 = arith.constant 0 : index
    %271 = vector.load %arg4[%c1_181, %c0_182, %c0_183] : memref<2x128x128xbf16, #tpu.memory_space<vmem>>, vector<1x128x128xbf16>
    %272 = vector.shape_cast %271 : vector<1x128x128xbf16> to vector<128x128xbf16>
    %cst_184 = arith.constant dense<0.000000e+00> : vector<8x128xf32>
    %273 = tpu.matmul %270, %272, %cst_184 {dimension_numbers = #tpu.dot_dimension_numbers<[1], [0], [0], [1], [0, 0, 1, 1], [], []>} : vector<8x128xbf16>, vector<128x128xbf16>, vector<8x128xf32> -> vector<8x128xf32>
    %274 = arith.addf %269, %273 : vector<8x128xf32>
    %275 = math.tanh %274 : vector<8x128xf32>
    %c0_i32_185 = arith.constant 0 : i32
    %276 = arith.cmpi sge, %264, %c0_i32_185 : i32
    %c8_i32_186 = arith.constant 8 : i32
    %277 = arith.cmpi slt, %264, %c8_i32_186 : i32
    %278 = arith.andi %276, %277 : i1
    %279 = arith.select %278, %275, %247 : vector<8x128xf32>
    %c8_i32_187 = arith.constant 8 : i32
    %c0_i32_188 = arith.constant 0 : i32
    %280 = arith.subi %c8_i32_187, %c0_i32_188 : i32
    %c7_i32_189 = arith.constant 7 : i32
    %281 = arith.minsi %c8_i32_187, %c7_i32_189 : i32
    %282 = arith.index_cast %281 : i32 to index
    %c0_190 = arith.constant 0 : index
    %c0_191 = arith.constant 0 : index
    %283 = vector.load %arg10[%282, %c0_190, %c0_191] : memref<8x8x128xbf16, #tpu.memory_space<vmem>>, vector<1x8x128xbf16>
    %284 = vector.shape_cast %283 : vector<1x8x128xbf16> to vector<8x128xbf16>
    %285 = arith.extf %284 : vector<8x128xbf16> to vector<8x128xf32>
    %286 = arith.truncf %263 : vector<8x128xf32> to vector<8x128xbf16>
    %c0_192 = arith.constant 0 : index
    %c0_193 = arith.constant 0 : index
    %c0_194 = arith.constant 0 : index
    %287 = vector.load %arg4[%c0_192, %c0_193, %c0_194] : memref<2x128x128xbf16, #tpu.memory_space<vmem>>, vector<1x128x128xbf16>
    %288 = vector.shape_cast %287 : vector<1x128x128xbf16> to vector<128x128xbf16>
    %cst_195 = arith.constant dense<0.000000e+00> : vector<8x128xf32>
    %289 = tpu.matmul %286, %288, %cst_195 {dimension_numbers = #tpu.dot_dimension_numbers<[1], [0], [0], [1], [0, 0, 1, 1], [], []>} : vector<8x128xbf16>, vector<128x128xbf16>, vector<8x128xf32> -> vector<8x128xf32>
    %290 = arith.addf %285, %289 : vector<8x128xf32>
    %291 = math.tanh %290 : vector<8x128xf32>
    %c0_i32_196 = arith.constant 0 : i32
    %292 = arith.cmpi sge, %280, %c0_i32_196 : i32
    %c8_i32_197 = arith.constant 8 : i32
    %293 = arith.cmpi slt, %280, %c8_i32_197 : i32
    %294 = arith.andi %292, %293 : i1
    %295 = arith.select %294, %291, %263 : vector<8x128xf32>
    %c1_i32_198 = arith.constant 1 : i32
    %296 = arith.subi %c8_i32_187, %c1_i32_198 : i32
    %297 = arith.truncf %263 : vector<8x128xf32> to vector<8x128xbf16>
    %c0_199 = arith.constant 0 : index
    %c0_200 = arith.constant 0 : index
    %c0_201 = arith.constant 0 : index
    %298 = vector.load %arg3[%c0_199, %c0_200, %c0_201] : memref<1x128x128xbf16, #tpu.memory_space<vmem>>, vector<1x128x128xbf16>
    %299 = vector.shape_cast %298 : vector<1x128x128xbf16> to vector<128x128xbf16>
    %cst_202 = arith.constant dense<0.000000e+00> : vector<8x128xf32>
    %300 = tpu.matmul %297, %299, %cst_202 {dimension_numbers = #tpu.dot_dimension_numbers<[1], [0], [0], [1], [0, 0, 1, 1], [], []>} : vector<8x128xbf16>, vector<128x128xbf16>, vector<8x128xf32> -> vector<8x128xf32>
    %301 = arith.addf %21, %300 : vector<8x128xf32>
    %302 = arith.truncf %279 : vector<8x128xf32> to vector<8x128xbf16>
    %c1_203 = arith.constant 1 : index
    %c0_204 = arith.constant 0 : index
    %c0_205 = arith.constant 0 : index
    %303 = vector.load %arg4[%c1_203, %c0_204, %c0_205] : memref<2x128x128xbf16, #tpu.memory_space<vmem>>, vector<1x128x128xbf16>
    %304 = vector.shape_cast %303 : vector<1x128x128xbf16> to vector<128x128xbf16>
    %cst_206 = arith.constant dense<0.000000e+00> : vector<8x128xf32>
    %305 = tpu.matmul %302, %304, %cst_206 {dimension_numbers = #tpu.dot_dimension_numbers<[1], [0], [0], [1], [0, 0, 1, 1], [], []>} : vector<8x128xbf16>, vector<128x128xbf16>, vector<8x128xf32> -> vector<8x128xf32>
    %306 = arith.addf %301, %305 : vector<8x128xf32>
    %307 = math.tanh %306 : vector<8x128xf32>
    %c0_i32_207 = arith.constant 0 : i32
    %308 = arith.cmpi sge, %296, %c0_i32_207 : i32
    %c8_i32_208 = arith.constant 8 : i32
    %309 = arith.cmpi slt, %296, %c8_i32_208 : i32
    %310 = arith.andi %308, %309 : i1
    %311 = arith.select %310, %307, %279 : vector<8x128xf32>
    %c9_i32 = arith.constant 9 : i32
    %cst_209 = arith.constant 0.000000e+00 : f32
    %312 = vector.broadcast %cst_209 : f32 to vector<8x128xf32>
    %313 = arith.maximumf %311, %312 : vector<8x128xf32>
    %314 = arith.truncf %313 : vector<8x128xf32> to vector<8x128xbf16>
    %c0_210 = arith.constant 0 : index
    %c0_211 = arith.constant 0 : index
    %315 = vector.load %arg7[%c0_210, %c0_211] : memref<128x128xbf16, #tpu.memory_space<vmem>>, vector<128x128xbf16>
    %cst_212 = arith.constant dense<0.000000e+00> : vector<8x128xf32>
    %316 = tpu.matmul %314, %315, %cst_212 {dimension_numbers = #tpu.dot_dimension_numbers<[1], [0], [0], [1], [0, 0, 1, 1], [], []>} : vector<8x128xbf16>, vector<128x128xbf16>, vector<8x128xf32> -> vector<8x128xf32>
    %c0_213 = arith.constant 0 : index
    %c0_214 = arith.constant 0 : index
    %317 = vector.load %arg8[%c0_213, %c0_214] : memref<1x128xf32, #tpu.memory_space<vmem>>, vector<1x128xf32>
    %318 = vector.broadcast %317 : vector<1x128xf32> to vector<8x128xf32>
    %319 = arith.addf %316, %318 : vector<8x128xf32>
    %c0_215 = arith.constant 0 : index
    %c0_216 = arith.constant 0 : index
    %320 = vector.load %arg9[%c0_215, %c0_216] : memref<8x128xf32, #tpu.memory_space<vmem>>, vector<8x128xf32>
    tpu.vector_store %arg9[%c0_215, %c0_216], %319 {strides = array<i32>} : memref<8x128xf32, #tpu.memory_space<vmem>>, vector<8x128xf32>,
    return
  }
  func.func @transform_0(%arg0: i32) -> (i32, i32, i32) {
    %c0_i32 = arith.constant 0 : i32
    %c0_i32_0 = arith.constant 0 : i32
    %c0_i32_1 = arith.constant 0 : i32
    return %c0_i32, %arg0, %c0_i32_0 : i32, i32, i32
  }
  func.func @transform_1(%arg0: i32) -> (i32, i32) {
    %c0_i32 = arith.constant 0 : i32
    %c0_i32_0 = arith.constant 0 : i32
    %c0_i32_1 = arith.constant 0 : i32
    return %c0_i32, %c0_i32_0 : i32, i32
  }
  func.func @transform_2(%arg0: i32) -> (i32, i32, i32) {
    %c0_i32 = arith.constant 0 : i32
    %c0_i32_0 = arith.constant 0 : i32
    %c0_i32_1 = arith.constant 0 : i32
    %c0_i32_2 = arith.constant 0 : i32
    return %c0_i32, %c0_i32_0, %c0_i32_1 : i32, i32, i32
  }
  func.func @transform_3(%arg0: i32) -> (i32, i32, i32) {
    %c0_i32 = arith.constant 0 : i32
    %c0_i32_0 = arith.constant 0 : i32
    %c0_i32_1 = arith.constant 0 : i32
    %c0_i32_2 = arith.constant 0 : i32
    return %c0_i32, %c0_i32_0, %c0_i32_1 : i32, i32, i32
  }
  func.func @transform_4(%arg0: i32) -> (i32, i32, i32) {
    %c0_i32 = arith.constant 0 : i32
    %c0_i32_0 = arith.constant 0 : i32
    %c0_i32_1 = arith.constant 0 : i32
    %c0_i32_2 = arith.constant 0 : i32
    return %c0_i32, %c0_i32_0, %c0_i32_1 : i32, i32, i32
  }
  func.func @transform_5(%arg0: i32) -> (i32, i32, i32) {
    %c0_i32 = arith.constant 0 : i32
    %c0_i32_0 = arith.constant 0 : i32
    %c0_i32_1 = arith.constant 0 : i32
    %c0_i32_2 = arith.constant 0 : i32
    return %c0_i32, %c0_i32_0, %c0_i32_1 : i32, i32, i32
  }
  func.func @transform_6(%arg0: i32) -> (i32, i32) {
    %c0_i32 = arith.constant 0 : i32
    %c0_i32_0 = arith.constant 0 : i32
    %c0_i32_1 = arith.constant 0 : i32
    return %c0_i32, %c0_i32_0 : i32, i32
  }
  func.func @transform_7(%arg0: i32) -> (i32, i32) {
    %c0_i32 = arith.constant 0 : i32
    %c0_i32_0 = arith.constant 0 : i32
    %c0_i32_1 = arith.constant 0 : i32
    return %c0_i32, %c0_i32_0 : i32, i32
  }
  func.func @transform_8(%arg0: i32) -> (i32, i32) {
    %c0_i32 = arith.constant 0 : i32
    %c0_i32_0 = arith.constant 0 : i32
    return %arg0, %c0_i32 : i32, i32
  }
}

module attributes {stable_mosaic.version = 11 : i64} {
  func.func @rnn_kernel(%arg0: i32, %arg1: memref<8x8x128xf32, #tpu.memory_space<vmem>>, %arg2: memref<128x128xbf16, #tpu.memory_space<vmem>>, %arg3: memref<1x128x128xbf16, #tpu.memory_space<vmem>>, %arg4: memref<2x128x128xbf16, #tpu.memory_space<vmem>>, %arg5: memref<2x1x128xf32, #tpu.memory_space<vmem>>, %arg6: memref<2x1x128xf32, #tpu.memory_space<vmem>>, %arg7: memref<128x128xbf16, #tpu.memory_space<vmem>>, %arg8: memref<1x128xf32, #tpu.memory_space<vmem>>, %arg9: memref<8x128xf32, #tpu.memory_space<vmem>>, %arg10: memref<8x8x128xbf16, #tpu.memory_space<vmem>>) attributes {dimension_semantics = [#tpu.dimension_semantics<parallel>], iteration_bounds = array<i64: 1>, scalar_prefetch = 0 : i64, scratch_operands = 1 : i64, tpu.core_type = #tpu.core_type<tc>, window_params = [{transform_indices = @transform_0, window_bounds = array<i64: 8, 8, 128>}, {pipeline_mode = #tpu.pipeline_mode<synchronous>, transform_indices = @transform_1, window_bounds = array<i64: 128, 128>}, {pipeline_mode = #tpu.pipeline_mode<synchronous>, transform_indices = @transform_2, window_bounds = array<i64: 1, 128, 128>}, {pipeline_mode = #tpu.pipeline_mode<synchronous>, transform_indices = @transform_3, window_bounds = array<i64: 2, 128, 128>}, {pipeline_mode = #tpu.pipeline_mode<synchronous>, transform_indices = @transform_4, window_bounds = array<i64: 2, 1, 128>}, {pipeline_mode = #tpu.pipeline_mode<synchronous>, transform_indices = @transform_5, window_bounds = array<i64: 2, 1, 128>}, {pipeline_mode = #tpu.pipeline_mode<synchronous>, transform_indices = @transform_6, window_bounds = array<i64: 128, 128>}, {pipeline_mode = #tpu.pipeline_mode<synchronous>, transform_indices = @transform_7, window_bounds = array<i64: 1, 128>}, {transform_indices = @transform_8, window_bounds = array<i64: 8, 128>}]} {
    %c0 = arith.constant 0 : index
    %c0_0 = arith.constant 0 : index
    %c0_1 = arith.constant 0 : index
    %0 = vector.load %arg5[%c0, %c0_0, %c0_1] : memref<2x1x128xf32, #tpu.memory_space<vmem>>, vector<1x1x128xf32>
    %1 = vector.shape_cast %0 : vector<1x1x128xf32> to vector<1x128xf32>
    %c0_2 = arith.constant 0 : index
    %c0_3 = arith.constant 0 : index
    %c0_4 = arith.constant 0 : index
    %2 = vector.load %arg6[%c0_2, %c0_3, %c0_4] : memref<2x1x128xf32, #tpu.memory_space<vmem>>, vector<1x1x128xf32>
    %3 = vector.shape_cast %2 : vector<1x1x128xf32> to vector<1x128xf32>
    %4 = arith.addf %1, %3 : vector<1x128xf32>
    %c0_5 = arith.constant 0 : index
    %c0_6 = arith.constant 0 : index
    %c0_7 = arith.constant 0 : index
    %5 = vector.load %arg1[%c0_5, %c0_6, %c0_7] : memref<8x8x128xf32, #tpu.memory_space<vmem>>, vector<8x8x128xf32>
    %6 = vector.shape_cast %5 : vector<8x8x128xf32> to vector<64x128xf32>
    %7 = arith.truncf %6 : vector<64x128xf32> to vector<64x128xbf16>
    %c0_8 = arith.constant 0 : index
    %c0_9 = arith.constant 0 : index
    %8 = vector.load %arg2[%c0_8, %c0_9] : memref<128x128xbf16, #tpu.memory_space<vmem>>, vector<128x128xbf16>
    %cst = arith.constant dense<0.000000e+00> : vector<64x128xf32>
    %9 = tpu.matmul %7, %8, %cst {dimension_numbers = #tpu.dot_dimension_numbers<[1], [0], [0], [1], [0, 0, 1, 1], [], []>} : vector<64x128xbf16>, vector<128x128xbf16>, vector<64x128xf32> -> vector<64x128xf32>
    %10 = vector.broadcast %4 : vector<1x128xf32> to vector<64x128xf32>
    %11 = arith.addf %9, %10 : vector<64x128xf32>
    %12 = vector.shape_cast %11 : vector<64x128xf32> to vector<8x8x128xf32>
    %13 = arith.truncf %12 : vector<8x8x128xf32> to vector<8x8x128xbf16>
    %c0_10 = arith.constant 0 : index
    %c0_11 = arith.constant 0 : index
    %c0_12 = arith.constant 0 : index
    %14 = vector.load %arg10[%c0_10, %c0_11, %c0_12] : memref<8x8x128xbf16, #tpu.memory_space<vmem>>, vector<8x8x128xbf16>
    tpu.vector_store %arg10[%c0_10, %c0_11, %c0_12], %13 {strides = array<i32>} : memref<8x8x128xbf16, #tpu.memory_space<vmem>>, vector<8x8x128xbf16>,
    %c1 = arith.constant 1 : index
    %c0_13 = arith.constant 0 : index
    %c0_14 = arith.constant 0 : index
    %15 = vector.load %arg5[%c1, %c0_13, %c0_14] : memref<2x1x128xf32, #tpu.memory_space<vmem>>, vector<1x1x128xf32>
    %16 = vector.shape_cast %15 : vector<1x1x128xf32> to vector<1x128xf32>
    %c1_15 = arith.constant 1 : index
    %c0_16 = arith.constant 0 : index
    %c0_17 = arith.constant 0 : index
    %17 = vector.load %arg6[%c1_15, %c0_16, %c0_17] : memref<2x1x128xf32, #tpu.memory_space<vmem>>, vector<1x1x128xf32>
    %18 = vector.shape_cast %17 : vector<1x1x128xf32> to vector<1x128xf32>
    %19 = arith.addf %16, %18 : vector<1x128xf32>
    %20 = vector.shape_cast %19 : vector<1x128xf32> to vector<1x128xf32>
    %21 = vector.broadcast %20 : vector<1x128xf32> to vector<8x128xf32>
    %cst_18 = arith.constant 0.000000e+00 : f32
    %22 = vector.broadcast %cst_18 : f32 to vector<8x128xf32>
    %cst_19 = arith.constant 0.000000e+00 : f32
    %23 = vector.broadcast %cst_19 : f32 to vector<8x128xf32>
    %c0_i32 = arith.constant 0 : i32
    %c0_i32_20 = arith.constant 0 : i32
    %24 = arith.subi %c0_i32, %c0_i32_20 : i32
    %c7_i32 = arith.constant 7 : i32
    %25 = arith.minsi %c0_i32, %c7_i32 : i32
    %26 = arith.index_cast %25 : i32 to index
    %c0_21 = arith.constant 0 : index
    %c0_22 = arith.constant 0 : index
    %27 = vector.load %arg10[%26, %c0_21, %c0_22] : memref<8x8x128xbf16, #tpu.memory_space<vmem>>, vector<1x8x128xbf16>
    %28 = vector.shape_cast %27 : vector<1x8x128xbf16> to vector<8x128xbf16>
    %29 = arith.extf %28 : vector<8x128xbf16> to vector<8x128xf32>
    %30 = arith.truncf %22 : vector<8x128xf32> to vector<8x128xbf16>
    %c0_23 = arith.constant 0 : index
    %c0_24 = arith.constant 0 : index
    %c0_25 = arith.constant 0 : index
    %31 = vector.load %arg4[%c0_23, %c0_24, %c0_25] : memref<2x128x128xbf16, #tpu.memory_space<vmem>>, vector<1x128x128xbf16>
    %32 = vector.shape_cast %31 : vector<1x128x128xbf16> to vector<128x128xbf16>
    %cst_26 = arith.constant dense<0.000000e+00> : vector<8x128xf32>
    %33 = tpu.matmul %30, %32, %cst_26 {dimension_numbers = #tpu.dot_dimension_numbers<[1], [0], [0], [1], [0, 0, 1, 1], [], []>} : vector<8x128xbf16>, vector<128x128xbf16>, vector<8x128xf32> -> vector<8x128xf32>
    %34 = arith.addf %29, %33 : vector<8x128xf32>
    %35 = math.tanh %34 : vector<8x128xf32>
    %c0_i32_27 = arith.constant 0 : i32
    %36 = arith.cmpi sge, %24, %c0_i32_27 : i32
    %c8_i32 = arith.constant 8 : i32
    %37 = arith.cmpi slt, %24, %c8_i32 : i32
    %38 = arith.andi %36, %37 : i1
    %39 = arith.select %38, %35, %22 : vector<8x128xf32>
    %c1_i32 = arith.constant 1 : i32
    %40 = arith.subi %c0_i32, %c1_i32 : i32
    %41 = arith.truncf %22 : vector<8x128xf32> to vector<8x128xbf16>
    %c0_28 = arith.constant 0 : index
    %c0_29 = arith.constant 0 : index
    %c0_30 = arith.constant 0 : index
    %42 = vector.load %arg3[%c0_28, %c0_29, %c0_30] : memref<1x128x128xbf16, #tpu.memory_space<vmem>>, vector<1x128x128xbf16>
    %43 = vector.shape_cast %42 : vector<1x128x128xbf16> to vector<128x128xbf16>
    %cst_31 = arith.constant dense<0.000000e+00> : vector<8x128xf32>
    %44 = tpu.matmul %41, %43, %cst_31 {dimension_numbers = #tpu.dot_dimension_numbers<[1], [0], [0], [1], [0, 0, 1, 1], [], []>} : vector<8x128xbf16>, vector<128x128xbf16>, vector<8x128xf32> -> vector<8x128xf32>
    %45 = arith.addf %21, %44 : vector<8x128xf32>
    %46 = arith.truncf %23 : vector<8x128xf32> to vector<8x128xbf16>
    %c1_32 = arith.constant 1 : index
    %c0_33 = arith.constant 0 : index
    %c0_34 = arith.constant 0 : index
    %47 = vector.load %arg4[%c1_32, %c0_33, %c0_34] : memref<2x128x128xbf16, #tpu.memory_space<vmem>>, vector<1x128x128xbf16>
    %48 = vector.shape_cast %47 : vector<1x128x128xbf16> to vector<128x128xbf16>
    %cst_35 = arith.constant dense<0.000000e+00> : vector<8x128xf32>
    %49 = tpu.matmul %46, %48, %cst_35 {dimension_numbers = #tpu.dot_dimension_numbers<[1], [0], [0], [1], [0, 0, 1, 1], [], []>} : vector<8x128xbf16>, vector<128x128xbf16>, vector<8x128xf32> -> vector<8x128xf32>
    %50 = arith.addf %45, %49 : vector<8x128xf32>
    %51 = math.tanh %50 : vector<8x128xf32>
    %c0_i32_36 = arith.constant 0 : i32
    %52 = arith.cmpi sge, %40, %c0_i32_36 : i32
    %c8_i32_37 = arith.constant 8 : i32
    %53 = arith.cmpi slt, %40, %c8_i32_37 : i32
    %54 = arith.andi %52, %53 : i1
    %55 = arith.select %54, %51, %23 : vector<8x128xf32>
    %c1_i32_38 = arith.constant 1 : i32
    %c0_i32_39 = arith.constant 0 : i32
    %56 = arith.subi %c1_i32_38, %c0_i32_39 : i32
    %c7_i32_40 = arith.constant 7 : i32
    %57 = arith.minsi %c1_i32_38, %c7_i32_40 : i32
    %58 = arith.index_cast %57 : i32 to index
    %c0_41 = arith.constant 0 : index
    %c0_42 = arith.constant 0 : index
    %59 = vector.load %arg10[%58, %c0_41, %c0_42] : memref<8x8x128xbf16, #tpu.memory_space<vmem>>, vector<1x8x128xbf16>
    %60 = vector.shape_cast %59 : vector<1x8x128xbf16> to vector<8x128xbf16>
    %61 = arith.extf %60 : vector<8x128xbf16> to vector<8x128xf32>
    %62 = arith.truncf %39 : vector<8x128xf32> to vector<8x128xbf16>
    %c0_43 = arith.constant 0 : index
    %c0_44 = arith.constant 0 : index
    %c0_45 = arith.constant 0 : index
    %63 = vector.load %arg4[%c0_43, %c0_44, %c0_45] : memref<2x128x128xbf16, #tpu.memory_space<vmem>>, vector<1x128x128xbf16>
    %64 = vector.shape_cast %63 : vector<1x128x128xbf16> to vector<128x128xbf16>
    %cst_46 = arith.constant dense<0.000000e+00> : vector<8x128xf32>
    %65 = tpu.matmul %62, %64, %cst_46 {dimension_numbers = #tpu.dot_dimension_numbers<[1], [0], [0], [1], [0, 0, 1, 1], [], []>} : vector<8x128xbf16>, vector<128x128xbf16>, vector<8x128xf32> -> vector<8x128xf32>
    %66 = arith.addf %61, %65 : vector<8x128xf32>
    %67 = math.tanh %66 : vector<8x128xf32>
    %c0_i32_47 = arith.constant 0 : i32
    %68 = arith.cmpi sge, %56, %c0_i32_47 : i32
    %c8_i32_48 = arith.constant 8 : i32
    %69 = arith.cmpi slt, %56, %c8_i32_48 : i32
    %70 = arith.andi %68, %69 : i1
    %71 = arith.select %70, %67, %39 : vector<8x128xf32>
    %c1_i32_49 = arith.constant 1 : i32
    %72 = arith.subi %c1_i32_38, %c1_i32_49 : i32
    %73 = arith.truncf %39 : vector<8x128xf32> to vector<8x128xbf16>
    %c0_50 = arith.constant 0 : index
    %c0_51 = arith.constant 0 : index
    %c0_52 = arith.constant 0 : index
    %74 = vector.load %arg3[%c0_50, %c0_51, %c0_52] : memref<1x128x128xbf16, #tpu.memory_space<vmem>>, vector<1x128x128xbf16>
    %75 = vector.shape_cast %74 : vector<1x128x128xbf16> to vector<128x128xbf16>
    %cst_53 = arith.constant dense<0.000000e+00> : vector<8x128xf32>
    %76 = tpu.matmul %73, %75, %cst_53 {dimension_numbers = #tpu.dot_dimension_numbers<[1], [0], [0], [1], [0, 0, 1, 1], [], []>} : vector<8x128xbf16>, vector<128x128xbf16>, vector<8x128xf32> -> vector<8x128xf32>
    %77 = arith.addf %21, %76 : vector<8x128xf32>
    %78 = arith.truncf %55 : vector<8x128xf32> to vector<8x128xbf16>
    %c1_54 = arith.constant 1 : index
    %c0_55 = arith.constant 0 : index
    %c0_56 = arith.constant 0 : index
    %79 = vector.load %arg4[%c1_54, %c0_55, %c0_56] : memref<2x128x128xbf16, #tpu.memory_space<vmem>>, vector<1x128x128xbf16>
    %80 = vector.shape_cast %79 : vector<1x128x128xbf16> to vector<128x128xbf16>
    %cst_57 = arith.constant dense<0.000000e+00> : vector<8x128xf32>
    %81 = tpu.matmul %78, %80, %cst_57 {dimension_numbers = #tpu.dot_dimension_numbers<[1], [0], [0], [1], [0, 0, 1, 1], [], []>} : vector<8x128xbf16>, vector<128x128xbf16>, vector<8x128xf32> -> vector<8x128xf32>
    %82 = arith.addf %77, %81 : vector<8x128xf32>
    %83 = math.tanh %82 : vector<8x128xf32>
    %c0_i32_58 = arith.constant 0 : i32
    %84 = arith.cmpi sge, %72, %c0_i32_58 : i32
    %c8_i32_59 = arith.constant 8 : i32
    %85 = arith.cmpi slt, %72, %c8_i32_59 : i32
    %86 = arith.andi %84, %85 : i1
    %87 = arith.select %86, %83, %55 : vector<8x128xf32>
    %c2_i32 = arith.constant 2 : i32
    %c0_i32_60 = arith.constant 0 : i32
    %88 = arith.subi %c2_i32, %c0_i32_60 : i32
    %c7_i32_61 = arith.constant 7 : i32
    %89 = arith.minsi %c2_i32, %c7_i32_61 : i32
    %90 = arith.index_cast %89 : i32 to index
    %c0_62 = arith.constant 0 : index
    %c0_63 = arith.constant 0 : index
    %91 = vector.load %arg10[%90, %c0_62, %c0_63] : memref<8x8x128xbf16, #tpu.memory_space<vmem>>, vector<1x8x128xbf16>
    %92 = vector.shape_cast %91 : vector<1x8x128xbf16> to vector<8x128xbf16>
    %93 = arith.extf %92 : vector<8x128xbf16> to vector<8x128xf32>
    %94 = arith.truncf %71 : vector<8x128xf32> to vector<8x128xbf16>
    %c0_64 = arith.constant 0 : index
    %c0_65 = arith.constant 0 : index
    %c0_66 = arith.constant 0 : index
    %95 = vector.load %arg4[%c0_64, %c0_65, %c0_66] : memref<2x128x128xbf16, #tpu.memory_space<vmem>>, vector<1x128x128xbf16>
    %96 = vector.shape_cast %95 : vector<1x128x128xbf16> to vector<128x128xbf16>
    %cst_67 = arith.constant dense<0.000000e+00> : vector<8x128xf32>
    %97 = tpu.matmul %94, %96, %cst_67 {dimension_numbers = #tpu.dot_dimension_numbers<[1], [0], [0], [1], [0, 0, 1, 1], [], []>} : vector<8x128xbf16>, vector<128x128xbf16>, vector<8x128xf32> -> vector<8x128xf32>
    %98 = arith.addf %93, %97 : vector<8x128xf32>
    %99 = math.tanh %98 : vector<8x128xf32>
    %c0_i32_68 = arith.constant 0 : i32
    %100 = arith.cmpi sge, %88, %c0_i32_68 : i32
    %c8_i32_69 = arith.constant 8 : i32
    %101 = arith.cmpi slt, %88, %c8_i32_69 : i32
    %102 = arith.andi %100, %101 : i1
    %103 = arith.select %102, %99, %71 : vector<8x128xf32>
    %c1_i32_70 = arith.constant 1 : i32
    %104 = arith.subi %c2_i32, %c1_i32_70 : i32
    %105 = arith.truncf %71 : vector<8x128xf32> to vector<8x128xbf16>
    %c0_71 = arith.constant 0 : index
    %c0_72 = arith.constant 0 : index
    %c0_73 = arith.constant 0 : index
    %106 = vector.load %arg3[%c0_71, %c0_72, %c0_73] : memref<1x128x128xbf16, #tpu.memory_space<vmem>>, vector<1x128x128xbf16>
    %107 = vector.shape_cast %106 : vector<1x128x128xbf16> to vector<128x128xbf16>
    %cst_74 = arith.constant dense<0.000000e+00> : vector<8x128xf32>
    %108 = tpu.matmul %105, %107, %cst_74 {dimension_numbers = #tpu.dot_dimension_numbers<[1], [0], [0], [1], [0, 0, 1, 1], [], []>} : vector<8x128xbf16>, vector<128x128xbf16>, vector<8x128xf32> -> vector<8x128xf32>
    %109 = arith.addf %21, %108 : vector<8x128xf32>
    %110 = arith.truncf %87 : vector<8x128xf32> to vector<8x128xbf16>
    %c1_75 = arith.constant 1 : index
    %c0_76 = arith.constant 0 : index
    %c0_77 = arith.constant 0 : index
    %111 = vector.load %arg4[%c1_75, %c0_76, %c0_77] : memref<2x128x128xbf16, #tpu.memory_space<vmem>>, vector<1x128x128xbf16>
    %112 = vector.shape_cast %111 : vector<1x128x128xbf16> to vector<128x128xbf16>
    %cst_78 = arith.constant dense<0.000000e+00> : vector<8x128xf32>
    %113 = tpu.matmul %110, %112, %cst_78 {dimension_numbers = #tpu.dot_dimension_numbers<[1], [0], [0], [1], [0, 0, 1, 1], [], []>} : vector<8x128xbf16>, vector<128x128xbf16>, vector<8x128xf32> -> vector<8x128xf32>
    %114 = arith.addf %109, %113 : vector<8x128xf32>
    %115 = math.tanh %114 : vector<8x128xf32>
    %c0_i32_79 = arith.constant 0 : i32
    %116 = arith.cmpi sge, %104, %c0_i32_79 : i32
    %c8_i32_80 = arith.constant 8 : i32
    %117 = arith.cmpi slt, %104, %c8_i32_80 : i32
    %118 = arith.andi %116, %117 : i1
    %119 = arith.select %118, %115, %87 : vector<8x128xf32>
    %c3_i32 = arith.constant 3 : i32
    %c0_i32_81 = arith.constant 0 : i32
    %120 = arith.subi %c3_i32, %c0_i32_81 : i32
    %c7_i32_82 = arith.constant 7 : i32
    %121 = arith.minsi %c3_i32, %c7_i32_82 : i32
    %122 = arith.index_cast %121 : i32 to index
    %c0_83 = arith.constant 0 : index
    %c0_84 = arith.constant 0 : index
    %123 = vector.load %arg10[%122, %c0_83, %c0_84] : memref<8x8x128xbf16, #tpu.memory_space<vmem>>, vector<1x8x128xbf16>
    %124 = vector.shape_cast %123 : vector<1x8x128xbf16> to vector<8x128xbf16>
    %125 = arith.extf %124 : vector<8x128xbf16> to vector<8x128xf32>
    %126 = arith.truncf %103 : vector<8x128xf32> to vector<8x128xbf16>
    %c0_85 = arith.constant 0 : index
    %c0_86 = arith.constant 0 : index
    %c0_87 = arith.constant 0 : index
    %127 = vector.load %arg4[%c0_85, %c0_86, %c0_87] : memref<2x128x128xbf16, #tpu.memory_space<vmem>>, vector<1x128x128xbf16>
    %128 = vector.shape_cast %127 : vector<1x128x128xbf16> to vector<128x128xbf16>
    %cst_88 = arith.constant dense<0.000000e+00> : vector<8x128xf32>
    %129 = tpu.matmul %126, %128, %cst_88 {dimension_numbers = #tpu.dot_dimension_numbers<[1], [0], [0], [1], [0, 0, 1, 1], [], []>} : vector<8x128xbf16>, vector<128x128xbf16>, vector<8x128xf32> -> vector<8x128xf32>
    %130 = arith.addf %125, %129 : vector<8x128xf32>
    %131 = math.tanh %130 : vector<8x128xf32>
    %c0_i32_89 = arith.constant 0 : i32
    %132 = arith.cmpi sge, %120, %c0_i32_89 : i32
    %c8_i32_90 = arith.constant 8 : i32
    %133 = arith.cmpi slt, %120, %c8_i32_90 : i32
    %134 = arith.andi %132, %133 : i1
    %135 = arith.select %134, %131, %103 : vector<8x128xf32>
    %c1_i32_91 = arith.constant 1 : i32
    %136 = arith.subi %c3_i32, %c1_i32_91 : i32
    %137 = arith.truncf %103 : vector<8x128xf32> to vector<8x128xbf16>
    %c0_92 = arith.constant 0 : index
    %c0_93 = arith.constant 0 : index
    %c0_94 = arith.constant 0 : index
    %138 = vector.load %arg3[%c0_92, %c0_93, %c0_94] : memref<1x128x128xbf16, #tpu.memory_space<vmem>>, vector<1x128x128xbf16>
    %139 = vector.shape_cast %138 : vector<1x128x128xbf16> to vector<128x128xbf16>
    %cst_95 = arith.constant dense<0.000000e+00> : vector<8x128xf32>
    %140 = tpu.matmul %137, %139, %cst_95 {dimension_numbers = #tpu.dot_dimension_numbers<[1], [0], [0], [1], [0, 0, 1, 1], [], []>} : vector<8x128xbf16>, vector<128x128xbf16>, vector<8x128xf32> -> vector<8x128xf32>
    %141 = arith.addf %21, %140 : vector<8x128xf32>
    %142 = arith.truncf %119 : vector<8x128xf32> to vector<8x128xbf16>
    %c1_96 = arith.constant 1 : index
    %c0_97 = arith.constant 0 : index
    %c0_98 = arith.constant 0 : index
    %143 = vector.load %arg4[%c1_96, %c0_97, %c0_98] : memref<2x128x128xbf16, #tpu.memory_space<vmem>>, vector<1x128x128xbf16>
    %144 = vector.shape_cast %143 : vector<1x128x128xbf16> to vector<128x128xbf16>
    %cst_99 = arith.constant dense<0.000000e+00> : vector<8x128xf32>
    %145 = tpu.matmul %142, %144, %cst_99 {dimension_numbers = #tpu.dot_dimension_numbers<[1], [0], [0], [1], [0, 0, 1, 1], [], []>} : vector<8x128xbf16>, vector<128x128xbf16>, vector<8x128xf32> -> vector<8x128xf32>
    %146 = arith.addf %141, %145 : vector<8x128xf32>
    %147 = math.tanh %146 : vector<8x128xf32>
    %c0_i32_100 = arith.constant 0 : i32
    %148 = arith.cmpi sge, %136, %c0_i32_100 : i32
    %c8_i32_101 = arith.constant 8 : i32
    %149 = arith.cmpi slt, %136, %c8_i32_101 : i32
    %150 = arith.andi %148, %149 : i1
    %151 = arith.select %150, %147, %119 : vector<8x128xf32>
    %c4_i32 = arith.constant 4 : i32
    %c0_i32_102 = arith.constant 0 : i32
    %152 = arith.subi %c4_i32, %c0_i32_102 : i32
    %c7_i32_103 = arith.constant 7 : i32
    %153 = arith.minsi %c4_i32, %c7_i32_103 : i32
    %154 = arith.index_cast %153 : i32 to index
    %c0_104 = arith.constant 0 : index
    %c0_105 = arith.constant 0 : index
    %155 = vector.load %arg10[%154, %c0_104, %c0_105] : memref<8x8x128xbf16, #tpu.memory_space<vmem>>, vector<1x8x128xbf16>
    %156 = vector.shape_cast %155 : vector<1x8x128xbf16> to vector<8x128xbf16>
    %157 = arith.extf %156 : vector<8x128xbf16> to vector<8x128xf32>
    %158 = arith.truncf %135 : vector<8x128xf32> to vector<8x128xbf16>
    %c0_106 = arith.constant 0 : index
    %c0_107 = arith.constant 0 : index
    %c0_108 = arith.constant 0 : index
    %159 = vector.load %arg4[%c0_106, %c0_107, %c0_108] : memref<2x128x128xbf16, #tpu.memory_space<vmem>>, vector<1x128x128xbf16>
    %160 = vector.shape_cast %159 : vector<1x128x128xbf16> to vector<128x128xbf16>
    %cst_109 = arith.constant dense<0.000000e+00> : vector<8x128xf32>
    %161 = tpu.matmul %158, %160, %cst_109 {dimension_numbers = #tpu.dot_dimension_numbers<[1], [0], [0], [1], [0, 0, 1, 1], [], []>} : vector<8x128xbf16>, vector<128x128xbf16>, vector<8x128xf32> -> vector<8x128xf32>
    %162 = arith.addf %157, %161 : vector<8x128xf32>
    %163 = math.tanh %162 : vector<8x128xf32>
    %c0_i32_110 = arith.constant 0 : i32
    %164 = arith.cmpi sge, %152, %c0_i32_110 : i32
    %c8_i32_111 = arith.constant 8 : i32
    %165 = arith.cmpi slt, %152, %c8_i32_111 : i32
    %166 = arith.andi %164, %165 : i1
    %167 = arith.select %166, %163, %135 : vector<8x128xf32>
    %c1_i32_112 = arith.constant 1 : i32
    %168 = arith.subi %c4_i32, %c1_i32_112 : i32
    %169 = arith.truncf %135 : vector<8x128xf32> to vector<8x128xbf16>
    %c0_113 = arith.constant 0 : index
    %c0_114 = arith.constant 0 : index
    %c0_115 = arith.constant 0 : index
    %170 = vector.load %arg3[%c0_113, %c0_114, %c0_115] : memref<1x128x128xbf16, #tpu.memory_space<vmem>>, vector<1x128x128xbf16>
    %171 = vector.shape_cast %170 : vector<1x128x128xbf16> to vector<128x128xbf16>
    %cst_116 = arith.constant dense<0.000000e+00> : vector<8x128xf32>
    %172 = tpu.matmul %169, %171, %cst_116 {dimension_numbers = #tpu.dot_dimension_numbers<[1], [0], [0], [1], [0, 0, 1, 1], [], []>} : vector<8x128xbf16>, vector<128x128xbf16>, vector<8x128xf32> -> vector<8x128xf32>
    %173 = arith.addf %21, %172 : vector<8x128xf32>
    %174 = arith.truncf %151 : vector<8x128xf32> to vector<8x128xbf16>
    %c1_117 = arith.constant 1 : index
    %c0_118 = arith.constant 0 : index
    %c0_119 = arith.constant 0 : index
    %175 = vector.load %arg4[%c1_117, %c0_118, %c0_119] : memref<2x128x128xbf16, #tpu.memory_space<vmem>>, vector<1x128x128xbf16>
    %176 = vector.shape_cast %175 : vector<1x128x128xbf16> to vector<128x128xbf16>
    %cst_120 = arith.constant dense<0.000000e+00> : vector<8x128xf32>
    %177 = tpu.matmul %174, %176, %cst_120 {dimension_numbers = #tpu.dot_dimension_numbers<[1], [0], [0], [1], [0, 0, 1, 1], [], []>} : vector<8x128xbf16>, vector<128x128xbf16>, vector<8x128xf32> -> vector<8x128xf32>
    %178 = arith.addf %173, %177 : vector<8x128xf32>
    %179 = math.tanh %178 : vector<8x128xf32>
    %c0_i32_121 = arith.constant 0 : i32
    %180 = arith.cmpi sge, %168, %c0_i32_121 : i32
    %c8_i32_122 = arith.constant 8 : i32
    %181 = arith.cmpi slt, %168, %c8_i32_122 : i32
    %182 = arith.andi %180, %181 : i1
    %183 = arith.select %182, %179, %151 : vector<8x128xf32>
    %c5_i32 = arith.constant 5 : i32
    %c0_i32_123 = arith.constant 0 : i32
    %184 = arith.subi %c5_i32, %c0_i32_123 : i32
    %c7_i32_124 = arith.constant 7 : i32
    %185 = arith.minsi %c5_i32, %c7_i32_124 : i32
    %186 = arith.index_cast %185 : i32 to index
    %c0_125 = arith.constant 0 : index
    %c0_126 = arith.constant 0 : index
    %187 = vector.load %arg10[%186, %c0_125, %c0_126] : memref<8x8x128xbf16, #tpu.memory_space<vmem>>, vector<1x8x128xbf16>
    %188 = vector.shape_cast %187 : vector<1x8x128xbf16> to vector<8x128xbf16>
    %189 = arith.extf %188 : vector<8x128xbf16> to vector<8x128xf32>
    %190 = arith.truncf %167 : vector<8x128xf32> to vector<8x128xbf16>
    %c0_127 = arith.constant 0 : index
    %c0_128 = arith.constant 0 : index
    %c0_129 = arith.constant 0 : index
    %191 = vector.load %arg4[%c0_127, %c0_128, %c0_129] : memref<2x128x128xbf16, #tpu.memory_space<vmem>>, vector<1x128x128xbf16>
    %192 = vector.shape_cast %191 : vector<1x128x128xbf16> to vector<128x128xbf16>
    %cst_130 = arith.constant dense<0.000000e+00> : vector<8x128xf32>
    %193 = tpu.matmul %190, %192, %cst_130 {dimension_numbers = #tpu.dot_dimension_numbers<[1], [0], [0], [1], [0, 0, 1, 1], [], []>} : vector<8x128xbf16>, vector<128x128xbf16>, vector<8x128xf32> -> vector<8x128xf32>
    %194 = arith.addf %189, %193 : vector<8x128xf32>
    %195 = math.tanh %194 : vector<8x128xf32>
    %c0_i32_131 = arith.constant 0 : i32
    %196 = arith.cmpi sge, %184, %c0_i32_131 : i32
    %c8_i32_132 = arith.constant 8 : i32
    %197 = arith.cmpi slt, %184, %c8_i32_132 : i32
    %198 = arith.andi %196, %197 : i1
    %199 = arith.select %198, %195, %167 : vector<8x128xf32>
    %c1_i32_133 = arith.constant 1 : i32
    %200 = arith.subi %c5_i32, %c1_i32_133 : i32
    %201 = arith.truncf %167 : vector<8x128xf32> to vector<8x128xbf16>
    %c0_134 = arith.constant 0 : index
    %c0_135 = arith.constant 0 : index
    %c0_136 = arith.constant 0 : index
    %202 = vector.load %arg3[%c0_134, %c0_135, %c0_136] : memref<1x128x128xbf16, #tpu.memory_space<vmem>>, vector<1x128x128xbf16>
    %203 = vector.shape_cast %202 : vector<1x128x128xbf16> to vector<128x128xbf16>
    %cst_137 = arith.constant dense<0.000000e+00> : vector<8x128xf32>
    %204 = tpu.matmul %201, %203, %cst_137 {dimension_numbers = #tpu.dot_dimension_numbers<[1], [0], [0], [1], [0, 0, 1, 1], [], []>} : vector<8x128xbf16>, vector<128x128xbf16>, vector<8x128xf32> -> vector<8x128xf32>
    %205 = arith.addf %21, %204 : vector<8x128xf32>
    %206 = arith.truncf %183 : vector<8x128xf32> to vector<8x128xbf16>
    %c1_138 = arith.constant 1 : index
    %c0_139 = arith.constant 0 : index
    %c0_140 = arith.constant 0 : index
    %207 = vector.load %arg4[%c1_138, %c0_139, %c0_140] : memref<2x128x128xbf16, #tpu.memory_space<vmem>>, vector<1x128x128xbf16>
    %208 = vector.shape_cast %207 : vector<1x128x128xbf16> to vector<128x128xbf16>
    %cst_141 = arith.constant dense<0.000000e+00> : vector<8x128xf32>
    %209 = tpu.matmul %206, %208, %cst_141 {dimension_numbers = #tpu.dot_dimension_numbers<[1], [0], [0], [1], [0, 0, 1, 1], [], []>} : vector<8x128xbf16>, vector<128x128xbf16>, vector<8x128xf32> -> vector<8x128xf32>
    %210 = arith.addf %205, %209 : vector<8x128xf32>
    %211 = math.tanh %210 : vector<8x128xf32>
    %c0_i32_142 = arith.constant 0 : i32
    %212 = arith.cmpi sge, %200, %c0_i32_142 : i32
    %c8_i32_143 = arith.constant 8 : i32
    %213 = arith.cmpi slt, %200, %c8_i32_143 : i32
    %214 = arith.andi %212, %213 : i1
    %215 = arith.select %214, %211, %183 : vector<8x128xf32>
    %c6_i32 = arith.constant 6 : i32
    %c0_i32_144 = arith.constant 0 : i32
    %216 = arith.subi %c6_i32, %c0_i32_144 : i32
    %c7_i32_145 = arith.constant 7 : i32
    %217 = arith.minsi %c6_i32, %c7_i32_145 : i32
    %218 = arith.index_cast %217 : i32 to index
    %c0_146 = arith.constant 0 : index
    %c0_147 = arith.constant 0 : index
    %219 = vector.load %arg10[%218, %c0_146, %c0_147] : memref<8x8x128xbf16, #tpu.memory_space<vmem>>, vector<1x8x128xbf16>
    %220 = vector.shape_cast %219 : vector<1x8x128xbf16> to vector<8x128xbf16>
    %221 = arith.extf %220 : vector<8x128xbf16> to vector<8x128xf32>
    %222 = arith.truncf %199 : vector<8x128xf32> to vector<8x128xbf16>
    %c0_148 = arith.constant 0 : index
    %c0_149 = arith.constant 0 : index
    %c0_150 = arith.constant 0 : index
    %223 = vector.load %arg4[%c0_148, %c0_149, %c0_150] : memref<2x128x128xbf16, #tpu.memory_space<vmem>>, vector<1x128x128xbf16>
    %224 = vector.shape_cast %223 : vector<1x128x128xbf16> to vector<128x128xbf16>
    %cst_151 = arith.constant dense<0.000000e+00> : vector<8x128xf32>
    %225 = tpu.matmul %222, %224, %cst_151 {dimension_numbers = #tpu.dot_dimension_numbers<[1], [0], [0], [1], [0, 0, 1, 1], [], []>} : vector<8x128xbf16>, vector<128x128xbf16>, vector<8x128xf32> -> vector<8x128xf32>
    %226 = arith.addf %221, %225 : vector<8x128xf32>
    %227 = math.tanh %226 : vector<8x128xf32>
    %c0_i32_152 = arith.constant 0 : i32
    %228 = arith.cmpi sge, %216, %c0_i32_152 : i32
    %c8_i32_153 = arith.constant 8 : i32
    %229 = arith.cmpi slt, %216, %c8_i32_153 : i32
    %230 = arith.andi %228, %229 : i1
    %231 = arith.select %230, %227, %199 : vector<8x128xf32>
    %c1_i32_154 = arith.constant 1 : i32
    %232 = arith.subi %c6_i32, %c1_i32_154 : i32
    %233 = arith.truncf %199 : vector<8x128xf32> to vector<8x128xbf16>
    %c0_155 = arith.constant 0 : index
    %c0_156 = arith.constant 0 : index
    %c0_157 = arith.constant 0 : index
    %234 = vector.load %arg3[%c0_155, %c0_156, %c0_157] : memref<1x128x128xbf16, #tpu.memory_space<vmem>>, vector<1x128x128xbf16>
    %235 = vector.shape_cast %234 : vector<1x128x128xbf16> to vector<128x128xbf16>
    %cst_158 = arith.constant dense<0.000000e+00> : vector<8x128xf32>
    %236 = tpu.matmul %233, %235, %cst_158 {dimension_numbers = #tpu.dot_dimension_numbers<[1], [0], [0], [1], [0, 0, 1, 1], [], []>} : vector<8x128xbf16>, vector<128x128xbf16>, vector<8x128xf32> -> vector<8x128xf32>
    %237 = arith.addf %21, %236 : vector<8x128xf32>
    %238 = arith.truncf %215 : vector<8x128xf32> to vector<8x128xbf16>
    %c1_159 = arith.constant 1 : index
    %c0_160 = arith.constant 0 : index
    %c0_161 = arith.constant 0 : index
    %239 = vector.load %arg4[%c1_159, %c0_160, %c0_161] : memref<2x128x128xbf16, #tpu.memory_space<vmem>>, vector<1x128x128xbf16>
    %240 = vector.shape_cast %239 : vector<1x128x128xbf16> to vector<128x128xbf16>
    %cst_162 = arith.constant dense<0.000000e+00> : vector<8x128xf32>
    %241 = tpu.matmul %238, %240, %cst_162 {dimension_numbers = #tpu.dot_dimension_numbers<[1], [0], [0], [1], [0, 0, 1, 1], [], []>} : vector<8x128xbf16>, vector<128x128xbf16>, vector<8x128xf32> -> vector<8x128xf32>
    %242 = arith.addf %237, %241 : vector<8x128xf32>
    %243 = math.tanh %242 : vector<8x128xf32>
    %c0_i32_163 = arith.constant 0 : i32
    %244 = arith.cmpi sge, %232, %c0_i32_163 : i32
    %c8_i32_164 = arith.constant 8 : i32
    %245 = arith.cmpi slt, %232, %c8_i32_164 : i32
    %246 = arith.andi %244, %245 : i1
    %247 = arith.select %246, %243, %215 : vector<8x128xf32>
    %c7_i32_165 = arith.constant 7 : i32
    %c0_i32_166 = arith.constant 0 : i32
    %248 = arith.subi %c7_i32_165, %c0_i32_166 : i32
    %c7_i32_167 = arith.constant 7 : i32
    %249 = arith.minsi %c7_i32_165, %c7_i32_167 : i32
    %250 = arith.index_cast %249 : i32 to index
    %c0_168 = arith.constant 0 : index
    %c0_169 = arith.constant 0 : index
    %251 = vector.load %arg10[%250, %c0_168, %c0_169] : memref<8x8x128xbf16, #tpu.memory_space<vmem>>, vector<1x8x128xbf16>
    %252 = vector.shape_cast %251 : vector<1x8x128xbf16> to vector<8x128xbf16>
    %253 = arith.extf %252 : vector<8x128xbf16> to vector<8x128xf32>
    %254 = arith.truncf %231 : vector<8x128xf32> to vector<8x128xbf16>
    %c0_170 = arith.constant 0 : index
    %c0_171 = arith.constant 0 : index
    %c0_172 = arith.constant 0 : index
    %255 = vector.load %arg4[%c0_170, %c0_171, %c0_172] : memref<2x128x128xbf16, #tpu.memory_space<vmem>>, vector<1x128x128xbf16>
    %256 = vector.shape_cast %255 : vector<1x128x128xbf16> to vector<128x128xbf16>
    %cst_173 = arith.constant dense<0.000000e+00> : vector<8x128xf32>
    %257 = tpu.matmul %254, %256, %cst_173 {dimension_numbers = #tpu.dot_dimension_numbers<[1], [0], [0], [1], [0, 0, 1, 1], [], []>} : vector<8x128xbf16>, vector<128x128xbf16>, vector<8x128xf32> -> vector<8x128xf32>
    %258 = arith.addf %253, %257 : vector<8x128xf32>
    %259 = math.tanh %258 : vector<8x128xf32>
    %c0_i32_174 = arith.constant 0 : i32
    %260 = arith.cmpi sge, %248, %c0_i32_174 : i32
    %c8_i32_175 = arith.constant 8 : i32
    %261 = arith.cmpi slt, %248, %c8_i32_175 : i32
    %262 = arith.andi %260, %261 : i1
    %263 = arith.select %262, %259, %231 : vector<8x128xf32>
    %c1_i32_176 = arith.constant 1 : i32
    %264 = arith.subi %c7_i32_165, %c1_i32_176 : i32
    %265 = arith.truncf %231 : vector<8x128xf32> to vector<8x128xbf16>
    %c0_177 = arith.constant 0 : index
    %c0_178 = arith.constant 0 : index
    %c0_179 = arith.constant 0 : index
    %266 = vector.load %arg3[%c0_177, %c0_178, %c0_179] : memref<1x128x128xbf16, #tpu.memory_space<vmem>>, vector<1x128x128xbf16>
    %267 = vector.shape_cast %266 : vector<1x128x128xbf16> to vector<128x128xbf16>
    %cst_180 = arith.constant dense<0.000000e+00> : vector<8x128xf32>
    %268 = tpu.matmul %265, %267, %cst_180 {dimension_numbers = #tpu.dot_dimension_numbers<[1], [0], [0], [1], [0, 0, 1, 1], [], []>} : vector<8x128xbf16>, vector<128x128xbf16>, vector<8x128xf32> -> vector<8x128xf32>
    %269 = arith.addf %21, %268 : vector<8x128xf32>
    %270 = arith.truncf %247 : vector<8x128xf32> to vector<8x128xbf16>
    %c1_181 = arith.constant 1 : index
    %c0_182 = arith.constant 0 : index
    %c0_183 = arith.constant 0 : index
    %271 = vector.load %arg4[%c1_181, %c0_182, %c0_183] : memref<2x128x128xbf16, #tpu.memory_space<vmem>>, vector<1x128x128xbf16>
    %272 = vector.shape_cast %271 : vector<1x128x128xbf16> to vector<128x128xbf16>
    %cst_184 = arith.constant dense<0.000000e+00> : vector<8x128xf32>
    %273 = tpu.matmul %270, %272, %cst_184 {dimension_numbers = #tpu.dot_dimension_numbers<[1], [0], [0], [1], [0, 0, 1, 1], [], []>} : vector<8x128xbf16>, vector<128x128xbf16>, vector<8x128xf32> -> vector<8x128xf32>
    %274 = arith.addf %269, %273 : vector<8x128xf32>
    %275 = math.tanh %274 : vector<8x128xf32>
    %c0_i32_185 = arith.constant 0 : i32
    %276 = arith.cmpi sge, %264, %c0_i32_185 : i32
    %c8_i32_186 = arith.constant 8 : i32
    %277 = arith.cmpi slt, %264, %c8_i32_186 : i32
    %278 = arith.andi %276, %277 : i1
    %279 = arith.select %278, %275, %247 : vector<8x128xf32>
    %c8_i32_187 = arith.constant 8 : i32
    %c0_i32_188 = arith.constant 0 : i32
    %280 = arith.subi %c8_i32_187, %c0_i32_188 : i32
    %c7_i32_189 = arith.constant 7 : i32
    %281 = arith.minsi %c8_i32_187, %c7_i32_189 : i32
    %282 = arith.index_cast %281 : i32 to index
    %c0_190 = arith.constant 0 : index
    %c0_191 = arith.constant 0 : index
    %283 = vector.load %arg10[%282, %c0_190, %c0_191] : memref<8x8x128xbf16, #tpu.memory_space<vmem>>, vector<1x8x128xbf16>
    %284 = vector.shape_cast %283 : vector<1x8x128xbf16> to vector<8x128xbf16>
    %285 = arith.extf %284 : vector<8x128xbf16> to vector<8x128xf32>
    %286 = arith.truncf %263 : vector<8x128xf32> to vector<8x128xbf16>
    %c0_192 = arith.constant 0 : index
    %c0_193 = arith.constant 0 : index
    %c0_194 = arith.constant 0 : index
    %287 = vector.load %arg4[%c0_192, %c0_193, %c0_194] : memref<2x128x128xbf16, #tpu.memory_space<vmem>>, vector<1x128x128xbf16>
    %288 = vector.shape_cast %287 : vector<1x128x128xbf16> to vector<128x128xbf16>
    %cst_195 = arith.constant dense<0.000000e+00> : vector<8x128xf32>
    %289 = tpu.matmul %286, %288, %cst_195 {dimension_numbers = #tpu.dot_dimension_numbers<[1], [0], [0], [1], [0, 0, 1, 1], [], []>} : vector<8x128xbf16>, vector<128x128xbf16>, vector<8x128xf32> -> vector<8x128xf32>
    %290 = arith.addf %285, %289 : vector<8x128xf32>
    %291 = math.tanh %290 : vector<8x128xf32>
    %c0_i32_196 = arith.constant 0 : i32
    %292 = arith.cmpi sge, %280, %c0_i32_196 : i32
    %c8_i32_197 = arith.constant 8 : i32
    %293 = arith.cmpi slt, %280, %c8_i32_197 : i32
    %294 = arith.andi %292, %293 : i1
    %295 = arith.select %294, %291, %263 : vector<8x128xf32>
    %c1_i32_198 = arith.constant 1 : i32
    %296 = arith.subi %c8_i32_187, %c1_i32_198 : i32
    %297 = arith.truncf %263 : vector<8x128xf32> to vector<8x128xbf16>
    %c0_199 = arith.constant 0 : index
    %c0_200 = arith.constant 0 : index
    %c0_201 = arith.constant 0 : index
    %298 = vector.load %arg3[%c0_199, %c0_200, %c0_201] : memref<1x128x128xbf16, #tpu.memory_space<vmem>>, vector<1x128x128xbf16>
    %299 = vector.shape_cast %298 : vector<1x128x128xbf16> to vector<128x128xbf16>
    %cst_202 = arith.constant dense<0.000000e+00> : vector<8x128xf32>
    %300 = tpu.matmul %297, %299, %cst_202 {dimension_numbers = #tpu.dot_dimension_numbers<[1], [0], [0], [1], [0, 0, 1, 1], [], []>} : vector<8x128xbf16>, vector<128x128xbf16>, vector<8x128xf32> -> vector<8x128xf32>
    %301 = arith.addf %21, %300 : vector<8x128xf32>
    %302 = arith.truncf %279 : vector<8x128xf32> to vector<8x128xbf16>
    %c1_203 = arith.constant 1 : index
    %c0_204 = arith.constant 0 : index
    %c0_205 = arith.constant 0 : index
    %303 = vector.load %arg4[%c1_203, %c0_204, %c0_205] : memref<2x128x128xbf16, #tpu.memory_space<vmem>>, vector<1x128x128xbf16>
    %304 = vector.shape_cast %303 : vector<1x128x128xbf16> to vector<128x128xbf16>
    %cst_206 = arith.constant dense<0.000000e+00> : vector<8x128xf32>
    %305 = tpu.matmul %302, %304, %cst_206 {dimension_numbers = #tpu.dot_dimension_numbers<[1], [0], [0], [1], [0, 0, 1, 1], [], []>} : vector<8x128xbf16>, vector<128x128xbf16>, vector<8x128xf32> -> vector<8x128xf32>
    %306 = arith.addf %301, %305 : vector<8x128xf32>
    %307 = math.tanh %306 : vector<8x128xf32>
    %c0_i32_207 = arith.constant 0 : i32
    %308 = arith.cmpi sge, %296, %c0_i32_207 : i32
    %c8_i32_208 = arith.constant 8 : i32
    %309 = arith.cmpi slt, %296, %c8_i32_208 : i32
    %310 = arith.andi %308, %309 : i1
    %311 = arith.select %310, %307, %279 : vector<8x128xf32>
    %c9_i32 = arith.constant 9 : i32
    %cst_209 = arith.constant 0.000000e+00 : f32
    %312 = vector.broadcast %cst_209 : f32 to vector<8x128xf32>
    %313 = arith.maximumf %311, %312 : vector<8x128xf32>
    %314 = arith.truncf %313 : vector<8x128xf32> to vector<8x128xbf16>
    %c0_210 = arith.constant 0 : index
    %c0_211 = arith.constant 0 : index
    %315 = vector.load %arg7[%c0_210, %c0_211] : memref<128x128xbf16, #tpu.memory_space<vmem>>, vector<128x128xbf16>
    %cst_212 = arith.constant dense<0.000000e+00> : vector<8x128xf32>
    %316 = tpu.matmul %314, %315, %cst_212 {dimension_numbers = #tpu.dot_dimension_numbers<[1], [0], [0], [1], [0, 0, 1, 1], [], []>} : vector<8x128xbf16>, vector<128x128xbf16>, vector<8x128xf32> -> vector<8x128xf32>
    %c0_213 = arith.constant 0 : index
    %c0_214 = arith.constant 0 : index
    %317 = vector.load %arg8[%c0_213, %c0_214] : memref<1x128xf32, #tpu.memory_space<vmem>>, vector<1x128xf32>
    %318 = vector.broadcast %317 : vector<1x128xf32> to vector<8x128xf32>
    %319 = arith.addf %316, %318 : vector<8x128xf32>
    %c0_215 = arith.constant 0 : index
    %c0_216 = arith.constant 0 : index
    %320 = vector.load %arg9[%c0_215, %c0_216] : memref<8x128xf32, #tpu.memory_space<vmem>>, vector<8x128xf32>
    tpu.vector_store %arg9[%c0_215, %c0_216], %319 {strides = array<i32>} : memref<8x128xf32, #tpu.memory_space<vmem>>, vector<8x128xf32>,
    return
  }
  func.func @transform_0(%arg0: i32) -> (i32, i32, i32) {
    %c0_i32 = arith.constant 0 : i32
    %c0_i32_0 = arith.constant 0 : i32
    %c0_i32_1 = arith.constant 0 : i32
    return %c0_i32, %arg0, %c0_i32_0 : i32, i32, i32
  }
  func.func @transform_1(%arg0: i32) -> (i32, i32) {
    %c0_i32 = arith.constant 0 : i32
    %c0_i32_0 = arith.constant 0 : i32
    %c0_i32_1 = arith.constant 0 : i32
    return %c0_i32, %c0_i32_0 : i32, i32
  }
  func.func @transform_2(%arg0: i32) -> (i32, i32, i32) {
    %c0_i32 = arith.constant 0 : i32
    %c0_i32_0 = arith.constant 0 : i32
    %c0_i32_1 = arith.constant 0 : i32
    %c0_i32_2 = arith.constant 0 : i32
    return %c0_i32, %c0_i32_0, %c0_i32_1 : i32, i32, i32
  }
  func.func @transform_3(%arg0: i32) -> (i32, i32, i32) {
    %c0_i32 = arith.constant 0 : i32
    %c0_i32_0 = arith.constant 0 : i32
    %c0_i32_1 = arith.constant 0 : i32
    %c0_i32_2 = arith.constant 0 : i32
    return %c0_i32, %c0_i32_0, %c0_i32_1 : i32, i32, i32
  }
  func.func @transform_4(%arg0: i32) -> (i32, i32, i32) {
    %c0_i32 = arith.constant 0 : i32
    %c0_i32_0 = arith.constant 0 : i32
    %c0_i32_1 = arith.constant 0 : i32
    %c0_i32_2 = arith.constant 0 : i32
    return %c0_i32, %c0_i32_0, %c0_i32_1 : i32, i32, i32
  }
  func.func @transform_5(%arg0: i32) -> (i32, i32, i32) {
    %c0_i32 = arith.constant 0 : i32
    %c0_i32_0 = arith.constant 0 : i32
    %c0_i32_1 = arith.constant 0 : i32
    %c0_i32_2 = arith.constant 0 : i32
    return %c0_i32, %c0_i32_0, %c0_i32_1 : i32, i32, i32
  }
  func.func @transform_6(%arg0: i32) -> (i32, i32) {
    %c0_i32 = arith.constant 0 : i32
    %c0_i32_0 = arith.constant 0 : i32
    %c0_i32_1 = arith.constant 0 : i32
    return %c0_i32, %c0_i32_0 : i32, i32
  }
  func.func @transform_7(%arg0: i32) -> (i32, i32) {
    %c0_i32 = arith.constant 0 : i32
    %c0_i32_0 = arith.constant 0 : i32
    %c0_i32_1 = arith.constant 0 : i32
    return %c0_i32, %c0_i32_0 : i32, i32
  }
  func.func @transform_8(%arg0: i32) -> (i32, i32) {
    %c0_i32 = arith.constant 0 : i32
    %c0_i32_0 = arith.constant 0 : i32
    return %arg0, %c0_i32 : i32, i32
  }
}

</mosaic_0001>

<llo_original>
// kernel: tpu_custom_call.1
$region0: #{tpu_custom_call.1}
  #allocation0 [shape = 'u32[]', space=smem, size = 0x4, offset = 0x4, fixed_abs, tag = 'smem constant byte address 0x4 - core index']
  #allocation1 [shape = 'u32[144,128]{1,0:T(1,128)}', space=vmem, size = 0x12000, scoped, tag = 'internal scratch']
  #allocation2 [shape = 'bf16[8,8,128]{2,1,0:T(8,128)(2,1)}', space=vmem, size = 0x4000, scoped, tag = 'scratch operand']
  %s0 = inlined_call_operand.hbm [shape: f32[8,8,128], index: 0, kind: input, shape index: {}]
  %s1 = inlined_call_operand.hbm [shape: bf16[128,128], index: 1, kind: input, shape index: {}]
  %s2 = inlined_call_operand.hbm [shape: bf16[1,128,128], index: 2, kind: input, shape index: {}]
  %s3 = inlined_call_operand.hbm [shape: bf16[2,128,128], index: 3, kind: input, shape index: {}]
  %s4 = inlined_call_operand.vmem [shape: f32[2,1,128], index: 4, kind: input, shape index: {}]
  %s5 = inlined_call_operand.vmem [shape: f32[2,1,128], index: 5, kind: input, shape index: {}]
  %s6 = inlined_call_operand.hbm [shape: bf16[128,128], index: 6, kind: input, shape index: {}]
  %s7 = inlined_call_operand.vmem [shape: f32[1,128], index: 7, kind: input, shape index: {}]
  %s8 = inlined_call_operand.hbm [shape: f32[8,128], index: 8, kind: output, shape index: {}]
  %s9 = sld [smem:[#allocation0]]
  $region62: #{tpu_custom_call.1} parent=0
    _
  %s11 = ssub.s32 1, %s9
  %s12 = scalar_select 0, %s11, %s9
  $region1: #{tpu_custom_call.1} parent=0
    #allocation3 [shape = 'u8[32768]{0}', space=vmem, size = 0x8000, scoped, tag = 'input window, operand 0, single buffered']
    #allocation4 [shape = 's32[1]{0}', space=sflag, size = 0x4, scoped, tag = 'scoped memory for tpu_custom_call.1']
    #allocation5 [shape = 's32[1]{0}', space=sflag, size = 0x4, scoped, tag = 'scoped memory for tpu_custom_call.1']
    #allocation6 [shape = 'u8[32768]{0}', space=vmem, size = 0x8000, scoped, tag = 'input window, operand 1, single buffered']
    #allocation7 [shape = 's32[1]{0}', space=sflag, size = 0x4, scoped, tag = 'scoped memory for tpu_custom_call.1']
    #allocation8 [shape = 'u8[32768]{0}', space=vmem, size = 0x8000, scoped, tag = 'input window, operand 2, single buffered']
    #allocation9 [shape = 'u8[65536]{0}', space=vmem, size = 0x10000, scoped, tag = 'input window, operand 3, single buffered']
    #allocation10 [shape = 's32[1]{0}', space=sflag, size = 0x4, scoped, tag = 'scoped memory for tpu_custom_call.1']
    #allocation11 [shape = 'u8[32768]{0}', space=vmem, size = 0x8000, scoped, tag = 'input window, operand 6, single buffered']
    #allocation12 [shape = 'u8[4096]{0}', space=vmem, size = 0x1000, scoped, tag = 'output window, operand 0, single buffered']
    %13 = vsyncpa [#allocation4], 0
    %14 = vsyncpa [#allocation7], 0
    %15 = vsyncpa [#allocation10], 0
    %16 = vsyncpa [#allocation5], 0
    // Predicated region
    $region2: #{tpu_custom_call.1} parent=1 // pred_check
      _
    $region3: #{tpu_custom_call.1} parent=1 // pred_check_branch
      %18 = sbr.rel (0) target = $region5
    $region4: #{tpu_custom_call.1} parent=1 // pred_region
      %s20 = ssub.s32 1024, 1024
      %21 = vsyncadd [#allocation4], %s20
      %s22 = sshll.u32 [#allocation3], 4
      %s23 = int_to_ptr.vmem [resolvable:$true] %s22
      %28 = dma.hbm_to_vmem [thread:$0]  %s0, 1024, %s23, [#allocation4], 128, 128, 8
    $region5: #{tpu_custom_call.1} parent=1 // pred_fallthru
      _
    // Predicated region
    $region6: #{tpu_custom_call.1} parent=1 // pred_check
      _
    $region7: #{tpu_custom_call.1} parent=1 // pred_check_branch
      %30 = sbr.rel (0) target = $region9
    $region8: #{tpu_custom_call.1} parent=1 // pred_region
      %s32 = ssub.s32 1024, 1024
      %33 = vsyncadd [#allocation7], %s32
      %s34 = sshll.u32 [#allocation6], 4
      %s35 = int_to_ptr.vmem [resolvable:$true] %s34
      %40 = dma.hbm_to_vmem [thread:$0]  %s1, 1024, %s35, [#allocation7], 64, 64, 4
    $region9: #{tpu_custom_call.1} parent=1 // pred_fallthru
      _
    // Predicated region
    $region10: #{tpu_custom_call.1} parent=1 // pred_check
      _
    $region11: #{tpu_custom_call.1} parent=1 // pred_check_branch
      %42 = sbr.rel (0) target = $region13
    $region12: #{tpu_custom_call.1} parent=1 // pred_region
      %s44 = ssub.s32 1024, 1024
      %45 = vsyncadd [#allocation7], %s44
      %s46 = sshll.u32 [#allocation8], 4
      %s47 = int_to_ptr.vmem [resolvable:$true] %s46
      %52 = dma.hbm_to_vmem [thread:$0]  %s2, 1024, %s47, [#allocation7], 64, 64, 4
    $region13: #{tpu_custom_call.1} parent=1 // pred_fallthru
      _
    // Predicated region
    $region14: #{tpu_custom_call.1} parent=1 // pred_check
      _
    $region15: #{tpu_custom_call.1} parent=1 // pred_check_branch
      %54 = sbr.rel (0) target = $region17
    $region16: #{tpu_custom_call.1} parent=1 // pred_region
      %s56 = ssub.s32 2048, 2048
      %57 = vsyncadd [#allocation10], %s56
      %s58 = sshll.u32 [#allocation9], 4
      %s59 = int_to_ptr.vmem [resolvable:$true] %s58
      %64 = dma.hbm_to_vmem [thread:$0]  %s3, 2048, %s59, [#allocation10], 64, 64, 4
    $region17: #{tpu_custom_call.1} parent=1 // pred_fallthru
      _
    // Predicated region
    $region18: #{tpu_custom_call.1} parent=1 // pred_check
      _
    $region19: #{tpu_custom_call.1} parent=1 // pred_check_branch
      %66 = sbr.rel (0) target = $region21
    $region20: #{tpu_custom_call.1} parent=1 // pred_region
      _
    $region21: #{tpu_custom_call.1} parent=1 // pred_fallthru
      _
    // Predicated region
    $region22: #{tpu_custom_call.1} parent=1 // pred_check
      _
    $region23: #{tpu_custom_call.1} parent=1 // pred_check_branch
      %68 = sbr.rel (0) target = $region25
    $region24: #{tpu_custom_call.1} parent=1 // pred_region
      _
    $region25: #{tpu_custom_call.1} parent=1 // pred_fallthru
      _
    // Predicated region
    $region26: #{tpu_custom_call.1} parent=1 // pred_check
      _
    $region27: #{tpu_custom_call.1} parent=1 // pred_check_branch
      %70 = sbr.rel (0) target = $region29
    $region28: #{tpu_custom_call.1} parent=1 // pred_region
      %s72 = ssub.s32 1024, 1024
      %73 = vsyncadd [#allocation10], %s72
      %s74 = sshll.u32 [#allocation11], 4
      %s75 = int_to_ptr.vmem [resolvable:$true] %s74
      %80 = dma.hbm_to_vmem [thread:$0]  %s6, 1024, %s75, [#allocation10], 64, 64, 4
    $region29: #{tpu_custom_call.1} parent=1 // pred_fallthru
      _
    // Predicated region
    $region30: #{tpu_custom_call.1} parent=1 // pred_check
      _
    $region31: #{tpu_custom_call.1} parent=1 // pred_check_branch
      %82 = sbr.rel (0) target = $region33
    $region32: #{tpu_custom_call.1} parent=1 // pred_region
      _
    $region33: #{tpu_custom_call.1} parent=1 // pred_fallthru
      _
    // Predicated region
    $region34: #{tpu_custom_call.1} parent=1 // pred_check
      _
    $region35: #{tpu_custom_call.1} parent=1 // pred_check_branch
      %84 = sbr.rel (0) target = $region37
    $region36: #{tpu_custom_call.1} parent=1 // pred_region
      %85 = dma.done [#allocation4], 1024
    $region37: #{tpu_custom_call.1} parent=1 // pred_fallthru
      _
    // Predicated region
    $region38: #{tpu_custom_call.1} parent=1 // pred_check
      _
    $region39: #{tpu_custom_call.1} parent=1 // pred_check_branch
      %87 = sbr.rel (0) target = $region41
    $region40: #{tpu_custom_call.1} parent=1 // pred_region
      %88 = dma.done [#allocation7], 1024
    $region41: #{tpu_custom_call.1} parent=1 // pred_fallthru
      _
    // Predicated region
    $region42: #{tpu_custom_call.1} parent=1 // pred_check
      _
    $region43: #{tpu_custom_call.1} parent=1 // pred_check_branch
      %90 = sbr.rel (0) target = $region45
    $region44: #{tpu_custom_call.1} parent=1 // pred_region
      %91 = dma.done [#allocation7], 1024
    $region45: #{tpu_custom_call.1} parent=1 // pred_fallthru
      _
    // Predicated region
    $region46: #{tpu_custom_call.1} parent=1 // pred_check
      _
    $region47: #{tpu_custom_call.1} parent=1 // pred_check_branch
      %93 = sbr.rel (0) target = $region49
    $region48: #{tpu_custom_call.1} parent=1 // pred_region
      %94 = dma.done [#allocation10], 2048
    $region49: #{tpu_custom_call.1} parent=1 // pred_fallthru
      _
    // Predicated region
    $region50: #{tpu_custom_call.1} parent=1 // pred_check
      _
    $region51: #{tpu_custom_call.1} parent=1 // pred_check_branch
      %96 = sbr.rel (0) target = $region53
    $region52: #{tpu_custom_call.1} parent=1 // pred_region
      %97 = dma.done [#allocation10], 1024
    $region53: #{tpu_custom_call.1} parent=1 // pred_fallthru
      _
    %v99 = vld [vmem:[%s4] sm:$0x1]
    %v100 = vld [vmem:[%s5] sm:$0x1]
    %v101 = vadd.f32 %v99, %v100
    %v102 = vld [vmem:[#allocation3] sm:$0xff]
    %v103 = vld [vmem:[#allocation3 + $0x8] sm:$0xff]
    %v104 = vld [vmem:[#allocation3 + $0x10] sm:$0xff]
    %v105 = vld [vmem:[#allocation3 + $0x18] sm:$0xff]
    %v106 = vld [vmem:[#allocation3 + $0x20] sm:$0xff]
    %v107 = vld [vmem:[#allocation3 + $0x28] sm:$0xff]
    %v108 = vld [vmem:[#allocation3 + $0x30] sm:$0xff]
    %v109 = vld [vmem:[#allocation3 + $0x38] sm:$0xff]
    %v110 = vpack.c.bf16 %v103, %v102
    %v111 = vpack.c.bf16 %v105, %v104
    %v112 = vpack.c.bf16 %v107, %v106
    %v113 = vpack.c.bf16 %v109, %v108
    %v114 = vld [vmem:[#allocation6] sm:$0xf]
    %v115 = vld [vmem:[#allocation6 + $0x4] sm:$0xf]
    %v116 = vld [vmem:[#allocation6 + $0x8] sm:$0xf]
    %v117 = vld [vmem:[#allocation6 + $0xc] sm:$0xf]
    %v118 = vld [vmem:[#allocation6 + $0x10] sm:$0xf]
    %v119 = vld [vmem:[#allocation6 + $0x14] sm:$0xf]
    %v120 = vld [vmem:[#allocation6 + $0x18] sm:$0xf]
    %v121 = vld [vmem:[#allocation6 + $0x1c] sm:$0xf]
    %v122 = vld [vmem:[#allocation6 + $0x20] sm:$0xf]
    %v123 = vld [vmem:[#allocation6 + $0x24] sm:$0xf]
    %v124 = vld [vmem:[#allocation6 + $0x28] sm:$0xf]
    %v125 = vld [vmem:[#allocation6 + $0x2c] sm:$0xf]
    %v126 = vld [vmem:[#allocation6 + $0x30] sm:$0xf]
    %v127 = vld [vmem:[#allocation6 + $0x34] sm:$0xf]
    %v128 = vld [vmem:[#allocation6 + $0x38] sm:$0xf]
    %v129 = vld [vmem:[#allocation6 + $0x3c] sm:$0xf]
    %v131 = vlaneseq
    %v132 = vshrl.u32 %v131, 7
    %v133 = vsub.s32 0, %v132
    %v134 = vrot.slane %v101, %v133
    %v152 = vunpack.c.l.b16 %v114
    %v153 = vunpack.c.l.b16 %v115
    %v154 = vunpack.c.l.b16 %v116
    %v155 = vunpack.c.l.b16 %v117
    %v156 = vunpack.c.l.b16 %v118
    %v157 = vunpack.c.l.b16 %v119
    %v158 = vunpack.c.l.b16 %v120
    %v159 = vunpack.c.l.b16 %v121
    %v160 = vunpack.c.l.b16 %v122
    %v161 = vunpack.c.l.b16 %v123
    %v162 = vunpack.c.l.b16 %v124
    %v163 = vunpack.c.l.b16 %v125
    %v164 = vunpack.c.l.b16 %v126
    %v165 = vunpack.c.l.b16 %v127
    %v166 = vunpack.c.l.b16 %v128
    %v167 = vunpack.c.l.b16 %v129
    %v168 = vpack.c.b16 %v153, %v152
    %v169 = vpack.c.b16 %v155, %v154
    %v170 = vpack.c.b16 %v157, %v156
    %v171 = vpack.c.b16 %v159, %v158
    %v172 = vpack.c.b16 %v161, %v160
    %v173 = vpack.c.b16 %v163, %v162
    %v174 = vpack.c.b16 %v165, %v164
    %v175 = vpack.c.b16 %v167, %v166
    %184 = vmatprep.subr.bf16.mxu0 0
    %185 = vmatpush1.bf16.msra.mxu0 %v168
    %186 = vmatprep.subr.bf16.mxu0 0
    %187 = vmatpush1.bf16.msra.mxu0 %v169
    %188 = vmatprep.subr.bf16.mxu0 0
    %189 = vmatpush1.bf16.msra.mxu0 %v170
    %190 = vmatprep.subr.bf16.mxu0 0
    %191 = vmatpush1.bf16.msra.mxu0 %v171
    %192 = vmatprep.subr.bf16.mxu0 0
    %193 = vmatpush1.bf16.msra.mxu0 %v172
    %194 = vmatprep.subr.bf16.mxu0 0
    %195 = vmatpush1.bf16.msra.mxu0 %v173
    %196 = vmatprep.subr.bf16.mxu0 0
    %197 = vmatpush1.bf16.msra.mxu0 %v174
    %198 = vmatprep.subr.bf16.mxu0 0
    %199 = vmatpush1.bf16.msra.mxu0 %v175
    %200 = vmatprep.subr.bf16.mxu0 0
    %201 = vmatpush1.bf16.msra.mxu0 0
    %202 = vmatprep.subr.bf16.mxu0 0
    %203 = vmatpush1.bf16.msra.mxu0 0
    %204 = vmatprep.subr.bf16.mxu0 0
    %205 = vmatpush1.bf16.msra.mxu0 0
    %206 = vmatprep.subr.bf16.mxu0 0
    %207 = vmatpush1.bf16.msra.mxu0 0
    %208 = vmatprep.subr.bf16.mxu0 0
    %209 = vmatpush1.bf16.msra.mxu0 0
    %210 = vmatprep.subr.bf16.mxu0 0
    %211 = vmatpush1.bf16.msra.mxu0 0
    %212 = vmatprep.subr.bf16.mxu0 0
    %213 = vmatpush1.bf16.msra.mxu0 0
    %214 = vmatprep.subr.bf16.mxu0 0
    %215 = vmatpush1.bf16.msra.mxu0 0
    %216 = vmatprep.mubr.bf16.mxu0 0
    %217 = vmatmul.mubr.bf16.gmra.mrb[0].mxu0 %v110
    %v218 = vpop.f32.mrb[0].mxu0
    %v219 = vadd.f32 %v134, %v218
    %v220 = vpop.f32.mrb[0].mxu0
    %v221 = vpop.f32.mrb[0].mxu0
    %v222 = vadd.f32 %v134, %v221
    %v223 = vpop.f32.mrb[0].mxu0
    %224 = vmatprep.mubr.bf16.mxu0 0
    %225 = vmatmul.mubr.bf16.gmra.mrb[0].mxu0 %v111
    %v226 = vpop.f32.mrb[0].mxu0
    %v227 = vadd.f32 %v134, %v226
    %v228 = vpop.f32.mrb[0].mxu0
    %v229 = vpop.f32.mrb[0].mxu0
    %v230 = vadd.f32 %v134, %v229
    %v231 = vpop.f32.mrb[0].mxu0
    %232 = vmatprep.mubr.bf16.mxu0 0
    %233 = vmatmul.mubr.bf16.gmra.mrb[0].mxu0 %v112
    %v234 = vpop.f32.mrb[0].mxu0
    %v235 = vadd.f32 %v134, %v234
    %v236 = vpop.f32.mrb[0].mxu0
    %v237 = vpop.f32.mrb[0].mxu0
    %v238 = vadd.f32 %v134, %v237
    %v239 = vpop.f32.mrb[0].mxu0
    %240 = vmatprep.mubr.bf16.mxu0 0
    %241 = vmatmul.mubr.bf16.gmra.mrb[0].mxu0 %v113
    %v242 = vpop.f32.mrb[0].mxu0
    %v243 = vadd.f32 %v134, %v242
    %v244 = vpop.f32.mrb[0].mxu0
    %v245 = vpop.f32.mrb[0].mxu0
    %v246 = vadd.f32 %v134, %v245
    %v247 = vpop.f32.mrb[0].mxu0
    %248 = vdwg.mxu0
    %v249 = vpack.c.bf16 %v219, %v219
    %v250 = vpack.c.bf16 %v222, %v222
    %v251 = vpack.c.bf16 %v227, %v227
    %v252 = vpack.c.bf16 %v230, %v230
    %v253 = vpack.c.bf16 %v235, %v235
    %v254 = vpack.c.bf16 %v238, %v238
    %v255 = vpack.c.bf16 %v243, %v243
    %v256 = vpack.c.bf16 %v246, %v246
    %257 = vst [vmem:[#allocation2] sm:$0xf] %v249
    %258 = vst [vmem:[#allocation2 + $0x4] sm:$0xf] %v250
    %259 = vst [vmem:[#allocation2 + $0x8] sm:$0xf] %v251
    %260 = vst [vmem:[#allocation2 + $0xc] sm:$0xf] %v252
    %261 = vst [vmem:[#allocation2 + $0x10] sm:$0xf] %v253
    %262 = vst [vmem:[#allocation2 + $0x14] sm:$0xf] %v254
    %263 = vst [vmem:[#allocation2 + $0x18] sm:$0xf] %v255
    %264 = vst [vmem:[#allocation2 + $0x1c] sm:$0xf] %v256
    %s265 = scalar_lea.vmem %s4, 1
    %v266 = vld [vmem:[%s265] sm:$0x1]
    %s267 = scalar_lea.vmem %s5, 1
    %v268 = vld [vmem:[%s267] sm:$0x1]
    %v269 = vadd.f32 %v266, %v268
    %v271 = vlaneseq
    %v272 = vshrl.u32 %v271, 7
    %v273 = vsub.s32 0, %v272
    %v274 = vrot.slane %v269, %v273
    %v276 = vld [vmem:[#allocation2] sm:$0xf]
    %v277 = vunpack.c.l.bf16 %v276
    %v278 = vld [vmem:[#allocation9] sm:$0xf]
    %v279 = vld [vmem:[#allocation9 + $0x4] sm:$0xf]
    %v280 = vld [vmem:[#allocation9 + $0x8] sm:$0xf]
    %v281 = vld [vmem:[#allocation9 + $0xc] sm:$0xf]
    %v282 = vld [vmem:[#allocation9 + $0x10] sm:$0xf]
    %v283 = vld [vmem:[#allocation9 + $0x14] sm:$0xf]
    %v284 = vld [vmem:[#allocation9 + $0x18] sm:$0xf]
    %v285 = vld [vmem:[#allocation9 + $0x1c] sm:$0xf]
    %v286 = vld [vmem:[#allocation9 + $0x20] sm:$0xf]
    %v287 = vld [vmem:[#allocation9 + $0x24] sm:$0xf]
    %v288 = vld [vmem:[#allocation9 + $0x28] sm:$0xf]
    %v289 = vld [vmem:[#allocation9 + $0x2c] sm:$0xf]
    %v290 = vld [vmem:[#allocation9 + $0x30] sm:$0xf]
    %v291 = vld [vmem:[#allocation9 + $0x34] sm:$0xf]
    %v292 = vld [vmem:[#allocation9 + $0x38] sm:$0xf]
    %v293 = vld [vmem:[#allocation9 + $0x3c] sm:$0xf]
    %v310 = vunpack.c.l.b16 %v278
    %v311 = vunpack.c.l.b16 %v279
    %v312 = vunpack.c.l.b16 %v280
    %v313 = vunpack.c.l.b16 %v281
    %v314 = vunpack.c.l.b16 %v282
    %v315 = vunpack.c.l.b16 %v283
    %v316 = vunpack.c.l.b16 %v284
    %v317 = vunpack.c.l.b16 %v285
    %v318 = vunpack.c.l.b16 %v286
    %v319 = vunpack.c.l.b16 %v287
    %v320 = vunpack.c.l.b16 %v288
    %v321 = vunpack.c.l.b16 %v289
    %v322 = vunpack.c.l.b16 %v290
    %v323 = vunpack.c.l.b16 %v291
    %v324 = vunpack.c.l.b16 %v292
    %v325 = vunpack.c.l.b16 %v293
    %v326 = vpack.c.b16 %v311, %v310
    %v327 = vpack.c.b16 %v313, %v312
    %v328 = vpack.c.b16 %v315, %v314
    %v329 = vpack.c.b16 %v317, %v316
    %v330 = vpack.c.b16 %v319, %v318
    %v331 = vpack.c.b16 %v321, %v320
    %v332 = vpack.c.b16 %v323, %v322
    %v333 = vpack.c.b16 %v325, %v324
    %342 = vmatprep.subr.bf16.mxu0 0
    %343 = vmatpush1.bf16.msra.mxu0 %v326
    %344 = vmatprep.subr.bf16.mxu0 0
    %345 = vmatpush1.bf16.msra.mxu0 %v327
    %346 = vmatprep.subr.bf16.mxu0 0
    %347 = vmatpush1.bf16.msra.mxu0 %v328
    %348 = vmatprep.subr.bf16.mxu0 0
    %349 = vmatpush1.bf16.msra.mxu0 %v329
    %350 = vmatprep.subr.bf16.mxu0 0
    %351 = vmatpush1.bf16.msra.mxu0 %v330
    %352 = vmatprep.subr.bf16.mxu0 0
    %353 = vmatpush1.bf16.msra.mxu0 %v331
    %354 = vmatprep.subr.bf16.mxu0 0
    %355 = vmatpush1.bf16.msra.mxu0 %v332
    %356 = vmatprep.subr.bf16.mxu0 0
    %357 = vmatpush1.bf16.msra.mxu0 %v333
    %358 = vmatprep.subr.bf16.mxu0 0
    %359 = vmatpush1.bf16.msra.mxu0 0
    %360 = vmatprep.subr.bf16.mxu0 0
    %361 = vmatpush1.bf16.msra.mxu0 0
    %362 = vmatprep.subr.bf16.mxu0 0
    %363 = vmatpush1.bf16.msra.mxu0 0
    %364 = vmatprep.subr.bf16.mxu0 0
    %365 = vmatpush1.bf16.msra.mxu0 0
    %366 = vmatprep.subr.bf16.mxu0 0
    %367 = vmatpush1.bf16.msra.mxu0 0
    %368 = vmatprep.subr.bf16.mxu0 0
    %369 = vmatpush1.bf16.msra.mxu0 0
    %370 = vmatprep.subr.bf16.mxu0 0
    %371 = vmatpush1.bf16.msra.mxu0 0
    %372 = vmatprep.subr.bf16.mxu0 0
    %373 = vmatpush1.bf16.msra.mxu0 0
    %374 = vmatprep.mubr.bf16.mxu0 0
    %375 = vmatmul.mubr.bf16.gmra.mrb[0].mxu0 0
    %v376 = vpop.f32.mrb[0].mxu0
    %v377 = vadd.f32 0.0, %v376
    %v378 = vpop.f32.mrb[0].mxu0
    %v379 = vpop.f32.mrb[0].mxu0
    %v380 = vpop.f32.mrb[0].mxu0
    %381 = vdwg.mxu0
    %v382 = vadd.f32 %v277, %v377
    %v383 = vtanh.pop %v382
    %s384 = scalar_lea.vmem [#allocation2], 4
    %v385 = vld [vmem:[%s384] sm:$0xf]
    %v386 = vunpack.c.l.bf16 %v385
    %v387 = vpack.c.bf16 %v383, %v383
    %388 = vmatprep.subr.bf16.mxu0 0
    %389 = vmatpush1.bf16.msra.mxu0 %v326
    %390 = vmatprep.subr.bf16.mxu0 0
    %391 = vmatpush1.bf16.msra.mxu0 %v327
    %392 = vmatprep.subr.bf16.mxu0 0
    %393 = vmatpush1.bf16.msra.mxu0 %v328
    %394 = vmatprep.subr.bf16.mxu0 0
    %395 = vmatpush1.bf16.msra.mxu0 %v329
    %396 = vmatprep.subr.bf16.mxu0 0
    %397 = vmatpush1.bf16.msra.mxu0 %v330
    %398 = vmatprep.subr.bf16.mxu0 0
    %399 = vmatpush1.bf16.msra.mxu0 %v331
    %400 = vmatprep.subr.bf16.mxu0 0
    %401 = vmatpush1.bf16.msra.mxu0 %v332
    %402 = vmatprep.subr.bf16.mxu0 0
    %403 = vmatpush1.bf16.msra.mxu0 %v333
    %404 = vmatprep.subr.bf16.mxu0 0
    %405 = vmatpush1.bf16.msra.mxu0 0
    %406 = vmatprep.subr.bf16.mxu0 0
    %407 = vmatpush1.bf16.msra.mxu0 0
    %408 = vmatprep.subr.bf16.mxu0 0
    %409 = vmatpush1.bf16.msra.mxu0 0
    %410 = vmatprep.subr.bf16.mxu0 0
    %411 = vmatpush1.bf16.msra.mxu0 0
    %412 = vmatprep.subr.bf16.mxu0 0
    %413 = vmatpush1.bf16.msra.mxu0 0
    %414 = vmatprep.subr.bf16.mxu0 0
    %415 = vmatpush1.bf16.msra.mxu0 0
    %416 = vmatprep.subr.bf16.mxu0 0
    %417 = vmatpush1.bf16.msra.mxu0 0
    %418 = vmatprep.subr.bf16.mxu0 0
    %419 = vmatpush1.bf16.msra.mxu0 0
    %420 = vmatprep.mubr.bf16.mxu0 0
    %421 = vmatmul.mubr.bf16.gmra.mrb[0].mxu0 %v387
    %v422 = vpop.f32.mrb[0].mxu0
    %v423 = vadd.f32 0.0, %v422
    %v424 = vpop.f32.mrb[0].mxu0
    %v425 = vpop.f32.mrb[0].mxu0
    %v426 = vpop.f32.mrb[0].mxu0
    %427 = vdwg.mxu0
    %v428 = vadd.f32 %v386, %v423
    %v429 = vtanh.pop %v428
    %v430 = vld [vmem:[#allocation8] sm:$0xf]
    %v431 = vld [vmem:[#allocation8 + $0x4] sm:$0xf]
    %v432 = vld [vmem:[#allocation8 + $0x8] sm:$0xf]
    %v433 = vld [vmem:[#allocation8 + $0xc] sm:$0xf]
    %v434 = vld [vmem:[#allocation8 + $0x10] sm:$0xf]
    %v435 = vld [vmem:[#allocation8 + $0x14] sm:$0xf]
    %v436 = vld [vmem:[#allocation8 + $0x18] sm:$0xf]
    %v437 = vld [vmem:[#allocation8 + $0x1c] sm:$0xf]
    %v438 = vld [vmem:[#allocation8 + $0x20] sm:$0xf]
    %v439 = vld [vmem:[#allocation8 + $0x24] sm:$0xf]
    %v440 = vld [vmem:[#allocation8 + $0x28] sm:$0xf]
    %v441 = vld [vmem:[#allocation8 + $0x2c] sm:$0xf]
    %v442 = vld [vmem:[#allocation8 + $0x30] sm:$0xf]
    %v443 = vld [vmem:[#allocation8 + $0x34] sm:$0xf]
    %v444 = vld [vmem:[#allocation8 + $0x38] sm:$0xf]
    %v445 = vld [vmem:[#allocation8 + $0x3c] sm:$0xf]
    %v462 = vunpack.c.l.b16 %v430
    %v463 = vunpack.c.l.b16 %v431
    %v464 = vunpack.c.l.b16 %v432
    %v465 = vunpack.c.l.b16 %v433
    %v466 = vunpack.c.l.b16 %v434
    %v467 = vunpack.c.l.b16 %v435
    %v468 = vunpack.c.l.b16 %v436
    %v469 = vunpack.c.l.b16 %v437
    %v470 = vunpack.c.l.b16 %v438
    %v471 = vunpack.c.l.b16 %v439
    %v472 = vunpack.c.l.b16 %v440
    %v473 = vunpack.c.l.b16 %v441
    %v474 = vunpack.c.l.b16 %v442
    %v475 = vunpack.c.l.b16 %v443
    %v476 = vunpack.c.l.b16 %v444
    %v477 = vunpack.c.l.b16 %v445
    %v478 = vpack.c.b16 %v463, %v462
    %v479 = vpack.c.b16 %v465, %v464
    %v480 = vpack.c.b16 %v467, %v466
    %v481 = vpack.c.b16 %v469, %v468
    %v482 = vpack.c.b16 %v471, %v470
    %v483 = vpack.c.b16 %v473, %v472
    %v484 = vpack.c.b16 %v475, %v474
    %v485 = vpack.c.b16 %v477, %v476
    %494 = vmatprep.subr.bf16.mxu0 0
    %495 = vmatpush1.bf16.msra.mxu0 %v478
    %496 = vmatprep.subr.bf16.mxu0 0
    %497 = vmatpush1.bf16.msra.mxu0 %v479
    %498 = vmatprep.subr.bf16.mxu0 0
    %499 = vmatpush1.bf16.msra.mxu0 %v480
    %500 = vmatprep.subr.bf16.mxu0 0
    %501 = vmatpush1.bf16.msra.mxu0 %v481
    %502 = vmatprep.subr.bf16.mxu0 0
    %503 = vmatpush1.bf16.msra.mxu0 %v482
    %504 = vmatprep.subr.bf16.mxu0 0
    %505 = vmatpush1.bf16.msra.mxu0 %v483
    %506 = vmatprep.subr.bf16.mxu0 0
    %507 = vmatpush1.bf16.msra.mxu0 %v484
    %508 = vmatprep.subr.bf16.mxu0 0
    %509 = vmatpush1.bf16.msra.mxu0 %v485
    %510 = vmatprep.subr.bf16.mxu0 0
    %511 = vmatpush1.bf16.msra.mxu0 0
    %512 = vmatprep.subr.bf16.mxu0 0
    %513 = vmatpush1.bf16.msra.mxu0 0
    %514 = vmatprep.subr.bf16.mxu0 0
    %515 = vmatpush1.bf16.msra.mxu0 0
    %516 = vmatprep.subr.bf16.mxu0 0
    %517 = vmatpush1.bf16.msra.mxu0 0
    %518 = vmatprep.subr.bf16.mxu0 0
    %519 = vmatpush1.bf16.msra.mxu0 0
    %520 = vmatprep.subr.bf16.mxu0 0
    %521 = vmatpush1.bf16.msra.mxu0 0
    %522 = vmatprep.subr.bf16.mxu0 0
    %523 = vmatpush1.bf16.msra.mxu0 0
    %524 = vmatprep.subr.bf16.mxu0 0
    %525 = vmatpush1.bf16.msra.mxu0 0
    %526 = vmatprep.mubr.bf16.mxu0 0
    %527 = vmatmul.mubr.bf16.gmra.mrb[0].mxu0 %v387
    %v528 = vpop.f32.mrb[0].mxu0
    %v529 = vadd.f32 0.0, %v528
    %v530 = vpop.f32.mrb[0].mxu0
    %v531 = vpop.f32.mrb[0].mxu0
    %v532 = vpop.f32.mrb[0].mxu0
    %533 = vdwg.mxu0
    %v534 = vadd.f32 %v274, %v529
    %s535 = scalar_lea.vmem [#allocation9], 64
    %v536 = vld [vmem:[%s535] sm:$0xf]
    %v537 = vld [vmem:[%s535 + $0x4] sm:$0xf]
    %v538 = vld [vmem:[%s535 + $0x8] sm:$0xf]
    %v539 = vld [vmem:[%s535 + $0xc] sm:$0xf]
    %v540 = vld [vmem:[%s535 + $0x10] sm:$0xf]
    %v541 = vld [vmem:[%s535 + $0x14] sm:$0xf]
    %v542 = vld [vmem:[%s535 + $0x18] sm:$0xf]
    %v543 = vld [vmem:[%s535 + $0x1c] sm:$0xf]
    %v544 = vld [vmem:[%s535 + $0x20] sm:$0xf]
    %v545 = vld [vmem:[%s535 + $0x24] sm:$0xf]
    %v546 = vld [vmem:[%s535 + $0x28] sm:$0xf]
    %v547 = vld [vmem:[%s535 + $0x2c] sm:$0xf]
    %v548 = vld [vmem:[%s535 + $0x30] sm:$0xf]
    %v549 = vld [vmem:[%s535 + $0x34] sm:$0xf]
    %v550 = vld [vmem:[%s535 + $0x38] sm:$0xf]
    %v551 = vld [vmem:[%s535 + $0x3c] sm:$0xf]
    %v568 = vunpack.c.l.b16 %v536
    %v569 = vunpack.c.l.b16 %v537
    %v570 = vunpack.c.l.b16 %v538
    %v571 = vunpack.c.l.b16 %v539
    %v572 = vunpack.c.l.b16 %v540
    %v573 = vunpack.c.l.b16 %v541
    %v574 = vunpack.c.l.b16 %v542
    %v575 = vunpack.c.l.b16 %v543
    %v576 = vunpack.c.l.b16 %v544
    %v577 = vunpack.c.l.b16 %v545
    %v578 = vunpack.c.l.b16 %v546
    %v579 = vunpack.c.l.b16 %v547
    %v580 = vunpack.c.l.b16 %v548
    %v581 = vunpack.c.l.b16 %v549
    %v582 = vunpack.c.l.b16 %v550
    %v583 = vunpack.c.l.b16 %v551
    %v584 = vpack.c.b16 %v569, %v568
    %v585 = vpack.c.b16 %v571, %v570
    %v586 = vpack.c.b16 %v573, %v572
    %v587 = vpack.c.b16 %v575, %v574
    %v588 = vpack.c.b16 %v577, %v576
    %v589 = vpack.c.b16 %v579, %v578
    %v590 = vpack.c.b16 %v581, %v580
    %v591 = vpack.c.b16 %v583, %v582
    %600 = vmatprep.subr.bf16.mxu0 0
    %601 = vmatpush1.bf16.msra.mxu0 %v584
    %602 = vmatprep.subr.bf16.mxu0 0
    %603 = vmatpush1.bf16.msra.mxu0 %v585
    %604 = vmatprep.subr.bf16.mxu0 0
    %605 = vmatpush1.bf16.msra.mxu0 %v586
    %606 = vmatprep.subr.bf16.mxu0 0
    %607 = vmatpush1.bf16.msra.mxu0 %v587
    %608 = vmatprep.subr.bf16.mxu0 0
    %609 = vmatpush1.bf16.msra.mxu0 %v588
    %610 = vmatprep.subr.bf16.mxu0 0
    %611 = vmatpush1.bf16.msra.mxu0 %v589
    %612 = vmatprep.subr.bf16.mxu0 0
    %613 = vmatpush1.bf16.msra.mxu0 %v590
    %614 = vmatprep.subr.bf16.mxu0 0
    %615 = vmatpush1.bf16.msra.mxu0 %v591
    %616 = vmatprep.subr.bf16.mxu0 0
    %617 = vmatpush1.bf16.msra.mxu0 0
    %618 = vmatprep.subr.bf16.mxu0 0
    %619 = vmatpush1.bf16.msra.mxu0 0
    %620 = vmatprep.subr.bf16.mxu0 0
    %621 = vmatpush1.bf16.msra.mxu0 0
    %622 = vmatprep.subr.bf16.mxu0 0
    %623 = vmatpush1.bf16.msra.mxu0 0
    %624 = vmatprep.subr.bf16.mxu0 0
    %625 = vmatpush1.bf16.msra.mxu0 0
    %626 = vmatprep.subr.bf16.mxu0 0
    %627 = vmatpush1.bf16.msra.mxu0 0
    %628 = vmatprep.subr.bf16.mxu0 0
    %629 = vmatpush1.bf16.msra.mxu0 0
    %630 = vmatprep.subr.bf16.mxu0 0
    %631 = vmatpush1.bf16.msra.mxu0 0
    %632 = vmatprep.mubr.bf16.mxu0 0
    %633 = vmatmul.mubr.bf16.gmra.mrb[0].mxu0 0
    %v634 = vpop.f32.mrb[0].mxu0
    %v635 = vadd.f32 0.0, %v634
    %v636 = vpop.f32.mrb[0].mxu0
    %v637 = vpop.f32.mrb[0].mxu0
    %v638 = vpop.f32.mrb[0].mxu0
    %639 = vdwg.mxu0
    %v640 = vadd.f32 %v534, %v635
    %v641 = vtanh.pop %v640
    %s642 = scalar_lea.vmem [#allocation2], 8
    %v643 = vld [vmem:[%s642] sm:$0xf]
    %v644 = vunpack.c.l.bf16 %v643
    %v645 = vpack.c.bf16 %v429, %v429
    %646 = vmatprep.subr.bf16.mxu0 0
    %647 = vmatpush1.bf16.msra.mxu0 %v326
    %648 = vmatprep.subr.bf16.mxu0 0
    %649 = vmatpush1.bf16.msra.mxu0 %v327
    %650 = vmatprep.subr.bf16.mxu0 0
    %651 = vmatpush1.bf16.msra.mxu0 %v328
    %652 = vmatprep.subr.bf16.mxu0 0
    %653 = vmatpush1.bf16.msra.mxu0 %v329
    %654 = vmatprep.subr.bf16.mxu0 0
    %655 = vmatpush1.bf16.msra.mxu0 %v330
    %656 = vmatprep.subr.bf16.mxu0 0
    %657 = vmatpush1.bf16.msra.mxu0 %v331
    %658 = vmatprep.subr.bf16.mxu0 0
    %659 = vmatpush1.bf16.msra.mxu0 %v332
    %660 = vmatprep.subr.bf16.mxu0 0
    %661 = vmatpush1.bf16.msra.mxu0 %v333
    %662 = vmatprep.subr.bf16.mxu0 0
    %663 = vmatpush1.bf16.msra.mxu0 0
    %664 = vmatprep.subr.bf16.mxu0 0
    %665 = vmatpush1.bf16.msra.mxu0 0
    %666 = vmatprep.subr.bf16.mxu0 0
    %667 = vmatpush1.bf16.msra.mxu0 0
    %668 = vmatprep.subr.bf16.mxu0 0
    %669 = vmatpush1.bf16.msra.mxu0 0
    %670 = vmatprep.subr.bf16.mxu0 0
    %671 = vmatpush1.bf16.msra.mxu0 0
    %672 = vmatprep.subr.bf16.mxu0 0
    %673 = vmatpush1.bf16.msra.mxu0 0
    %674 = vmatprep.subr.bf16.mxu0 0
    %675 = vmatpush1.bf16.msra.mxu0 0
    %676 = vmatprep.subr.bf16.mxu0 0
    %677 = vmatpush1.bf16.msra.mxu0 0
    %678 = vmatprep.mubr.bf16.mxu0 0
    %679 = vmatmul.mubr.bf16.gmra.mrb[0].mxu0 %v645
    %v680 = vpop.f32.mrb[0].mxu0
    %v681 = vadd.f32 0.0, %v680
    %v682 = vpop.f32.mrb[0].mxu0
    %v683 = vpop.f32.mrb[0].mxu0
    %v684 = vpop.f32.mrb[0].mxu0
    %685 = vdwg.mxu0
    %v686 = vadd.f32 %v644, %v681
    %v687 = vtanh.pop %v686
    %688 = vmatprep.subr.bf16.mxu0 0
    %689 = vmatpush1.bf16.msra.mxu0 %v478
    %690 = vmatprep.subr.bf16.mxu0 0
    %691 = vmatpush1.bf16.msra.mxu0 %v479
    %692 = vmatprep.subr.bf16.mxu0 0
    %693 = vmatpush1.bf16.msra.mxu0 %v480
    %694 = vmatprep.subr.bf16.mxu0 0
    %695 = vmatpush1.bf16.msra.mxu0 %v481
    %696 = vmatprep.subr.bf16.mxu0 0
    %697 = vmatpush1.bf16.msra.mxu0 %v482
    %698 = vmatprep.subr.bf16.mxu0 0
    %699 = vmatpush1.bf16.msra.mxu0 %v483
    %700 = vmatprep.subr.bf16.mxu0 0
    %701 = vmatpush1.bf16.msra.mxu0 %v484
    %702 = vmatprep.subr.bf16.mxu0 0
    %703 = vmatpush1.bf16.msra.mxu0 %v485
    %704 = vmatprep.subr.bf16.mxu0 0
    %705 = vmatpush1.bf16.msra.mxu0 0
    %706 = vmatprep.subr.bf16.mxu0 0
    %707 = vmatpush1.bf16.msra.mxu0 0
    %708 = vmatprep.subr.bf16.mxu0 0
    %709 = vmatpush1.bf16.msra.mxu0 0
    %710 = vmatprep.subr.bf16.mxu0 0
    %711 = vmatpush1.bf16.msra.mxu0 0
    %712 = vmatprep.subr.bf16.mxu0 0
    %713 = vmatpush1.bf16.msra.mxu0 0
    %714 = vmatprep.subr.bf16.mxu0 0
    %715 = vmatpush1.bf16.msra.mxu0 0
    %716 = vmatprep.subr.bf16.mxu0 0
    %717 = vmatpush1.bf16.msra.mxu0 0
    %718 = vmatprep.subr.bf16.mxu0 0
    %719 = vmatpush1.bf16.msra.mxu0 0
    %720 = vmatprep.mubr.bf16.mxu0 0
    %721 = vmatmul.mubr.bf16.gmra.mrb[0].mxu0 %v645
    %v722 = vpop.f32.mrb[0].mxu0
    %v723 = vadd.f32 0.0, %v722
    %v724 = vpop.f32.mrb[0].mxu0
    %v725 = vpop.f32.mrb[0].mxu0
    %v726 = vpop.f32.mrb[0].mxu0
    %727 = vdwg.mxu0
    %v728 = vadd.f32 %v274, %v723
    %v729 = vpack.c.bf16 %v641, %v641
    %730 = vmatprep.subr.bf16.mxu0 0
    %731 = vmatpush1.bf16.msra.mxu0 %v584
    %732 = vmatprep.subr.bf16.mxu0 0
    %733 = vmatpush1.bf16.msra.mxu0 %v585
    %734 = vmatprep.subr.bf16.mxu0 0
    %735 = vmatpush1.bf16.msra.mxu0 %v586
    %736 = vmatprep.subr.bf16.mxu0 0
    %737 = vmatpush1.bf16.msra.mxu0 %v587
    %738 = vmatprep.subr.bf16.mxu0 0
    %739 = vmatpush1.bf16.msra.mxu0 %v588
    %740 = vmatprep.subr.bf16.mxu0 0
    %741 = vmatpush1.bf16.msra.mxu0 %v589
    %742 = vmatprep.subr.bf16.mxu0 0
    %743 = vmatpush1.bf16.msra.mxu0 %v590
    %744 = vmatprep.subr.bf16.mxu0 0
    %745 = vmatpush1.bf16.msra.mxu0 %v591
    %746 = vmatprep.subr.bf16.mxu0 0
    %747 = vmatpush1.bf16.msra.mxu0 0
    %748 = vmatprep.subr.bf16.mxu0 0
    %749 = vmatpush1.bf16.msra.mxu0 0
    %750 = vmatprep.subr.bf16.mxu0 0
    %751 = vmatpush1.bf16.msra.mxu0 0
    %752 = vmatprep.subr.bf16.mxu0 0
    %753 = vmatpush1.bf16.msra.mxu0 0
    %754 = vmatprep.subr.bf16.mxu0 0
    %755 = vmatpush1.bf16.msra.mxu0 0
    %756 = vmatprep.subr.bf16.mxu0 0
    %757 = vmatpush1.bf16.msra.mxu0 0
    %758 = vmatprep.subr.bf16.mxu0 0
    %759 = vmatpush1.bf16.msra.mxu0 0
    %760 = vmatprep.subr.bf16.mxu0 0
    %761 = vmatpush1.bf16.msra.mxu0 0
    %762 = vmatprep.mubr.bf16.mxu0 0
    %763 = vmatmul.mubr.bf16.gmra.mrb[0].mxu0 %v729
    %v764 = vpop.f32.mrb[0].mxu0
    %v765 = vadd.f32 0.0, %v764
    %v766 = vpop.f32.mrb[0].mxu0
    %v767 = vpop.f32.mrb[0].mxu0
    %v768 = vpop.f32.mrb[0].mxu0
    %769 = vdwg.mxu0
    %v770 = vadd.f32 %v728, %v765
    %v771 = vtanh.pop %v770
    %s772 = scalar_lea.vmem [#allocation2], 12
    %v773 = vld [vmem:[%s772] sm:$0xf]
    %v774 = vunpack.c.l.bf16 %v773
    %v775 = vpack.c.bf16 %v687, %v687
    %776 = vmatprep.subr.bf16.mxu0 0
    %777 = vmatpush1.bf16.msra.mxu0 %v326
    %778 = vmatprep.subr.bf16.mxu0 0
    %779 = vmatpush1.bf16.msra.mxu0 %v327
    %780 = vmatprep.subr.bf16.mxu0 0
    %781 = vmatpush1.bf16.msra.mxu0 %v328
    %782 = vmatprep.subr.bf16.mxu0 0
    %783 = vmatpush1.bf16.msra.mxu0 %v329
    %784 = vmatprep.subr.bf16.mxu0 0
    %785 = vmatpush1.bf16.msra.mxu0 %v330
    %786 = vmatprep.subr.bf16.mxu0 0
    %787 = vmatpush1.bf16.msra.mxu0 %v331
    %788 = vmatprep.subr.bf16.mxu0 0
    %789 = vmatpush1.bf16.msra.mxu0 %v332
    %790 = vmatprep.subr.bf16.mxu0 0
    %791 = vmatpush1.bf16.msra.mxu0 %v333
    %792 = vmatprep.subr.bf16.mxu0 0
    %793 = vmatpush1.bf16.msra.mxu0 0
    %794 = vmatprep.subr.bf16.mxu0 0
    %795 = vmatpush1.bf16.msra.mxu0 0
    %796 = vmatprep.subr.bf16.mxu0 0
    %797 = vmatpush1.bf16.msra.mxu0 0
    %798 = vmatprep.subr.bf16.mxu0 0
    %799 = vmatpush1.bf16.msra.mxu0 0
    %800 = vmatprep.subr.bf16.mxu0 0
    %801 = vmatpush1.bf16.msra.mxu0 0
    %802 = vmatprep.subr.bf16.mxu0 0
    %803 = vmatpush1.bf16.msra.mxu0 0
    %804 = vmatprep.subr.bf16.mxu0 0
    %805 = vmatpush1.bf16.msra.mxu0 0
    %806 = vmatprep.subr.bf16.mxu0 0
    %807 = vmatpush1.bf16.msra.mxu0 0
    %808 = vmatprep.mubr.bf16.mxu0 0
    %809 = vmatmul.mubr.bf16.gmra.mrb[0].mxu0 %v775
    %v810 = vpop.f32.mrb[0].mxu0
    %v811 = vadd.f32 0.0, %v810
    %v812 = vpop.f32.mrb[0].mxu0
    %v813 = vpop.f32.mrb[0].mxu0
    %v814 = vpop.f32.mrb[0].mxu0
    %815 = vdwg.mxu0
    %v816 = vadd.f32 %v774, %v811
    %v817 = vtanh.pop %v816
    %818 = vmatprep.subr.bf16.mxu0 0
    %819 = vmatpush1.bf16.msra.mxu0 %v478
    %820 = vmatprep.subr.bf16.mxu0 0
    %821 = vmatpush1.bf16.msra.mxu0 %v479
    %822 = vmatprep.subr.bf16.mxu0 0
    %823 = vmatpush1.bf16.msra.mxu0 %v480
    %824 = vmatprep.subr.bf16.mxu0 0
    %825 = vmatpush1.bf16.msra.mxu0 %v481
    %826 = vmatprep.subr.bf16.mxu0 0
    %827 = vmatpush1.bf16.msra.mxu0 %v482
    %828 = vmatprep.subr.bf16.mxu0 0
    %829 = vmatpush1.bf16.msra.mxu0 %v483
    %830 = vmatprep.subr.bf16.mxu0 0
    %831 = vmatpush1.bf16.msra.mxu0 %v484
    %832 = vmatprep.subr.bf16.mxu0 0
    %833 = vmatpush1.bf16.msra.mxu0 %v485
    %834 = vmatprep.subr.bf16.mxu0 0
    %835 = vmatpush1.bf16.msra.mxu0 0
    %836 = vmatprep.subr.bf16.mxu0 0
    %837 = vmatpush1.bf16.msra.mxu0 0
    %838 = vmatprep.subr.bf16.mxu0 0
    %839 = vmatpush1.bf16.msra.mxu0 0
    %840 = vmatprep.subr.bf16.mxu0 0
    %841 = vmatpush1.bf16.msra.mxu0 0
    %842 = vmatprep.subr.bf16.mxu0 0
    %843 = vmatpush1.bf16.msra.mxu0 0
    %844 = vmatprep.subr.bf16.mxu0 0
    %845 = vmatpush1.bf16.msra.mxu0 0
    %846 = vmatprep.subr.bf16.mxu0 0
    %847 = vmatpush1.bf16.msra.mxu0 0
    %848 = vmatprep.subr.bf16.mxu0 0
    %849 = vmatpush1.bf16.msra.mxu0 0
    %850 = vmatprep.mubr.bf16.mxu0 0
    %851 = vmatmul.mubr.bf16.gmra.mrb[0].mxu0 %v775
    %v852 = vpop.f32.mrb[0].mxu0
    %v853 = vadd.f32 0.0, %v852
    %v854 = vpop.f32.mrb[0].mxu0
    %v855 = vpop.f32.mrb[0].mxu0
    %v856 = vpop.f32.mrb[0].mxu0
    %857 = vdwg.mxu0
    %v858 = vadd.f32 %v274, %v853
    %v859 = vpack.c.bf16 %v771, %v771
    %860 = vmatprep.subr.bf16.mxu0 0
    %861 = vmatpush1.bf16.msra.mxu0 %v584
    %862 = vmatprep.subr.bf16.mxu0 0
    %863 = vmatpush1.bf16.msra.mxu0 %v585
    %864 = vmatprep.subr.bf16.mxu0 0
    %865 = vmatpush1.bf16.msra.mxu0 %v586
    %866 = vmatprep.subr.bf16.mxu0 0
    %867 = vmatpush1.bf16.msra.mxu0 %v587
    %868 = vmatprep.subr.bf16.mxu0 0
    %869 = vmatpush1.bf16.msra.mxu0 %v588
    %870 = vmatprep.subr.bf16.mxu0 0
    %871 = vmatpush1.bf16.msra.mxu0 %v589
    %872 = vmatprep.subr.bf16.mxu0 0
    %873 = vmatpush1.bf16.msra.mxu0 %v590
    %874 = vmatprep.subr.bf16.mxu0 0
    %875 = vmatpush1.bf16.msra.mxu0 %v591
    %876 = vmatprep.subr.bf16.mxu0 0
    %877 = vmatpush1.bf16.msra.mxu0 0
    %878 = vmatprep.subr.bf16.mxu0 0
    %879 = vmatpush1.bf16.msra.mxu0 0
    %880 = vmatprep.subr.bf16.mxu0 0
    %881 = vmatpush1.bf16.msra.mxu0 0
    %882 = vmatprep.subr.bf16.mxu0 0
    %883 = vmatpush1.bf16.msra.mxu0 0
    %884 = vmatprep.subr.bf16.mxu0 0
    %885 = vmatpush1.bf16.msra.mxu0 0
    %886 = vmatprep.subr.bf16.mxu0 0
    %887 = vmatpush1.bf16.msra.mxu0 0
    %888 = vmatprep.subr.bf16.mxu0 0
    %889 = vmatpush1.bf16.msra.mxu0 0
    %890 = vmatprep.subr.bf16.mxu0 0
    %891 = vmatpush1.bf16.msra.mxu0 0
    %892 = vmatprep.mubr.bf16.mxu0 0
    %893 = vmatmul.mubr.bf16.gmra.mrb[0].mxu0 %v859
    %v894 = vpop.f32.mrb[0].mxu0
    %v895 = vadd.f32 0.0, %v894
    %v896 = vpop.f32.mrb[0].mxu0
    %v897 = vpop.f32.mrb[0].mxu0
    %v898 = vpop.f32.mrb[0].mxu0
    %899 = vdwg.mxu0
    %v900 = vadd.f32 %v858, %v895
    %v901 = vtanh.pop %v900
    %s902 = scalar_lea.vmem [#allocation2], 16
    %v903 = vld [vmem:[%s902] sm:$0xf]
    %v904 = vunpack.c.l.bf16 %v903
    %v905 = vpack.c.bf16 %v817, %v817
    %906 = vmatprep.subr.bf16.mxu0 0
    %907 = vmatpush1.bf16.msra.mxu0 %v326
    %908 = vmatprep.subr.bf16.mxu0 0
    %909 = vmatpush1.bf16.msra.mxu0 %v327
    %910 = vmatprep.subr.bf16.mxu0 0
    %911 = vmatpush1.bf16.msra.mxu0 %v328
    %912 = vmatprep.subr.bf16.mxu0 0
    %913 = vmatpush1.bf16.msra.mxu0 %v329
    %914 = vmatprep.subr.bf16.mxu0 0
    %915 = vmatpush1.bf16.msra.mxu0 %v330
    %916 = vmatprep.subr.bf16.mxu0 0
    %917 = vmatpush1.bf16.msra.mxu0 %v331
    %918 = vmatprep.subr.bf16.mxu0 0
    %919 = vmatpush1.bf16.msra.mxu0 %v332
    %920 = vmatprep.subr.bf16.mxu0 0
    %921 = vmatpush1.bf16.msra.mxu0 %v333
    %922 = vmatprep.subr.bf16.mxu0 0
    %923 = vmatpush1.bf16.msra.mxu0 0
    %924 = vmatprep.subr.bf16.mxu0 0
    %925 = vmatpush1.bf16.msra.mxu0 0
    %926 = vmatprep.subr.bf16.mxu0 0
    %927 = vmatpush1.bf16.msra.mxu0 0
    %928 = vmatprep.subr.bf16.mxu0 0
    %929 = vmatpush1.bf16.msra.mxu0 0
    %930 = vmatprep.subr.bf16.mxu0 0
    %931 = vmatpush1.bf16.msra.mxu0 0
    %932 = vmatprep.subr.bf16.mxu0 0
    %933 = vmatpush1.bf16.msra.mxu0 0
    %934 = vmatprep.subr.bf16.mxu0 0
    %935 = vmatpush1.bf16.msra.mxu0 0
    %936 = vmatprep.subr.bf16.mxu0 0
    %937 = vmatpush1.bf16.msra.mxu0 0
    %938 = vmatprep.mubr.bf16.mxu0 0
    %939 = vmatmul.mubr.bf16.gmra.mrb[0].mxu0 %v905
    %v940 = vpop.f32.mrb[0].mxu0
    %v941 = vadd.f32 0.0, %v940
    %v942 = vpop.f32.mrb[0].mxu0
    %v943 = vpop.f32.mrb[0].mxu0
    %v944 = vpop.f32.mrb[0].mxu0
    %945 = vdwg.mxu0
    %v946 = vadd.f32 %v904, %v941
    %v947 = vtanh.pop %v946
    %948 = vmatprep.subr.bf16.mxu0 0
    %949 = vmatpush1.bf16.msra.mxu0 %v478
    %950 = vmatprep.subr.bf16.mxu0 0
    %951 = vmatpush1.bf16.msra.mxu0 %v479
    %952 = vmatprep.subr.bf16.mxu0 0
    %953 = vmatpush1.bf16.msra.mxu0 %v480
    %954 = vmatprep.subr.bf16.mxu0 0
    %955 = vmatpush1.bf16.msra.mxu0 %v481
    %956 = vmatprep.subr.bf16.mxu0 0
    %957 = vmatpush1.bf16.msra.mxu0 %v482
    %958 = vmatprep.subr.bf16.mxu0 0
    %959 = vmatpush1.bf16.msra.mxu0 %v483
    %960 = vmatprep.subr.bf16.mxu0 0
    %961 = vmatpush1.bf16.msra.mxu0 %v484
    %962 = vmatprep.subr.bf16.mxu0 0
    %963 = vmatpush1.bf16.msra.mxu0 %v485
    %964 = vmatprep.subr.bf16.mxu0 0
    %965 = vmatpush1.bf16.msra.mxu0 0
    %966 = vmatprep.subr.bf16.mxu0 0
    %967 = vmatpush1.bf16.msra.mxu0 0
    %968 = vmatprep.subr.bf16.mxu0 0
    %969 = vmatpush1.bf16.msra.mxu0 0
    %970 = vmatprep.subr.bf16.mxu0 0
    %971 = vmatpush1.bf16.msra.mxu0 0
    %972 = vmatprep.subr.bf16.mxu0 0
    %973 = vmatpush1.bf16.msra.mxu0 0
    %974 = vmatprep.subr.bf16.mxu0 0
    %975 = vmatpush1.bf16.msra.mxu0 0
    %976 = vmatprep.subr.bf16.mxu0 0
    %977 = vmatpush1.bf16.msra.mxu0 0
    %978 = vmatprep.subr.bf16.mxu0 0
    %979 = vmatpush1.bf16.msra.mxu0 0
    %980 = vmatprep.mubr.bf16.mxu0 0
    %981 = vmatmul.mubr.bf16.gmra.mrb[0].mxu0 %v905
    %v982 = vpop.f32.mrb[0].mxu0
    %v983 = vadd.f32 0.0, %v982
    %v984 = vpop.f32.mrb[0].mxu0
    %v985 = vpop.f32.mrb[0].mxu0
    %v986 = vpop.f32.mrb[0].mxu0
    %987 = vdwg.mxu0
    %v988 = vadd.f32 %v274, %v983
    %v989 = vpack.c.bf16 %v901, %v901
    %990 = vmatprep.subr.bf16.mxu0 0
    %991 = vmatpush1.bf16.msra.mxu0 %v584
    %992 = vmatprep.subr.bf16.mxu0 0
    %993 = vmatpush1.bf16.msra.mxu0 %v585
    %994 = vmatprep.subr.bf16.mxu0 0
    %995 = vmatpush1.bf16.msra.mxu0 %v586
    %996 = vmatprep.subr.bf16.mxu0 0
    %997 = vmatpush1.bf16.msra.mxu0 %v587
    %998 = vmatprep.subr.bf16.mxu0 0
    %999 = vmatpush1.bf16.msra.mxu0 %v588
    %1000 = vmatprep.subr.bf16.mxu0 0
    %1001 = vmatpush1.bf16.msra.mxu0 %v589
    %1002 = vmatprep.subr.bf16.mxu0 0
    %1003 = vmatpush1.bf16.msra.mxu0 %v590
    %1004 = vmatprep.subr.bf16.mxu0 0
    %1005 = vmatpush1.bf16.msra.mxu0 %v591
    %1006 = vmatprep.subr.bf16.mxu0 0
    %1007 = vmatpush1.bf16.msra.mxu0 0
    %1008 = vmatprep.subr.bf16.mxu0 0
    %1009 = vmatpush1.bf16.msra.mxu0 0
    %1010 = vmatprep.subr.bf16.mxu0 0
    %1011 = vmatpush1.bf16.msra.mxu0 0
    %1012 = vmatprep.subr.bf16.mxu0 0
    %1013 = vmatpush1.bf16.msra.mxu0 0
    %1014 = vmatprep.subr.bf16.mxu0 0
    %1015 = vmatpush1.bf16.msra.mxu0 0
    %1016 = vmatprep.subr.bf16.mxu0 0
    %1017 = vmatpush1.bf16.msra.mxu0 0
    %1018 = vmatprep.subr.bf16.mxu0 0
    %1019 = vmatpush1.bf16.msra.mxu0 0
    %1020 = vmatprep.subr.bf16.mxu0 0
    %1021 = vmatpush1.bf16.msra.mxu0 0
    %1022 = vmatprep.mubr.bf16.mxu0 0
    %1023 = vmatmul.mubr.bf16.gmra.mrb[0].mxu0 %v989
    %v1024 = vpop.f32.mrb[0].mxu0
    %v1025 = vadd.f32 0.0, %v1024
    %v1026 = vpop.f32.mrb[0].mxu0
    %v1027 = vpop.f32.mrb[0].mxu0
    %v1028 = vpop.f32.mrb[0].mxu0
    %1029 = vdwg.mxu0
    %v1030 = vadd.f32 %v988, %v1025
    %v1031 = vtanh.pop %v1030
    %s1032 = scalar_lea.vmem [#allocation2], 20
    %v1033 = vld [vmem:[%s1032] sm:$0xf]
    %v1034 = vunpack.c.l.bf16 %v1033
    %v1035 = vpack.c.bf16 %v947, %v947
    %1036 = vmatprep.subr.bf16.mxu0 0
    %1037 = vmatpush1.bf16.msra.mxu0 %v326
    %1038 = vmatprep.subr.bf16.mxu0 0
    %1039 = vmatpush1.bf16.msra.mxu0 %v327
    %1040 = vmatprep.subr.bf16.mxu0 0
    %1041 = vmatpush1.bf16.msra.mxu0 %v328
    %1042 = vmatprep.subr.bf16.mxu0 0
    %1043 = vmatpush1.bf16.msra.mxu0 %v329
    %1044 = vmatprep.subr.bf16.mxu0 0
    %1045 = vmatpush1.bf16.msra.mxu0 %v330
    %1046 = vmatprep.subr.bf16.mxu0 0
    %1047 = vmatpush1.bf16.msra.mxu0 %v331
    %1048 = vmatprep.subr.bf16.mxu0 0
    %1049 = vmatpush1.bf16.msra.mxu0 %v332
    %1050 = vmatprep.subr.bf16.mxu0 0
    %1051 = vmatpush1.bf16.msra.mxu0 %v333
    %1052 = vmatprep.subr.bf16.mxu0 0
    %1053 = vmatpush1.bf16.msra.mxu0 0
    %1054 = vmatprep.subr.bf16.mxu0 0
    %1055 = vmatpush1.bf16.msra.mxu0 0
    %1056 = vmatprep.subr.bf16.mxu0 0
    %1057 = vmatpush1.bf16.msra.mxu0 0
    %1058 = vmatprep.subr.bf16.mxu0 0
    %1059 = vmatpush1.bf16.msra.mxu0 0
    %1060 = vmatprep.subr.bf16.mxu0 0
    %1061 = vmatpush1.bf16.msra.mxu0 0
    %1062 = vmatprep.subr.bf16.mxu0 0
    %1063 = vmatpush1.bf16.msra.mxu0 0
    %1064 = vmatprep.subr.bf16.mxu0 0
    %1065 = vmatpush1.bf16.msra.mxu0 0
    %1066 = vmatprep.subr.bf16.mxu0 0
    %1067 = vmatpush1.bf16.msra.mxu0 0
    %1068 = vmatprep.mubr.bf16.mxu0 0
    %1069 = vmatmul.mubr.bf16.gmra.mrb[0].mxu0 %v1035
    %v1070 = vpop.f32.mrb[0].mxu0
    %v1071 = vadd.f32 0.0, %v1070
    %v1072 = vpop.f32.mrb[0].mxu0
    %v1073 = vpop.f32.mrb[0].mxu0
    %v1074 = vpop.f32.mrb[0].mxu0
    %1075 = vdwg.mxu0
    %v1076 = vadd.f32 %v1034, %v1071
    %v1077 = vtanh.pop %v1076
    %1078 = vmatprep.subr.bf16.mxu0 0
    %1079 = vmatpush1.bf16.msra.mxu0 %v478
    %1080 = vmatprep.subr.bf16.mxu0 0
    %1081 = vmatpush1.bf16.msra.mxu0 %v479
    %1082 = vmatprep.subr.bf16.mxu0 0
    %1083 = vmatpush1.bf16.msra.mxu0 %v480
    %1084 = vmatprep.subr.bf16.mxu0 0
    %1085 = vmatpush1.bf16.msra.mxu0 %v481
    %1086 = vmatprep.subr.bf16.mxu0 0
    %1087 = vmatpush1.bf16.msra.mxu0 %v482
    %1088 = vmatprep.subr.bf16.mxu0 0
    %1089 = vmatpush1.bf16.msra.mxu0 %v483
    %1090 = vmatprep.subr.bf16.mxu0 0
    %1091 = vmatpush1.bf16.msra.mxu0 %v484
    %1092 = vmatprep.subr.bf16.mxu0 0
    %1093 = vmatpush1.bf16.msra.mxu0 %v485
    %1094 = vmatprep.subr.bf16.mxu0 0
    %1095 = vmatpush1.bf16.msra.mxu0 0
    %1096 = vmatprep.subr.bf16.mxu0 0
    %1097 = vmatpush1.bf16.msra.mxu0 0
    %1098 = vmatprep.subr.bf16.mxu0 0
    %1099 = vmatpush1.bf16.msra.mxu0 0
    %1100 = vmatprep.subr.bf16.mxu0 0
    %1101 = vmatpush1.bf16.msra.mxu0 0
    %1102 = vmatprep.subr.bf16.mxu0 0
    %1103 = vmatpush1.bf16.msra.mxu0 0
    %1104 = vmatprep.subr.bf16.mxu0 0
    %1105 = vmatpush1.bf16.msra.mxu0 0
    %1106 = vmatprep.subr.bf16.mxu0 0
    %1107 = vmatpush1.bf16.msra.mxu0 0
    %1108 = vmatprep.subr.bf16.mxu0 0
    %1109 = vmatpush1.bf16.msra.mxu0 0
    %1110 = vmatprep.mubr.bf16.mxu0 0
    %1111 = vmatmul.mubr.bf16.gmra.mrb[0].mxu0 %v1035
    %v1112 = vpop.f32.mrb[0].mxu0
    %v1113 = vadd.f32 0.0, %v1112
    %v1114 = vpop.f32.mrb[0].mxu0
    %v1115 = vpop.f32.mrb[0].mxu0
    %v1116 = vpop.f32.mrb[0].mxu0
    %1117 = vdwg.mxu0
    %v1118 = vadd.f32 %v274, %v1113
    %v1119 = vpack.c.bf16 %v1031, %v1031
    %1120 = vmatprep.subr.bf16.mxu0 0
    %1121 = vmatpush1.bf16.msra.mxu0 %v584
    %1122 = vmatprep.subr.bf16.mxu0 0
    %1123 = vmatpush1.bf16.msra.mxu0 %v585
    %1124 = vmatprep.subr.bf16.mxu0 0
    %1125 = vmatpush1.bf16.msra.mxu0 %v586
    %1126 = vmatprep.subr.bf16.mxu0 0
    %1127 = vmatpush1.bf16.msra.mxu0 %v587
    %1128 = vmatprep.subr.bf16.mxu0 0
    %1129 = vmatpush1.bf16.msra.mxu0 %v588
    %1130 = vmatprep.subr.bf16.mxu0 0
    %1131 = vmatpush1.bf16.msra.mxu0 %v589
    %1132 = vmatprep.subr.bf16.mxu0 0
    %1133 = vmatpush1.bf16.msra.mxu0 %v590
    %1134 = vmatprep.subr.bf16.mxu0 0
    %1135 = vmatpush1.bf16.msra.mxu0 %v591
    %1136 = vmatprep.subr.bf16.mxu0 0
    %1137 = vmatpush1.bf16.msra.mxu0 0
    %1138 = vmatprep.subr.bf16.mxu0 0
    %1139 = vmatpush1.bf16.msra.mxu0 0
    %1140 = vmatprep.subr.bf16.mxu0 0
    %1141 = vmatpush1.bf16.msra.mxu0 0
    %1142 = vmatprep.subr.bf16.mxu0 0
    %1143 = vmatpush1.bf16.msra.mxu0 0
    %1144 = vmatprep.subr.bf16.mxu0 0
    %1145 = vmatpush1.bf16.msra.mxu0 0
    %1146 = vmatprep.subr.bf16.mxu0 0
    %1147 = vmatpush1.bf16.msra.mxu0 0
    %1148 = vmatprep.subr.bf16.mxu0 0
    %1149 = vmatpush1.bf16.msra.mxu0 0
    %1150 = vmatprep.subr.bf16.mxu0 0
    %1151 = vmatpush1.bf16.msra.mxu0 0
    %1152 = vmatprep.mubr.bf16.mxu0 0
    %1153 = vmatmul.mubr.bf16.gmra.mrb[0].mxu0 %v1119
    %v1154 = vpop.f32.mrb[0].mxu0
    %v1155 = vadd.f32 0.0, %v1154
    %v1156 = vpop.f32.mrb[0].mxu0
    %v1157 = vpop.f32.mrb[0].mxu0
    %v1158 = vpop.f32.mrb[0].mxu0
    %1159 = vdwg.mxu0
    %v1160 = vadd.f32 %v1118, %v1155
    %v1161 = vtanh.pop %v1160
    %s1162 = scalar_lea.vmem [#allocation2], 24
    %v1163 = vld [vmem:[%s1162] sm:$0xf]
    %v1164 = vunpack.c.l.bf16 %v1163
    %v1165 = vpack.c.bf16 %v1077, %v1077
    %1166 = vmatprep.subr.bf16.mxu0 0
    %1167 = vmatpush1.bf16.msra.mxu0 %v326
    %1168 = vmatprep.subr.bf16.mxu0 0
    %1169 = vmatpush1.bf16.msra.mxu0 %v327
    %1170 = vmatprep.subr.bf16.mxu0 0
    %1171 = vmatpush1.bf16.msra.mxu0 %v328
    %1172 = vmatprep.subr.bf16.mxu0 0
    %1173 = vmatpush1.bf16.msra.mxu0 %v329
    %1174 = vmatprep.subr.bf16.mxu0 0
    %1175 = vmatpush1.bf16.msra.mxu0 %v330
    %1176 = vmatprep.subr.bf16.mxu0 0
    %1177 = vmatpush1.bf16.msra.mxu0 %v331
    %1178 = vmatprep.subr.bf16.mxu0 0
    %1179 = vmatpush1.bf16.msra.mxu0 %v332
    %1180 = vmatprep.subr.bf16.mxu0 0
    %1181 = vmatpush1.bf16.msra.mxu0 %v333
    %1182 = vmatprep.subr.bf16.mxu0 0
    %1183 = vmatpush1.bf16.msra.mxu0 0
    %1184 = vmatprep.subr.bf16.mxu0 0
    %1185 = vmatpush1.bf16.msra.mxu0 0
    %1186 = vmatprep.subr.bf16.mxu0 0
    %1187 = vmatpush1.bf16.msra.mxu0 0
    %1188 = vmatprep.subr.bf16.mxu0 0
    %1189 = vmatpush1.bf16.msra.mxu0 0
    %1190 = vmatprep.subr.bf16.mxu0 0
    %1191 = vmatpush1.bf16.msra.mxu0 0
    %1192 = vmatprep.subr.bf16.mxu0 0
    %1193 = vmatpush1.bf16.msra.mxu0 0
    %1194 = vmatprep.subr.bf16.mxu0 0
    %1195 = vmatpush1.bf16.msra.mxu0 0
    %1196 = vmatprep.subr.bf16.mxu0 0
    %1197 = vmatpush1.bf16.msra.mxu0 0
    %1198 = vmatprep.mubr.bf16.mxu0 0
    %1199 = vmatmul.mubr.bf16.gmra.mrb[0].mxu0 %v1165
    %v1200 = vpop.f32.mrb[0].mxu0
    %v1201 = vadd.f32 0.0, %v1200
    %v1202 = vpop.f32.mrb[0].mxu0
    %v1203 = vpop.f32.mrb[0].mxu0
    %v1204 = vpop.f32.mrb[0].mxu0
    %1205 = vdwg.mxu0
    %v1206 = vadd.f32 %v1164, %v1201
    %v1207 = vtanh.pop %v1206
    %1208 = vmatprep.subr.bf16.mxu0 0
    %1209 = vmatpush1.bf16.msra.mxu0 %v478
    %1210 = vmatprep.subr.bf16.mxu0 0
    %1211 = vmatpush1.bf16.msra.mxu0 %v479
    %1212 = vmatprep.subr.bf16.mxu0 0
    %1213 = vmatpush1.bf16.msra.mxu0 %v480
    %1214 = vmatprep.subr.bf16.mxu0 0
    %1215 = vmatpush1.bf16.msra.mxu0 %v481
    %1216 = vmatprep.subr.bf16.mxu0 0
    %1217 = vmatpush1.bf16.msra.mxu0 %v482
    %1218 = vmatprep.subr.bf16.mxu0 0
    %1219 = vmatpush1.bf16.msra.mxu0 %v483
    %1220 = vmatprep.subr.bf16.mxu0 0
    %1221 = vmatpush1.bf16.msra.mxu0 %v484
    %1222 = vmatprep.subr.bf16.mxu0 0
    %1223 = vmatpush1.bf16.msra.mxu0 %v485
    %1224 = vmatprep.subr.bf16.mxu0 0
    %1225 = vmatpush1.bf16.msra.mxu0 0
    %1226 = vmatprep.subr.bf16.mxu0 0
    %1227 = vmatpush1.bf16.msra.mxu0 0
    %1228 = vmatprep.subr.bf16.mxu0 0
    %1229 = vmatpush1.bf16.msra.mxu0 0
    %1230 = vmatprep.subr.bf16.mxu0 0
    %1231 = vmatpush1.bf16.msra.mxu0 0
    %1232 = vmatprep.subr.bf16.mxu0 0
    %1233 = vmatpush1.bf16.msra.mxu0 0
    %1234 = vmatprep.subr.bf16.mxu0 0
    %1235 = vmatpush1.bf16.msra.mxu0 0
    %1236 = vmatprep.subr.bf16.mxu0 0
    %1237 = vmatpush1.bf16.msra.mxu0 0
    %1238 = vmatprep.subr.bf16.mxu0 0
    %1239 = vmatpush1.bf16.msra.mxu0 0
    %1240 = vmatprep.mubr.bf16.mxu0 0
    %1241 = vmatmul.mubr.bf16.gmra.mrb[0].mxu0 %v1165
    %v1242 = vpop.f32.mrb[0].mxu0
    %v1243 = vadd.f32 0.0, %v1242
    %v1244 = vpop.f32.mrb[0].mxu0
    %v1245 = vpop.f32.mrb[0].mxu0
    %v1246 = vpop.f32.mrb[0].mxu0
    %1247 = vdwg.mxu0
    %v1248 = vadd.f32 %v274, %v1243
    %v1249 = vpack.c.bf16 %v1161, %v1161
    %1250 = vmatprep.subr.bf16.mxu0 0
    %1251 = vmatpush1.bf16.msra.mxu0 %v584
    %1252 = vmatprep.subr.bf16.mxu0 0
    %1253 = vmatpush1.bf16.msra.mxu0 %v585
    %1254 = vmatprep.subr.bf16.mxu0 0
    %1255 = vmatpush1.bf16.msra.mxu0 %v586
    %1256 = vmatprep.subr.bf16.mxu0 0
    %1257 = vmatpush1.bf16.msra.mxu0 %v587
    %1258 = vmatprep.subr.bf16.mxu0 0
    %1259 = vmatpush1.bf16.msra.mxu0 %v588
    %1260 = vmatprep.subr.bf16.mxu0 0
    %1261 = vmatpush1.bf16.msra.mxu0 %v589
    %1262 = vmatprep.subr.bf16.mxu0 0
    %1263 = vmatpush1.bf16.msra.mxu0 %v590
    %1264 = vmatprep.subr.bf16.mxu0 0
    %1265 = vmatpush1.bf16.msra.mxu0 %v591
    %1266 = vmatprep.subr.bf16.mxu0 0
    %1267 = vmatpush1.bf16.msra.mxu0 0
    %1268 = vmatprep.subr.bf16.mxu0 0
    %1269 = vmatpush1.bf16.msra.mxu0 0
    %1270 = vmatprep.subr.bf16.mxu0 0
    %1271 = vmatpush1.bf16.msra.mxu0 0
    %1272 = vmatprep.subr.bf16.mxu0 0
    %1273 = vmatpush1.bf16.msra.mxu0 0
    %1274 = vmatprep.subr.bf16.mxu0 0
    %1275 = vmatpush1.bf16.msra.mxu0 0
    %1276 = vmatprep.subr.bf16.mxu0 0
    %1277 = vmatpush1.bf16.msra.mxu0 0
    %1278 = vmatprep.subr.bf16.mxu0 0
    %1279 = vmatpush1.bf16.msra.mxu0 0
    %1280 = vmatprep.subr.bf16.mxu0 0
    %1281 = vmatpush1.bf16.msra.mxu0 0
    %1282 = vmatprep.mubr.bf16.mxu0 0
    %1283 = vmatmul.mubr.bf16.gmra.mrb[0].mxu0 %v1249
    %v1284 = vpop.f32.mrb[0].mxu0
    %v1285 = vadd.f32 0.0, %v1284
    %v1286 = vpop.f32.mrb[0].mxu0
    %v1287 = vpop.f32.mrb[0].mxu0
    %v1288 = vpop.f32.mrb[0].mxu0
    %1289 = vdwg.mxu0
    %v1290 = vadd.f32 %v1248, %v1285
    %v1291 = vtanh.pop %v1290
    %s1292 = scalar_lea.vmem [#allocation2], 28
    %v1293 = vld [vmem:[%s1292] sm:$0xf]
    %v1294 = vunpack.c.l.bf16 %v1293
    %v1295 = vpack.c.bf16 %v1207, %v1207
    %1296 = vmatprep.subr.bf16.mxu0 0
    %1297 = vmatpush1.bf16.msra.mxu0 %v326
    %1298 = vmatprep.subr.bf16.mxu0 0
    %1299 = vmatpush1.bf16.msra.mxu0 %v327
    %1300 = vmatprep.subr.bf16.mxu0 0
    %1301 = vmatpush1.bf16.msra.mxu0 %v328
    %1302 = vmatprep.subr.bf16.mxu0 0
    %1303 = vmatpush1.bf16.msra.mxu0 %v329
    %1304 = vmatprep.subr.bf16.mxu0 0
    %1305 = vmatpush1.bf16.msra.mxu0 %v330
    %1306 = vmatprep.subr.bf16.mxu0 0
    %1307 = vmatpush1.bf16.msra.mxu0 %v331
    %1308 = vmatprep.subr.bf16.mxu0 0
    %1309 = vmatpush1.bf16.msra.mxu0 %v332
    %1310 = vmatprep.subr.bf16.mxu0 0
    %1311 = vmatpush1.bf16.msra.mxu0 %v333
    %1312 = vmatprep.subr.bf16.mxu0 0
    %1313 = vmatpush1.bf16.msra.mxu0 0
    %1314 = vmatprep.subr.bf16.mxu0 0
    %1315 = vmatpush1.bf16.msra.mxu0 0
    %1316 = vmatprep.subr.bf16.mxu0 0
    %1317 = vmatpush1.bf16.msra.mxu0 0
    %1318 = vmatprep.subr.bf16.mxu0 0
    %1319 = vmatpush1.bf16.msra.mxu0 0
    %1320 = vmatprep.subr.bf16.mxu0 0
    %1321 = vmatpush1.bf16.msra.mxu0 0
    %1322 = vmatprep.subr.bf16.mxu0 0
    %1323 = vmatpush1.bf16.msra.mxu0 0
    %1324 = vmatprep.subr.bf16.mxu0 0
    %1325 = vmatpush1.bf16.msra.mxu0 0
    %1326 = vmatprep.subr.bf16.mxu0 0
    %1327 = vmatpush1.bf16.msra.mxu0 0
    %1328 = vmatprep.mubr.bf16.mxu0 0
    %1329 = vmatmul.mubr.bf16.gmra.mrb[0].mxu0 %v1295
    %v1330 = vpop.f32.mrb[0].mxu0
    %v1331 = vadd.f32 0.0, %v1330
    %v1332 = vpop.f32.mrb[0].mxu0
    %v1333 = vpop.f32.mrb[0].mxu0
    %v1334 = vpop.f32.mrb[0].mxu0
    %1335 = vdwg.mxu0
    %v1336 = vadd.f32 %v1294, %v1331
    %v1337 = vtanh.pop %v1336
    %1338 = vmatprep.subr.bf16.mxu0 0
    %1339 = vmatpush1.bf16.msra.mxu0 %v478
    %1340 = vmatprep.subr.bf16.mxu0 0
    %1341 = vmatpush1.bf16.msra.mxu0 %v479
    %1342 = vmatprep.subr.bf16.mxu0 0
    %1343 = vmatpush1.bf16.msra.mxu0 %v480
    %1344 = vmatprep.subr.bf16.mxu0 0
    %1345 = vmatpush1.bf16.msra.mxu0 %v481
    %1346 = vmatprep.subr.bf16.mxu0 0
    %1347 = vmatpush1.bf16.msra.mxu0 %v482
    %1348 = vmatprep.subr.bf16.mxu0 0
    %1349 = vmatpush1.bf16.msra.mxu0 %v483
    %1350 = vmatprep.subr.bf16.mxu0 0
    %1351 = vmatpush1.bf16.msra.mxu0 %v484
    %1352 = vmatprep.subr.bf16.mxu0 0
    %1353 = vmatpush1.bf16.msra.mxu0 %v485
    %1354 = vmatprep.subr.bf16.mxu0 0
    %1355 = vmatpush1.bf16.msra.mxu0 0
    %1356 = vmatprep.subr.bf16.mxu0 0
    %1357 = vmatpush1.bf16.msra.mxu0 0
    %1358 = vmatprep.subr.bf16.mxu0 0
    %1359 = vmatpush1.bf16.msra.mxu0 0
    %1360 = vmatprep.subr.bf16.mxu0 0
    %1361 = vmatpush1.bf16.msra.mxu0 0
    %1362 = vmatprep.subr.bf16.mxu0 0
    %1363 = vmatpush1.bf16.msra.mxu0 0
    %1364 = vmatprep.subr.bf16.mxu0 0
    %1365 = vmatpush1.bf16.msra.mxu0 0
    %1366 = vmatprep.subr.bf16.mxu0 0
    %1367 = vmatpush1.bf16.msra.mxu0 0
    %1368 = vmatprep.subr.bf16.mxu0 0
    %1369 = vmatpush1.bf16.msra.mxu0 0
    %1370 = vmatprep.mubr.bf16.mxu0 0
    %1371 = vmatmul.mubr.bf16.gmra.mrb[0].mxu0 %v1295
    %v1372 = vpop.f32.mrb[0].mxu0
    %v1373 = vadd.f32 0.0, %v1372
    %v1374 = vpop.f32.mrb[0].mxu0
    %v1375 = vpop.f32.mrb[0].mxu0
    %v1376 = vpop.f32.mrb[0].mxu0
    %1377 = vdwg.mxu0
    %v1378 = vadd.f32 %v274, %v1373
    %v1379 = vpack.c.bf16 %v1291, %v1291
    %1380 = vmatprep.subr.bf16.mxu0 0
    %1381 = vmatpush1.bf16.msra.mxu0 %v584
    %1382 = vmatprep.subr.bf16.mxu0 0
    %1383 = vmatpush1.bf16.msra.mxu0 %v585
    %1384 = vmatprep.subr.bf16.mxu0 0
    %1385 = vmatpush1.bf16.msra.mxu0 %v586
    %1386 = vmatprep.subr.bf16.mxu0 0
    %1387 = vmatpush1.bf16.msra.mxu0 %v587
    %1388 = vmatprep.subr.bf16.mxu0 0
    %1389 = vmatpush1.bf16.msra.mxu0 %v588
    %1390 = vmatprep.subr.bf16.mxu0 0
    %1391 = vmatpush1.bf16.msra.mxu0 %v589
    %1392 = vmatprep.subr.bf16.mxu0 0
    %1393 = vmatpush1.bf16.msra.mxu0 %v590
    %1394 = vmatprep.subr.bf16.mxu0 0
    %1395 = vmatpush1.bf16.msra.mxu0 %v591
    %1396 = vmatprep.subr.bf16.mxu0 0
    %1397 = vmatpush1.bf16.msra.mxu0 0
    %1398 = vmatprep.subr.bf16.mxu0 0
    %1399 = vmatpush1.bf16.msra.mxu0 0
    %1400 = vmatprep.subr.bf16.mxu0 0
    %1401 = vmatpush1.bf16.msra.mxu0 0
    %1402 = vmatprep.subr.bf16.mxu0 0
    %1403 = vmatpush1.bf16.msra.mxu0 0
    %1404 = vmatprep.subr.bf16.mxu0 0
    %1405 = vmatpush1.bf16.msra.mxu0 0
    %1406 = vmatprep.subr.bf16.mxu0 0
    %1407 = vmatpush1.bf16.msra.mxu0 0
    %1408 = vmatprep.subr.bf16.mxu0 0
    %1409 = vmatpush1.bf16.msra.mxu0 0
    %1410 = vmatprep.subr.bf16.mxu0 0
    %1411 = vmatpush1.bf16.msra.mxu0 0
    %1412 = vmatprep.mubr.bf16.mxu0 0
    %1413 = vmatmul.mubr.bf16.gmra.mrb[0].mxu0 %v1379
    %v1414 = vpop.f32.mrb[0].mxu0
    %v1415 = vadd.f32 0.0, %v1414
    %v1416 = vpop.f32.mrb[0].mxu0
    %v1417 = vpop.f32.mrb[0].mxu0
    %v1418 = vpop.f32.mrb[0].mxu0
    %1419 = vdwg.mxu0
    %v1420 = vadd.f32 %v1378, %v1415
    %v1421 = vtanh.pop %v1420
    %v1422 = vpack.c.bf16 %v1337, %v1337
    %1423 = vmatprep.subr.bf16.mxu0 0
    %1424 = vmatpush1.bf16.msra.mxu0 %v478
    %1425 = vmatprep.subr.bf16.mxu0 0
    %1426 = vmatpush1.bf16.msra.mxu0 %v479
    %1427 = vmatprep.subr.bf16.mxu0 0
    %1428 = vmatpush1.bf16.msra.mxu0 %v480
    %1429 = vmatprep.subr.bf16.mxu0 0
    %1430 = vmatpush1.bf16.msra.mxu0 %v481
    %1431 = vmatprep.subr.bf16.mxu0 0
    %1432 = vmatpush1.bf16.msra.mxu0 %v482
    %1433 = vmatprep.subr.bf16.mxu0 0
    %1434 = vmatpush1.bf16.msra.mxu0 %v483
    %1435 = vmatprep.subr.bf16.mxu0 0
    %1436 = vmatpush1.bf16.msra.mxu0 %v484
    %1437 = vmatprep.subr.bf16.mxu0 0
    %1438 = vmatpush1.bf16.msra.mxu0 %v485
    %1439 = vmatprep.subr.bf16.mxu0 0
    %1440 = vmatpush1.bf16.msra.mxu0 0
    %1441 = vmatprep.subr.bf16.mxu0 0
    %1442 = vmatpush1.bf16.msra.mxu0 0
    %1443 = vmatprep.subr.bf16.mxu0 0
    %1444 = vmatpush1.bf16.msra.mxu0 0
    %1445 = vmatprep.subr.bf16.mxu0 0
    %1446 = vmatpush1.bf16.msra.mxu0 0
    %1447 = vmatprep.subr.bf16.mxu0 0
    %1448 = vmatpush1.bf16.msra.mxu0 0
    %1449 = vmatprep.subr.bf16.mxu0 0
    %1450 = vmatpush1.bf16.msra.mxu0 0
    %1451 = vmatprep.subr.bf16.mxu0 0
    %1452 = vmatpush1.bf16.msra.mxu0 0
    %1453 = vmatprep.subr.bf16.mxu0 0
    %1454 = vmatpush1.bf16.msra.mxu0 0
    %1455 = vmatprep.mubr.bf16.mxu0 0
    %1456 = vmatmul.mubr.bf16.gmra.mrb[0].mxu0 %v1422
    %v1457 = vpop.f32.mrb[0].mxu0
    %v1458 = vadd.f32 0.0, %v1457
    %v1459 = vpop.f32.mrb[0].mxu0
    %v1460 = vpop.f32.mrb[0].mxu0
    %v1461 = vpop.f32.mrb[0].mxu0
    %1462 = vdwg.mxu0
    %v1463 = vadd.f32 %v274, %v1458
    %v1464 = vpack.c.bf16 %v1421, %v1421
    %1465 = vmatprep.subr.bf16.mxu0 0
    %1466 = vmatpush1.bf16.msra.mxu0 %v584
    %1467 = vmatprep.subr.bf16.mxu0 0
    %1468 = vmatpush1.bf16.msra.mxu0 %v585
    %1469 = vmatprep.subr.bf16.mxu0 0
    %1470 = vmatpush1.bf16.msra.mxu0 %v586
    %1471 = vmatprep.subr.bf16.mxu0 0
    %1472 = vmatpush1.bf16.msra.mxu0 %v587
    %1473 = vmatprep.subr.bf16.mxu0 0
    %1474 = vmatpush1.bf16.msra.mxu0 %v588
    %1475 = vmatprep.subr.bf16.mxu0 0
    %1476 = vmatpush1.bf16.msra.mxu0 %v589
    %1477 = vmatprep.subr.bf16.mxu0 0
    %1478 = vmatpush1.bf16.msra.mxu0 %v590
    %1479 = vmatprep.subr.bf16.mxu0 0
    %1480 = vmatpush1.bf16.msra.mxu0 %v591
    %1481 = vmatprep.subr.bf16.mxu0 0
    %1482 = vmatpush1.bf16.msra.mxu0 0
    %1483 = vmatprep.subr.bf16.mxu0 0
    %1484 = vmatpush1.bf16.msra.mxu0 0
    %1485 = vmatprep.subr.bf16.mxu0 0
    %1486 = vmatpush1.bf16.msra.mxu0 0
    %1487 = vmatprep.subr.bf16.mxu0 0
    %1488 = vmatpush1.bf16.msra.mxu0 0
    %1489 = vmatprep.subr.bf16.mxu0 0
    %1490 = vmatpush1.bf16.msra.mxu0 0
    %1491 = vmatprep.subr.bf16.mxu0 0
    %1492 = vmatpush1.bf16.msra.mxu0 0
    %1493 = vmatprep.subr.bf16.mxu0 0
    %1494 = vmatpush1.bf16.msra.mxu0 0
    %1495 = vmatprep.subr.bf16.mxu0 0
    %1496 = vmatpush1.bf16.msra.mxu0 0
    %1497 = vmatprep.mubr.bf16.mxu0 0
    %1498 = vmatmul.mubr.bf16.gmra.mrb[0].mxu0 %v1464
    %v1499 = vpop.f32.mrb[0].mxu0
    %v1500 = vadd.f32 0.0, %v1499
    %v1501 = vpop.f32.mrb[0].mxu0
    %v1502 = vpop.f32.mrb[0].mxu0
    %v1503 = vpop.f32.mrb[0].mxu0
    %1504 = vdwg.mxu0
    %v1505 = vadd.f32 %v1463, %v1500
    %v1506 = vtanh.pop %v1505
    %v1507 = vmax.f32 %v1506, 0.0
    %v1508 = vpack.c.bf16 %v1507, %v1507
    %v1509 = vld [vmem:[#allocation11] sm:$0xf]
    %v1510 = vld [vmem:[#allocation11 + $0x4] sm:$0xf]
    %v1511 = vld [vmem:[#allocation11 + $0x8] sm:$0xf]
    %v1512 = vld [vmem:[#allocation11 + $0xc] sm:$0xf]
    %v1513 = vld [vmem:[#allocation11 + $0x10] sm:$0xf]
    %v1514 = vld [vmem:[#allocation11 + $0x14] sm:$0xf]
    %v1515 = vld [vmem:[#allocation11 + $0x18] sm:$0xf]
    %v1516 = vld [vmem:[#allocation11 + $0x1c] sm:$0xf]
    %v1517 = vld [vmem:[#allocation11 + $0x20] sm:$0xf]
    %v1518 = vld [vmem:[#allocation11 + $0x24] sm:$0xf]
    %v1519 = vld [vmem:[#allocation11 + $0x28] sm:$0xf]
    %v1520 = vld [vmem:[#allocation11 + $0x2c] sm:$0xf]
    %v1521 = vld [vmem:[#allocation11 + $0x30] sm:$0xf]
    %v1522 = vld [vmem:[#allocation11 + $0x34] sm:$0xf]
    %v1523 = vld [vmem:[#allocation11 + $0x38] sm:$0xf]
    %v1524 = vld [vmem:[#allocation11 + $0x3c] sm:$0xf]
    %v1525 = vld [vmem:[%s7] sm:$0x1]
    %v1527 = vlaneseq
    %v1528 = vshrl.u32 %v1527, 7
    %v1529 = vsub.s32 0, %v1528
    %v1530 = vrot.slane %v1525, %v1529
    %v1548 = vunpack.c.l.b16 %v1509
    %v1549 = vunpack.c.l.b16 %v1510
    %v1550 = vunpack.c.l.b16 %v1511
    %v1551 = vunpack.c.l.b16 %v1512
    %v1552 = vunpack.c.l.b16 %v1513
    %v1553 = vunpack.c.l.b16 %v1514
    %v1554 = vunpack.c.l.b16 %v1515
    %v1555 = vunpack.c.l.b16 %v1516
    %v1556 = vunpack.c.l.b16 %v1517
    %v1557 = vunpack.c.l.b16 %v1518
    %v1558 = vunpack.c.l.b16 %v1519
    %v1559 = vunpack.c.l.b16 %v1520
    %v1560 = vunpack.c.l.b16 %v1521
    %v1561 = vunpack.c.l.b16 %v1522
    %v1562 = vunpack.c.l.b16 %v1523
    %v1563 = vunpack.c.l.b16 %v1524
    %v1564 = vpack.c.b16 %v1549, %v1548
    %v1565 = vpack.c.b16 %v1551, %v1550
    %v1566 = vpack.c.b16 %v1553, %v1552
    %v1567 = vpack.c.b16 %v1555, %v1554
    %v1568 = vpack.c.b16 %v1557, %v1556
    %v1569 = vpack.c.b16 %v1559, %v1558
    %v1570 = vpack.c.b16 %v1561, %v1560
    %v1571 = vpack.c.b16 %v1563, %v1562
    %1580 = vmatprep.subr.bf16.mxu0 0
    %1581 = vmatpush1.bf16.msra.mxu0 %v1564
    %1582 = vmatprep.subr.bf16.mxu0 0
    %1583 = vmatpush1.bf16.msra.mxu0 %v1565
    %1584 = vmatprep.subr.bf16.mxu0 0
    %1585 = vmatpush1.bf16.msra.mxu0 %v1566
    %1586 = vmatprep.subr.bf16.mxu0 0
    %1587 = vmatpush1.bf16.msra.mxu0 %v1567
    %1588 = vmatprep.subr.bf16.mxu0 0
    %1589 = vmatpush1.bf16.msra.mxu0 %v1568
    %1590 = vmatprep.subr.bf16.mxu0 0
    %1591 = vmatpush1.bf16.msra.mxu0 %v1569
    %1592 = vmatprep.subr.bf16.mxu0 0
    %1593 = vmatpush1.bf16.msra.mxu0 %v1570
    %1594 = vmatprep.subr.bf16.mxu0 0
    %1595 = vmatpush1.bf16.msra.mxu0 %v1571
    %1596 = vmatprep.subr.bf16.mxu0 0
    %1597 = vmatpush1.bf16.msra.mxu0 0
    %1598 = vmatprep.subr.bf16.mxu0 0
    %1599 = vmatpush1.bf16.msra.mxu0 0
    %1600 = vmatprep.subr.bf16.mxu0 0
    %1601 = vmatpush1.bf16.msra.mxu0 0
    %1602 = vmatprep.subr.bf16.mxu0 0
    %1603 = vmatpush1.bf16.msra.mxu0 0
    %1604 = vmatprep.subr.bf16.mxu0 0
    %1605 = vmatpush1.bf16.msra.mxu0 0
    %1606 = vmatprep.subr.bf16.mxu0 0
    %1607 = vmatpush1.bf16.msra.mxu0 0
    %1608 = vmatprep.subr.bf16.mxu0 0
    %1609 = vmatpush1.bf16.msra.mxu0 0
    %1610 = vmatprep.subr.bf16.mxu0 0
    %1611 = vmatpush1.bf16.msra.mxu0 0
    %1612 = vmatprep.mubr.bf16.mxu0 0
    %1613 = vmatmul.mubr.bf16.gmra.mrb[0].mxu0 %v1508
    %v1614 = vpop.f32.mrb[0].mxu0
    %v1615 = vadd.f32 %v1530, %v1614
    %v1616 = vpop.f32.mrb[0].mxu0
    %v1617 = vpop.f32.mrb[0].mxu0
    %v1618 = vpop.f32.mrb[0].mxu0
    %1619 = vdwg.mxu0
    %1620 = vst [vmem:[#allocation12] sm:$0xff] %v1615
    // Predicated region
    $region54: #{tpu_custom_call.1} parent=1 // pred_check
      _
    $region55: #{tpu_custom_call.1} parent=1 // pred_check_branch
      %1622 = sbr.rel (0) target = $region57
    $region56: #{tpu_custom_call.1} parent=1 // pred_region
      %s1624 = ssub.s32 128, 128
      %1625 = vsyncadd [#allocation5], %s1624
      %s1627 = sshll.u32 [#allocation12], 4
      %s1628 = int_to_ptr.vmem [resolvable:$true] %s1627
      %1630 = dma.vmem_to_hbm [thread:$0]  %s1628, 128, %s8, [#allocation5]
    $region57: #{tpu_custom_call.1} parent=1 // pred_fallthru
      _
    // Predicated region
    $region58: #{tpu_custom_call.1} parent=1 // pred_check
      _
    $region59: #{tpu_custom_call.1} parent=1 // pred_check_branch
      %1632 = sbr.rel (0) target = $region61
    $region60: #{tpu_custom_call.1} parent=1 // pred_region
      %1633 = dma.done [#allocation5], 128
    $region61: #{tpu_custom_call.1} parent=1 // pred_fallthru
      _
    %1634 = vsyncpa [#allocation4], 1
    %1635 = vsyncpa [#allocation7], 1
    %1636 = vsyncpa [#allocation10], 1
    %1637 = vsyncpa [#allocation5], 1

// kernel: tpu_custom_call.1
$region0: #{tpu_custom_call.1}
  #allocation0 [shape = 'u32[]', space=smem, size = 0x4, offset = 0x4, fixed_abs, tag = 'smem constant byte address 0x4 - core index']
  #allocation1 [shape = 'u32[144,128]{1,0:T(1,128)}', space=vmem, size = 0x12000, scoped, tag = 'internal scratch']
  #allocation2 [shape = 'bf16[8,8,128]{2,1,0:T(8,128)(2,1)}', space=vmem, size = 0x4000, scoped, tag = 'scratch operand']
  %s0 = inlined_call_operand.hbm [shape: f32[8,8,128], index: 0, kind: input, shape index: {}]
  %s1 = inlined_call_operand.hbm [shape: bf16[128,128], index: 1, kind: input, shape index: {}]
  %s2 = inlined_call_operand.hbm [shape: bf16[1,128,128], index: 2, kind: input, shape index: {}]
  %s3 = inlined_call_operand.hbm [shape: bf16[2,128,128], index: 3, kind: input, shape index: {}]
  %s4 = inlined_call_operand.vmem [shape: f32[2,1,128], index: 4, kind: input, shape index: {}]
  %s5 = inlined_call_operand.vmem [shape: f32[2,1,128], index: 5, kind: input, shape index: {}]
  %s6 = inlined_call_operand.hbm [shape: bf16[128,128], index: 6, kind: input, shape index: {}]
  %s7 = inlined_call_operand.vmem [shape: f32[1,128], index: 7, kind: input, shape index: {}]
  %s8 = inlined_call_operand.hbm [shape: f32[8,128], index: 8, kind: output, shape index: {}]
  %s9 = sld [smem:[#allocation0]]
  $region62: #{tpu_custom_call.1} parent=0
    _
  %s11 = ssub.s32 1, %s9
  %s12 = scalar_select 0, %s11, %s9
  $region1: #{tpu_custom_call.1} parent=0
    #allocation3 [shape = 'u8[32768]{0}', space=vmem, size = 0x8000, scoped, tag = 'input window, operand 0, single buffered']
    #allocation4 [shape = 's32[1]{0}', space=sflag, size = 0x4, scoped, tag = 'scoped memory for tpu_custom_call.1']
    #allocation5 [shape = 's32[1]{0}', space=sflag, size = 0x4, scoped, tag = 'scoped memory for tpu_custom_call.1']
    #allocation6 [shape = 'u8[32768]{0}', space=vmem, size = 0x8000, scoped, tag = 'input window, operand 1, single buffered']
    #allocation7 [shape = 's32[1]{0}', space=sflag, size = 0x4, scoped, tag = 'scoped memory for tpu_custom_call.1']
    #allocation8 [shape = 'u8[32768]{0}', space=vmem, size = 0x8000, scoped, tag = 'input window, operand 2, single buffered']
    #allocation9 [shape = 'u8[65536]{0}', space=vmem, size = 0x10000, scoped, tag = 'input window, operand 3, single buffered']
    #allocation10 [shape = 's32[1]{0}', space=sflag, size = 0x4, scoped, tag = 'scoped memory for tpu_custom_call.1']
    #allocation11 [shape = 'u8[32768]{0}', space=vmem, size = 0x8000, scoped, tag = 'input window, operand 6, single buffered']
    #allocation12 [shape = 'u8[4096]{0}', space=vmem, size = 0x1000, scoped, tag = 'output window, operand 0, single buffered']
    %13 = vsyncpa [#allocation4], 0
    %14 = vsyncpa [#allocation7], 0
    %15 = vsyncpa [#allocation10], 0
    %16 = vsyncpa [#allocation5], 0
    // Predicated region
    $region2: #{tpu_custom_call.1} parent=1 // pred_check
      _
    $region3: #{tpu_custom_call.1} parent=1 // pred_check_branch
      %18 = sbr.rel (0) target = $region5
    $region4: #{tpu_custom_call.1} parent=1 // pred_region
      %s20 = ssub.s32 1024, 1024
      %21 = vsyncadd [#allocation4], %s20
      %s22 = sshll.u32 [#allocation3], 4
      %s23 = int_to_ptr.vmem [resolvable:$true] %s22
      %28 = dma.hbm_to_vmem [thread:$0]  %s0, 1024, %s23, [#allocation4], 128, 128, 8
    $region5: #{tpu_custom_call.1} parent=1 // pred_fallthru
      _
    // Predicated region
    $region6: #{tpu_custom_call.1} parent=1 // pred_check
      _
    $region7: #{tpu_custom_call.1} parent=1 // pred_check_branch
      %30 = sbr.rel (0) target = $region9
    $region8: #{tpu_custom_call.1} parent=1 // pred_region
      %s32 = ssub.s32 1024, 1024
      %33 = vsyncadd [#allocation7], %s32
      %s34 = sshll.u32 [#allocation6], 4
      %s35 = int_to_ptr.vmem [resolvable:$true] %s34
      %40 = dma.hbm_to_vmem [thread:$0]  %s1, 1024, %s35, [#allocation7], 64, 64, 4
    $region9: #{tpu_custom_call.1} parent=1 // pred_fallthru
      _
    // Predicated region
    $region10: #{tpu_custom_call.1} parent=1 // pred_check
      _
    $region11: #{tpu_custom_call.1} parent=1 // pred_check_branch
      %42 = sbr.rel (0) target = $region13
    $region12: #{tpu_custom_call.1} parent=1 // pred_region
      %s44 = ssub.s32 1024, 1024
      %45 = vsyncadd [#allocation7], %s44
      %s46 = sshll.u32 [#allocation8], 4
      %s47 = int_to_ptr.vmem [resolvable:$true] %s46
      %52 = dma.hbm_to_vmem [thread:$0]  %s2, 1024, %s47, [#allocation7], 64, 64, 4
    $region13: #{tpu_custom_call.1} parent=1 // pred_fallthru
      _
    // Predicated region
    $region14: #{tpu_custom_call.1} parent=1 // pred_check
      _
    $region15: #{tpu_custom_call.1} parent=1 // pred_check_branch
      %54 = sbr.rel (0) target = $region17
    $region16: #{tpu_custom_call.1} parent=1 // pred_region
      %s56 = ssub.s32 2048, 2048
      %57 = vsyncadd [#allocation10], %s56
      %s58 = sshll.u32 [#allocation9], 4
      %s59 = int_to_ptr.vmem [resolvable:$true] %s58
      %64 = dma.hbm_to_vmem [thread:$0]  %s3, 2048, %s59, [#allocation10], 64, 64, 4
    $region17: #{tpu_custom_call.1} parent=1 // pred_fallthru
      _
    // Predicated region
    $region18: #{tpu_custom_call.1} parent=1 // pred_check
      _
    $region19: #{tpu_custom_call.1} parent=1 // pred_check_branch
      %66 = sbr.rel (0) target = $region21
    $region20: #{tpu_custom_call.1} parent=1 // pred_region
      _
    $region21: #{tpu_custom_call.1} parent=1 // pred_fallthru
      _
    // Predicated region
    $region22: #{tpu_custom_call.1} parent=1 // pred_check
      _
    $region23: #{tpu_custom_call.1} parent=1 // pred_check_branch
      %68 = sbr.rel (0) target = $region25
    $region24: #{tpu_custom_call.1} parent=1 // pred_region
      _
    $region25: #{tpu_custom_call.1} parent=1 // pred_fallthru
      _
    // Predicated region
    $region26: #{tpu_custom_call.1} parent=1 // pred_check
      _
    $region27: #{tpu_custom_call.1} parent=1 // pred_check_branch
      %70 = sbr.rel (0) target = $region29
    $region28: #{tpu_custom_call.1} parent=1 // pred_region
      %s72 = ssub.s32 1024, 1024
      %73 = vsyncadd [#allocation10], %s72
      %s74 = sshll.u32 [#allocation11], 4
      %s75 = int_to_ptr.vmem [resolvable:$true] %s74
      %80 = dma.hbm_to_vmem [thread:$0]  %s6, 1024, %s75, [#allocation10], 64, 64, 4
    $region29: #{tpu_custom_call.1} parent=1 // pred_fallthru
      _
    // Predicated region
    $region30: #{tpu_custom_call.1} parent=1 // pred_check
      _
    $region31: #{tpu_custom_call.1} parent=1 // pred_check_branch
      %82 = sbr.rel (0) target = $region33
    $region32: #{tpu_custom_call.1} parent=1 // pred_region
      _
    $region33: #{tpu_custom_call.1} parent=1 // pred_fallthru
      _
    // Predicated region
    $region34: #{tpu_custom_call.1} parent=1 // pred_check
      _
    $region35: #{tpu_custom_call.1} parent=1 // pred_check_branch
      %84 = sbr.rel (0) target = $region37
    $region36: #{tpu_custom_call.1} parent=1 // pred_region
      %85 = dma.done [#allocation4], 1024
    $region37: #{tpu_custom_call.1} parent=1 // pred_fallthru
      _
    // Predicated region
    $region38: #{tpu_custom_call.1} parent=1 // pred_check
      _
    $region39: #{tpu_custom_call.1} parent=1 // pred_check_branch
      %87 = sbr.rel (0) target = $region41
    $region40: #{tpu_custom_call.1} parent=1 // pred_region
      %88 = dma.done [#allocation7], 1024
    $region41: #{tpu_custom_call.1} parent=1 // pred_fallthru
      _
    // Predicated region
    $region42: #{tpu_custom_call.1} parent=1 // pred_check
      _
    $region43: #{tpu_custom_call.1} parent=1 // pred_check_branch
      %90 = sbr.rel (0) target = $region45
    $region44: #{tpu_custom_call.1} parent=1 // pred_region
      %91 = dma.done [#allocation7], 1024
    $region45: #{tpu_custom_call.1} parent=1 // pred_fallthru
      _
    // Predicated region
    $region46: #{tpu_custom_call.1} parent=1 // pred_check
      _
    $region47: #{tpu_custom_call.1} parent=1 // pred_check_branch
      %93 = sbr.rel (0) target = $region49
    $region48: #{tpu_custom_call.1} parent=1 // pred_region
      %94 = dma.done [#allocation10], 2048
    $region49: #{tpu_custom_call.1} parent=1 // pred_fallthru
      _
    // Predicated region
    $region50: #{tpu_custom_call.1} parent=1 // pred_check
      _
    $region51: #{tpu_custom_call.1} parent=1 // pred_check_branch
      %96 = sbr.rel (0) target = $region53
    $region52: #{tpu_custom_call.1} parent=1 // pred_region
      %97 = dma.done [#allocation10], 1024
    $region53: #{tpu_custom_call.1} parent=1 // pred_fallthru
      _
    %v99 = vld [vmem:[%s4] sm:$0x1]
    %v100 = vld [vmem:[%s5] sm:$0x1]
    %v101 = vadd.f32 %v99, %v100
    %v102 = vld [vmem:[#allocation3] sm:$0xff]
    %v103 = vld [vmem:[#allocation3 + $0x8] sm:$0xff]
    %v104 = vld [vmem:[#allocation3 + $0x10] sm:$0xff]
    %v105 = vld [vmem:[#allocation3 + $0x18] sm:$0xff]
    %v106 = vld [vmem:[#allocation3 + $0x20] sm:$0xff]
    %v107 = vld [vmem:[#allocation3 + $0x28] sm:$0xff]
    %v108 = vld [vmem:[#allocation3 + $0x30] sm:$0xff]
    %v109 = vld [vmem:[#allocation3 + $0x38] sm:$0xff]
    %v110 = vpack.c.bf16 %v103, %v102
    %v111 = vpack.c.bf16 %v105, %v104
    %v112 = vpack.c.bf16 %v107, %v106
    %v113 = vpack.c.bf16 %v109, %v108
    %v114 = vld [vmem:[#allocation6] sm:$0xf]
    %v115 = vld [vmem:[#allocation6 + $0x4] sm:$0xf]
    %v116 = vld [vmem:[#allocation6 + $0x8] sm:$0xf]
    %v117 = vld [vmem:[#allocation6 + $0xc] sm:$0xf]
    %v118 = vld [vmem:[#allocation6 + $0x10] sm:$0xf]
    %v119 = vld [vmem:[#allocation6 + $0x14] sm:$0xf]
    %v120 = vld [vmem:[#allocation6 + $0x18] sm:$0xf]
    %v121 = vld [vmem:[#allocation6 + $0x1c] sm:$0xf]
    %v122 = vld [vmem:[#allocation6 + $0x20] sm:$0xf]
    %v123 = vld [vmem:[#allocation6 + $0x24] sm:$0xf]
    %v124 = vld [vmem:[#allocation6 + $0x28] sm:$0xf]
    %v125 = vld [vmem:[#allocation6 + $0x2c] sm:$0xf]
    %v126 = vld [vmem:[#allocation6 + $0x30] sm:$0xf]
    %v127 = vld [vmem:[#allocation6 + $0x34] sm:$0xf]
    %v128 = vld [vmem:[#allocation6 + $0x38] sm:$0xf]
    %v129 = vld [vmem:[#allocation6 + $0x3c] sm:$0xf]
    %v131 = vlaneseq
    %v132 = vshrl.u32 %v131, 7
    %v133 = vsub.s32 0, %v132
    %v134 = vrot.slane %v101, %v133
    %v152 = vunpack.c.l.b16 %v114
    %v153 = vunpack.c.l.b16 %v115
    %v154 = vunpack.c.l.b16 %v116
    %v155 = vunpack.c.l.b16 %v117
    %v156 = vunpack.c.l.b16 %v118
    %v157 = vunpack.c.l.b16 %v119
    %v158 = vunpack.c.l.b16 %v120
    %v159 = vunpack.c.l.b16 %v121
    %v160 = vunpack.c.l.b16 %v122
    %v161 = vunpack.c.l.b16 %v123
    %v162 = vunpack.c.l.b16 %v124
    %v163 = vunpack.c.l.b16 %v125
    %v164 = vunpack.c.l.b16 %v126
    %v165 = vunpack.c.l.b16 %v127
    %v166 = vunpack.c.l.b16 %v128
    %v167 = vunpack.c.l.b16 %v129
    %v168 = vpack.c.b16 %v153, %v152
    %v169 = vpack.c.b16 %v155, %v154
    %v170 = vpack.c.b16 %v157, %v156
    %v171 = vpack.c.b16 %v159, %v158
    %v172 = vpack.c.b16 %v161, %v160
    %v173 = vpack.c.b16 %v163, %v162
    %v174 = vpack.c.b16 %v165, %v164
    %v175 = vpack.c.b16 %v167, %v166
    %184 = vmatprep.subr.bf16.mxu0 0
    %185 = vmatpush1.bf16.msra.mxu0 %v168
    %186 = vmatprep.subr.bf16.mxu0 0
    %187 = vmatpush1.bf16.msra.mxu0 %v169
    %188 = vmatprep.subr.bf16.mxu0 0
    %189 = vmatpush1.bf16.msra.mxu0 %v170
    %190 = vmatprep.subr.bf16.mxu0 0
    %191 = vmatpush1.bf16.msra.mxu0 %v171
    %192 = vmatprep.subr.bf16.mxu0 0
    %193 = vmatpush1.bf16.msra.mxu0 %v172
    %194 = vmatprep.subr.bf16.mxu0 0
    %195 = vmatpush1.bf16.msra.mxu0 %v173
    %196 = vmatprep.subr.bf16.mxu0 0
    %197 = vmatpush1.bf16.msra.mxu0 %v174
    %198 = vmatprep.subr.bf16.mxu0 0
    %199 = vmatpush1.bf16.msra.mxu0 %v175
    %200 = vmatprep.subr.bf16.mxu0 0
    %201 = vmatpush1.bf16.msra.mxu0 0
    %202 = vmatprep.subr.bf16.mxu0 0
    %203 = vmatpush1.bf16.msra.mxu0 0
    %204 = vmatprep.subr.bf16.mxu0 0
    %205 = vmatpush1.bf16.msra.mxu0 0
    %206 = vmatprep.subr.bf16.mxu0 0
    %207 = vmatpush1.bf16.msra.mxu0 0
    %208 = vmatprep.subr.bf16.mxu0 0
    %209 = vmatpush1.bf16.msra.mxu0 0
    %210 = vmatprep.subr.bf16.mxu0 0
    %211 = vmatpush1.bf16.msra.mxu0 0
    %212 = vmatprep.subr.bf16.mxu0 0
    %213 = vmatpush1.bf16.msra.mxu0 0
    %214 = vmatprep.subr.bf16.mxu0 0
    %215 = vmatpush1.bf16.msra.mxu0 0
    %216 = vmatprep.mubr.bf16.mxu0 0
    %217 = vmatmul.mubr.bf16.gmra.mrb[0].mxu0 %v110
    %v218 = vpop.f32.mrb[0].mxu0
    %v219 = vadd.f32 %v134, %v218
    %v220 = vpop.f32.mrb[0].mxu0
    %v221 = vpop.f32.mrb[0].mxu0
    %v222 = vadd.f32 %v134, %v221
    %v223 = vpop.f32.mrb[0].mxu0
    %224 = vmatprep.mubr.bf16.mxu0 0
    %225 = vmatmul.mubr.bf16.gmra.mrb[0].mxu0 %v111
    %v226 = vpop.f32.mrb[0].mxu0
    %v227 = vadd.f32 %v134, %v226
    %v228 = vpop.f32.mrb[0].mxu0
    %v229 = vpop.f32.mrb[0].mxu0
    %v230 = vadd.f32 %v134, %v229
    %v231 = vpop.f32.mrb[0].mxu0
    %232 = vmatprep.mubr.bf16.mxu0 0
    %233 = vmatmul.mubr.bf16.gmra.mrb[0].mxu0 %v112
    %v234 = vpop.f32.mrb[0].mxu0
    %v235 = vadd.f32 %v134, %v234
    %v236 = vpop.f32.mrb[0].mxu0
    %v237 = vpop.f32.mrb[0].mxu0
    %v238 = vadd.f32 %v134, %v237
    %v239 = vpop.f32.mrb[0].mxu0
    %240 = vmatprep.mubr.bf16.mxu0 0
    %241 = vmatmul.mubr.bf16.gmra.mrb[0].mxu0 %v113
    %v242 = vpop.f32.mrb[0].mxu0
    %v243 = vadd.f32 %v134, %v242
    %v244 = vpop.f32.mrb[0].mxu0
    %v245 = vpop.f32.mrb[0].mxu0
    %v246 = vadd.f32 %v134, %v245
    %v247 = vpop.f32.mrb[0].mxu0
    %248 = vdwg.mxu0
    %v249 = vpack.c.bf16 %v219, %v219
    %v250 = vpack.c.bf16 %v222, %v222
    %v251 = vpack.c.bf16 %v227, %v227
    %v252 = vpack.c.bf16 %v230, %v230
    %v253 = vpack.c.bf16 %v235, %v235
    %v254 = vpack.c.bf16 %v238, %v238
    %v255 = vpack.c.bf16 %v243, %v243
    %v256 = vpack.c.bf16 %v246, %v246
    %257 = vst [vmem:[#allocation2] sm:$0xf] %v249
    %258 = vst [vmem:[#allocation2 + $0x4] sm:$0xf] %v250
    %259 = vst [vmem:[#allocation2 + $0x8] sm:$0xf] %v251
    %260 = vst [vmem:[#allocation2 + $0xc] sm:$0xf] %v252
    %261 = vst [vmem:[#allocation2 + $0x10] sm:$0xf] %v253
    %262 = vst [vmem:[#allocation2 + $0x14] sm:$0xf] %v254
    %263 = vst [vmem:[#allocation2 + $0x18] sm:$0xf] %v255
    %264 = vst [vmem:[#allocation2 + $0x1c] sm:$0xf] %v256
    %s265 = scalar_lea.vmem %s4, 1
    %v266 = vld [vmem:[%s265] sm:$0x1]
    %s267 = scalar_lea.vmem %s5, 1
    %v268 = vld [vmem:[%s267] sm:$0x1]
    %v269 = vadd.f32 %v266, %v268
    %v271 = vlaneseq
    %v272 = vshrl.u32 %v271, 7
    %v273 = vsub.s32 0, %v272
    %v274 = vrot.slane %v269, %v273
    %v276 = vld [vmem:[#allocation2] sm:$0xf]
    %v277 = vunpack.c.l.bf16 %v276
    %v278 = vld [vmem:[#allocation9] sm:$0xf]
    %v279 = vld [vmem:[#allocation9 + $0x4] sm:$0xf]
    %v280 = vld [vmem:[#allocation9 + $0x8] sm:$0xf]
    %v281 = vld [vmem:[#allocation9 + $0xc] sm:$0xf]
    %v282 = vld [vmem:[#allocation9 + $0x10] sm:$0xf]
    %v283 = vld [vmem:[#allocation9 + $0x14] sm:$0xf]
    %v284 = vld [vmem:[#allocation9 + $0x18] sm:$0xf]
    %v285 = vld [vmem:[#allocation9 + $0x1c] sm:$0xf]
    %v286 = vld [vmem:[#allocation9 + $0x20] sm:$0xf]
    %v287 = vld [vmem:[#allocation9 + $0x24] sm:$0xf]
    %v288 = vld [vmem:[#allocation9 + $0x28] sm:$0xf]
    %v289 = vld [vmem:[#allocation9 + $0x2c] sm:$0xf]
    %v290 = vld [vmem:[#allocation9 + $0x30] sm:$0xf]
    %v291 = vld [vmem:[#allocation9 + $0x34] sm:$0xf]
    %v292 = vld [vmem:[#allocation9 + $0x38] sm:$0xf]
    %v293 = vld [vmem:[#allocation9 + $0x3c] sm:$0xf]
    %v310 = vunpack.c.l.b16 %v278
    %v311 = vunpack.c.l.b16 %v279
    %v312 = vunpack.c.l.b16 %v280
    %v313 = vunpack.c.l.b16 %v281
    %v314 = vunpack.c.l.b16 %v282
    %v315 = vunpack.c.l.b16 %v283
    %v316 = vunpack.c.l.b16 %v284
    %v317 = vunpack.c.l.b16 %v285
    %v318 = vunpack.c.l.b16 %v286
    %v319 = vunpack.c.l.b16 %v287
    %v320 = vunpack.c.l.b16 %v288
    %v321 = vunpack.c.l.b16 %v289
    %v322 = vunpack.c.l.b16 %v290
    %v323 = vunpack.c.l.b16 %v291
    %v324 = vunpack.c.l.b16 %v292
    %v325 = vunpack.c.l.b16 %v293
    %v326 = vpack.c.b16 %v311, %v310
    %v327 = vpack.c.b16 %v313, %v312
    %v328 = vpack.c.b16 %v315, %v314
    %v329 = vpack.c.b16 %v317, %v316
    %v330 = vpack.c.b16 %v319, %v318
    %v331 = vpack.c.b16 %v321, %v320
    %v332 = vpack.c.b16 %v323, %v322
    %v333 = vpack.c.b16 %v325, %v324
    %342 = vmatprep.subr.bf16.mxu0 0
    %343 = vmatpush1.bf16.msra.mxu0 %v326
    %344 = vmatprep.subr.bf16.mxu0 0
    %345 = vmatpush1.bf16.msra.mxu0 %v327
    %346 = vmatprep.subr.bf16.mxu0 0
    %347 = vmatpush1.bf16.msra.mxu0 %v328
    %348 = vmatprep.subr.bf16.mxu0 0
    %349 = vmatpush1.bf16.msra.mxu0 %v329
    %350 = vmatprep.subr.bf16.mxu0 0
    %351 = vmatpush1.bf16.msra.mxu0 %v330
    %352 = vmatprep.subr.bf16.mxu0 0
    %353 = vmatpush1.bf16.msra.mxu0 %v331
    %354 = vmatprep.subr.bf16.mxu0 0
    %355 = vmatpush1.bf16.msra.mxu0 %v332
    %356 = vmatprep.subr.bf16.mxu0 0
    %357 = vmatpush1.bf16.msra.mxu0 %v333
    %358 = vmatprep.subr.bf16.mxu0 0
    %359 = vmatpush1.bf16.msra.mxu0 0
    %360 = vmatprep.subr.bf16.mxu0 0
    %361 = vmatpush1.bf16.msra.mxu0 0
    %362 = vmatprep.subr.bf16.mxu0 0
    %363 = vmatpush1.bf16.msra.mxu0 0
    %364 = vmatprep.subr.bf16.mxu0 0
    %365 = vmatpush1.bf16.msra.mxu0 0
    %366 = vmatprep.subr.bf16.mxu0 0
    %367 = vmatpush1.bf16.msra.mxu0 0
    %368 = vmatprep.subr.bf16.mxu0 0
    %369 = vmatpush1.bf16.msra.mxu0 0
    %370 = vmatprep.subr.bf16.mxu0 0
    %371 = vmatpush1.bf16.msra.mxu0 0
    %372 = vmatprep.subr.bf16.mxu0 0
    %373 = vmatpush1.bf16.msra.mxu0 0
    %374 = vmatprep.mubr.bf16.mxu0 0
    %375 = vmatmul.mubr.bf16.gmra.mrb[0].mxu0 0
    %v376 = vpop.f32.mrb[0].mxu0
    %v377 = vadd.f32 0.0, %v376
    %v378 = vpop.f32.mrb[0].mxu0
    %v379 = vpop.f32.mrb[0].mxu0
    %v380 = vpop.f32.mrb[0].mxu0
    %381 = vdwg.mxu0
    %v382 = vadd.f32 %v277, %v377
    %v383 = vtanh.pop %v382
    %s384 = scalar_lea.vmem [#allocation2], 4
    %v385 = vld [vmem:[%s384] sm:$0xf]
    %v386 = vunpack.c.l.bf16 %v385
    %v387 = vpack.c.bf16 %v383, %v383
    %388 = vmatprep.subr.bf16.mxu0 0
    %389 = vmatpush1.bf16.msra.mxu0 %v326
    %390 = vmatprep.subr.bf16.mxu0 0
    %391 = vmatpush1.bf16.msra.mxu0 %v327
    %392 = vmatprep.subr.bf16.mxu0 0
    %393 = vmatpush1.bf16.msra.mxu0 %v328
    %394 = vmatprep.subr.bf16.mxu0 0
    %395 = vmatpush1.bf16.msra.mxu0 %v329
    %396 = vmatprep.subr.bf16.mxu0 0
    %397 = vmatpush1.bf16.msra.mxu0 %v330
    %398 = vmatprep.subr.bf16.mxu0 0
    %399 = vmatpush1.bf16.msra.mxu0 %v331
    %400 = vmatprep.subr.bf16.mxu0 0
    %401 = vmatpush1.bf16.msra.mxu0 %v332
    %402 = vmatprep.subr.bf16.mxu0 0
    %403 = vmatpush1.bf16.msra.mxu0 %v333
    %404 = vmatprep.subr.bf16.mxu0 0
    %405 = vmatpush1.bf16.msra.mxu0 0
    %406 = vmatprep.subr.bf16.mxu0 0
    %407 = vmatpush1.bf16.msra.mxu0 0
    %408 = vmatprep.subr.bf16.mxu0 0
    %409 = vmatpush1.bf16.msra.mxu0 0
    %410 = vmatprep.subr.bf16.mxu0 0
    %411 = vmatpush1.bf16.msra.mxu0 0
    %412 = vmatprep.subr.bf16.mxu0 0
    %413 = vmatpush1.bf16.msra.mxu0 0
    %414 = vmatprep.subr.bf16.mxu0 0
    %415 = vmatpush1.bf16.msra.mxu0 0
    %416 = vmatprep.subr.bf16.mxu0 0
    %417 = vmatpush1.bf16.msra.mxu0 0
    %418 = vmatprep.subr.bf16.mxu0 0
    %419 = vmatpush1.bf16.msra.mxu0 0
    %420 = vmatprep.mubr.bf16.mxu0 0
    %421 = vmatmul.mubr.bf16.gmra.mrb[0].mxu0 %v387
    %v422 = vpop.f32.mrb[0].mxu0
    %v423 = vadd.f32 0.0, %v422
    %v424 = vpop.f32.mrb[0].mxu0
    %v425 = vpop.f32.mrb[0].mxu0
    %v426 = vpop.f32.mrb[0].mxu0
    %427 = vdwg.mxu0
    %v428 = vadd.f32 %v386, %v423
    %v429 = vtanh.pop %v428
    %v430 = vld [vmem:[#allocation8] sm:$0xf]
    %v431 = vld [vmem:[#allocation8 + $0x4] sm:$0xf]
    %v432 = vld [vmem:[#allocation8 + $0x8] sm:$0xf]
    %v433 = vld [vmem:[#allocation8 + $0xc] sm:$0xf]
    %v434 = vld [vmem:[#allocation8 + $0x10] sm:$0xf]
    %v435 = vld [vmem:[#allocation8 + $0x14] sm:$0xf]
    %v436 = vld [vmem:[#allocation8 + $0x18] sm:$0xf]
    %v437 = vld [vmem:[#allocation8 + $0x1c] sm:$0xf]
    %v438 = vld [vmem:[#allocation8 + $0x20] sm:$0xf]
    %v439 = vld [vmem:[#allocation8 + $0x24] sm:$0xf]
    %v440 = vld [vmem:[#allocation8 + $0x28] sm:$0xf]
    %v441 = vld [vmem:[#allocation8 + $0x2c] sm:$0xf]
    %v442 = vld [vmem:[#allocation8 + $0x30] sm:$0xf]
    %v443 = vld [vmem:[#allocation8 + $0x34] sm:$0xf]
    %v444 = vld [vmem:[#allocation8 + $0x38] sm:$0xf]
    %v445 = vld [vmem:[#allocation8 + $0x3c] sm:$0xf]
    %v462 = vunpack.c.l.b16 %v430
    %v463 = vunpack.c.l.b16 %v431
    %v464 = vunpack.c.l.b16 %v432
    %v465 = vunpack.c.l.b16 %v433
    %v466 = vunpack.c.l.b16 %v434
    %v467 = vunpack.c.l.b16 %v435
    %v468 = vunpack.c.l.b16 %v436
    %v469 = vunpack.c.l.b16 %v437
    %v470 = vunpack.c.l.b16 %v438
    %v471 = vunpack.c.l.b16 %v439
    %v472 = vunpack.c.l.b16 %v440
    %v473 = vunpack.c.l.b16 %v441
    %v474 = vunpack.c.l.b16 %v442
    %v475 = vunpack.c.l.b16 %v443
    %v476 = vunpack.c.l.b16 %v444
    %v477 = vunpack.c.l.b16 %v445
    %v478 = vpack.c.b16 %v463, %v462
    %v479 = vpack.c.b16 %v465, %v464
    %v480 = vpack.c.b16 %v467, %v466
    %v481 = vpack.c.b16 %v469, %v468
    %v482 = vpack.c.b16 %v471, %v470
    %v483 = vpack.c.b16 %v473, %v472
    %v484 = vpack.c.b16 %v475, %v474
    %v485 = vpack.c.b16 %v477, %v476
    %494 = vmatprep.subr.bf16.mxu0 0
    %495 = vmatpush1.bf16.msra.mxu0 %v478
    %496 = vmatprep.subr.bf16.mxu0 0
    %497 = vmatpush1.bf16.msra.mxu0 %v479
    %498 = vmatprep.subr.bf16.mxu0 0
    %499 = vmatpush1.bf16.msra.mxu0 %v480
    %500 = vmatprep.subr.bf16.mxu0 0
    %501 = vmatpush1.bf16.msra.mxu0 %v481
    %502 = vmatprep.subr.bf16.mxu0 0
    %503 = vmatpush1.bf16.msra.mxu0 %v482
    %504 = vmatprep.subr.bf16.mxu0 0
    %505 = vmatpush1.bf16.msra.mxu0 %v483
    %506 = vmatprep.subr.bf16.mxu0 0
    %507 = vmatpush1.bf16.msra.mxu0 %v484
    %508 = vmatprep.subr.bf16.mxu0 0
    %509 = vmatpush1.bf16.msra.mxu0 %v485
    %510 = vmatprep.subr.bf16.mxu0 0
    %511 = vmatpush1.bf16.msra.mxu0 0
    %512 = vmatprep.subr.bf16.mxu0 0
    %513 = vmatpush1.bf16.msra.mxu0 0
    %514 = vmatprep.subr.bf16.mxu0 0
    %515 = vmatpush1.bf16.msra.mxu0 0
    %516 = vmatprep.subr.bf16.mxu0 0
    %517 = vmatpush1.bf16.msra.mxu0 0
    %518 = vmatprep.subr.bf16.mxu0 0
    %519 = vmatpush1.bf16.msra.mxu0 0
    %520 = vmatprep.subr.bf16.mxu0 0
    %521 = vmatpush1.bf16.msra.mxu0 0
    %522 = vmatprep.subr.bf16.mxu0 0
    %523 = vmatpush1.bf16.msra.mxu0 0
    %524 = vmatprep.subr.bf16.mxu0 0
    %525 = vmatpush1.bf16.msra.mxu0 0
    %526 = vmatprep.mubr.bf16.mxu0 0
    %527 = vmatmul.mubr.bf16.gmra.mrb[0].mxu0 %v387
    %v528 = vpop.f32.mrb[0].mxu0
    %v529 = vadd.f32 0.0, %v528
    %v530 = vpop.f32.mrb[0].mxu0
    %v531 = vpop.f32.mrb[0].mxu0
    %v532 = vpop.f32.mrb[0].mxu0
    %533 = vdwg.mxu0
    %v534 = vadd.f32 %v274, %v529
    %s535 = scalar_lea.vmem [#allocation9], 64
    %v536 = vld [vmem:[%s535] sm:$0xf]
    %v537 = vld [vmem:[%s535 + $0x4] sm:$0xf]
    %v538 = vld [vmem:[%s535 + $0x8] sm:$0xf]
    %v539 = vld [vmem:[%s535 + $0xc] sm:$0xf]
    %v540 = vld [vmem:[%s535 + $0x10] sm:$0xf]
    %v541 = vld [vmem:[%s535 + $0x14] sm:$0xf]
    %v542 = vld [vmem:[%s535 + $0x18] sm:$0xf]
    %v543 = vld [vmem:[%s535 + $0x1c] sm:$0xf]
    %v544 = vld [vmem:[%s535 + $0x20] sm:$0xf]
    %v545 = vld [vmem:[%s535 + $0x24] sm:$0xf]
    %v546 = vld [vmem:[%s535 + $0x28] sm:$0xf]
    %v547 = vld [vmem:[%s535 + $0x2c] sm:$0xf]
    %v548 = vld [vmem:[%s535 + $0x30] sm:$0xf]
    %v549 = vld [vmem:[%s535 + $0x34] sm:$0xf]
    %v550 = vld [vmem:[%s535 + $0x38] sm:$0xf]
    %v551 = vld [vmem:[%s535 + $0x3c] sm:$0xf]
    %v568 = vunpack.c.l.b16 %v536
    %v569 = vunpack.c.l.b16 %v537
    %v570 = vunpack.c.l.b16 %v538
    %v571 = vunpack.c.l.b16 %v539
    %v572 = vunpack.c.l.b16 %v540
    %v573 = vunpack.c.l.b16 %v541
    %v574 = vunpack.c.l.b16 %v542
    %v575 = vunpack.c.l.b16 %v543
    %v576 = vunpack.c.l.b16 %v544
    %v577 = vunpack.c.l.b16 %v545
    %v578 = vunpack.c.l.b16 %v546
    %v579 = vunpack.c.l.b16 %v547
    %v580 = vunpack.c.l.b16 %v548
    %v581 = vunpack.c.l.b16 %v549
    %v582 = vunpack.c.l.b16 %v550
    %v583 = vunpack.c.l.b16 %v551
    %v584 = vpack.c.b16 %v569, %v568
    %v585 = vpack.c.b16 %v571, %v570
    %v586 = vpack.c.b16 %v573, %v572
    %v587 = vpack.c.b16 %v575, %v574
    %v588 = vpack.c.b16 %v577, %v576
    %v589 = vpack.c.b16 %v579, %v578
    %v590 = vpack.c.b16 %v581, %v580
    %v591 = vpack.c.b16 %v583, %v582
    %600 = vmatprep.subr.bf16.mxu0 0
    %601 = vmatpush1.bf16.msra.mxu0 %v584
    %602 = vmatprep.subr.bf16.mxu0 0
    %603 = vmatpush1.bf16.msra.mxu0 %v585
    %604 = vmatprep.subr.bf16.mxu0 0
    %605 = vmatpush1.bf16.msra.mxu0 %v586
    %606 = vmatprep.subr.bf16.mxu0 0
    %607 = vmatpush1.bf16.msra.mxu0 %v587
    %608 = vmatprep.subr.bf16.mxu0 0
    %609 = vmatpush1.bf16.msra.mxu0 %v588
    %610 = vmatprep.subr.bf16.mxu0 0
    %611 = vmatpush1.bf16.msra.mxu0 %v589
    %612 = vmatprep.subr.bf16.mxu0 0
    %613 = vmatpush1.bf16.msra.mxu0 %v590
    %614 = vmatprep.subr.bf16.mxu0 0
    %615 = vmatpush1.bf16.msra.mxu0 %v591
    %616 = vmatprep.subr.bf16.mxu0 0
    %617 = vmatpush1.bf16.msra.mxu0 0
    %618 = vmatprep.subr.bf16.mxu0 0
    %619 = vmatpush1.bf16.msra.mxu0 0
    %620 = vmatprep.subr.bf16.mxu0 0
    %621 = vmatpush1.bf16.msra.mxu0 0
    %622 = vmatprep.subr.bf16.mxu0 0
    %623 = vmatpush1.bf16.msra.mxu0 0
    %624 = vmatprep.subr.bf16.mxu0 0
    %625 = vmatpush1.bf16.msra.mxu0 0
    %626 = vmatprep.subr.bf16.mxu0 0
    %627 = vmatpush1.bf16.msra.mxu0 0
    %628 = vmatprep.subr.bf16.mxu0 0
    %629 = vmatpush1.bf16.msra.mxu0 0
    %630 = vmatprep.subr.bf16.mxu0 0
    %631 = vmatpush1.bf16.msra.mxu0 0
    %632 = vmatprep.mubr.bf16.mxu0 0
    %633 = vmatmul.mubr.bf16.gmra.mrb[0].mxu0 0
    %v634 = vpop.f32.mrb[0].mxu0
    %v635 = vadd.f32 0.0, %v634
    %v636 = vpop.f32.mrb[0].mxu0
    %v637 = vpop.f32.mrb[0].mxu0
    %v638 = vpop.f32.mrb[0].mxu0
    %639 = vdwg.mxu0
    %v640 = vadd.f32 %v534, %v635
    %v641 = vtanh.pop %v640
    %s642 = scalar_lea.vmem [#allocation2], 8
    %v643 = vld [vmem:[%s642] sm:$0xf]
    %v644 = vunpack.c.l.bf16 %v643
    %v645 = vpack.c.bf16 %v429, %v429
    %646 = vmatprep.subr.bf16.mxu0 0
    %647 = vmatpush1.bf16.msra.mxu0 %v326
    %648 = vmatprep.subr.bf16.mxu0 0
    %649 = vmatpush1.bf16.msra.mxu0 %v327
    %650 = vmatprep.subr.bf16.mxu0 0
    %651 = vmatpush1.bf16.msra.mxu0 %v328
    %652 = vmatprep.subr.bf16.mxu0 0
    %653 = vmatpush1.bf16.msra.mxu0 %v329
    %654 = vmatprep.subr.bf16.mxu0 0
    %655 = vmatpush1.bf16.msra.mxu0 %v330
    %656 = vmatprep.subr.bf16.mxu0 0
    %657 = vmatpush1.bf16.msra.mxu0 %v331
    %658 = vmatprep.subr.bf16.mxu0 0
    %659 = vmatpush1.bf16.msra.mxu0 %v332
    %660 = vmatprep.subr.bf16.mxu0 0
    %661 = vmatpush1.bf16.msra.mxu0 %v333
    %662 = vmatprep.subr.bf16.mxu0 0
    %663 = vmatpush1.bf16.msra.mxu0 0
    %664 = vmatprep.subr.bf16.mxu0 0
    %665 = vmatpush1.bf16.msra.mxu0 0
    %666 = vmatprep.subr.bf16.mxu0 0
    %667 = vmatpush1.bf16.msra.mxu0 0
    %668 = vmatprep.subr.bf16.mxu0 0
    %669 = vmatpush1.bf16.msra.mxu0 0
    %670 = vmatprep.subr.bf16.mxu0 0
    %671 = vmatpush1.bf16.msra.mxu0 0
    %672 = vmatprep.subr.bf16.mxu0 0
    %673 = vmatpush1.bf16.msra.mxu0 0
    %674 = vmatprep.subr.bf16.mxu0 0
    %675 = vmatpush1.bf16.msra.mxu0 0
    %676 = vmatprep.subr.bf16.mxu0 0
    %677 = vmatpush1.bf16.msra.mxu0 0
    %678 = vmatprep.mubr.bf16.mxu0 0
    %679 = vmatmul.mubr.bf16.gmra.mrb[0].mxu0 %v645
    %v680 = vpop.f32.mrb[0].mxu0
    %v681 = vadd.f32 0.0, %v680
    %v682 = vpop.f32.mrb[0].mxu0
    %v683 = vpop.f32.mrb[0].mxu0
    %v684 = vpop.f32.mrb[0].mxu0
    %685 = vdwg.mxu0
    %v686 = vadd.f32 %v644, %v681
    %v687 = vtanh.pop %v686
    %688 = vmatprep.subr.bf16.mxu0 0
    %689 = vmatpush1.bf16.msra.mxu0 %v478
    %690 = vmatprep.subr.bf16.mxu0 0
    %691 = vmatpush1.bf16.msra.mxu0 %v479
    %692 = vmatprep.subr.bf16.mxu0 0
    %693 = vmatpush1.bf16.msra.mxu0 %v480
    %694 = vmatprep.subr.bf16.mxu0 0
    %695 = vmatpush1.bf16.msra.mxu0 %v481
    %696 = vmatprep.subr.bf16.mxu0 0
    %697 = vmatpush1.bf16.msra.mxu0 %v482
    %698 = vmatprep.subr.bf16.mxu0 0
    %699 = vmatpush1.bf16.msra.mxu0 %v483
    %700 = vmatprep.subr.bf16.mxu0 0
    %701 = vmatpush1.bf16.msra.mxu0 %v484
    %702 = vmatprep.subr.bf16.mxu0 0
    %703 = vmatpush1.bf16.msra.mxu0 %v485
    %704 = vmatprep.subr.bf16.mxu0 0
    %705 = vmatpush1.bf16.msra.mxu0 0
    %706 = vmatprep.subr.bf16.mxu0 0
    %707 = vmatpush1.bf16.msra.mxu0 0
    %708 = vmatprep.subr.bf16.mxu0 0
    %709 = vmatpush1.bf16.msra.mxu0 0
    %710 = vmatprep.subr.bf16.mxu0 0
    %711 = vmatpush1.bf16.msra.mxu0 0
    %712 = vmatprep.subr.bf16.mxu0 0
    %713 = vmatpush1.bf16.msra.mxu0 0
    %714 = vmatprep.subr.bf16.mxu0 0
    %715 = vmatpush1.bf16.msra.mxu0 0
    %716 = vmatprep.subr.bf16.mxu0 0
    %717 = vmatpush1.bf16.msra.mxu0 0
    %718 = vmatprep.subr.bf16.mxu0 0
    %719 = vmatpush1.bf16.msra.mxu0 0
    %720 = vmatprep.mubr.bf16.mxu0 0
    %721 = vmatmul.mubr.bf16.gmra.mrb[0].mxu0 %v645
    %v722 = vpop.f32.mrb[0].mxu0
    %v723 = vadd.f32 0.0, %v722
    %v724 = vpop.f32.mrb[0].mxu0
    %v725 = vpop.f32.mrb[0].mxu0
    %v726 = vpop.f32.mrb[0].mxu0
    %727 = vdwg.mxu0
    %v728 = vadd.f32 %v274, %v723
    %v729 = vpack.c.bf16 %v641, %v641
    %730 = vmatprep.subr.bf16.mxu0 0
    %731 = vmatpush1.bf16.msra.mxu0 %v584
    %732 = vmatprep.subr.bf16.mxu0 0
    %733 = vmatpush1.bf16.msra.mxu0 %v585
    %734 = vmatprep.subr.bf16.mxu0 0
    %735 = vmatpush1.bf16.msra.mxu0 %v586
    %736 = vmatprep.subr.bf16.mxu0 0
    %737 = vmatpush1.bf16.msra.mxu0 %v587
    %738 = vmatprep.subr.bf16.mxu0 0
    %739 = vmatpush1.bf16.msra.mxu0 %v588
    %740 = vmatprep.subr.bf16.mxu0 0
    %741 = vmatpush1.bf16.msra.mxu0 %v589
    %742 = vmatprep.subr.bf16.mxu0 0
    %743 = vmatpush1.bf16.msra.mxu0 %v590
    %744 = vmatprep.subr.bf16.mxu0 0
    %745 = vmatpush1.bf16.msra.mxu0 %v591
    %746 = vmatprep.subr.bf16.mxu0 0
    %747 = vmatpush1.bf16.msra.mxu0 0
    %748 = vmatprep.subr.bf16.mxu0 0
    %749 = vmatpush1.bf16.msra.mxu0 0
    %750 = vmatprep.subr.bf16.mxu0 0
    %751 = vmatpush1.bf16.msra.mxu0 0
    %752 = vmatprep.subr.bf16.mxu0 0
    %753 = vmatpush1.bf16.msra.mxu0 0
    %754 = vmatprep.subr.bf16.mxu0 0
    %755 = vmatpush1.bf16.msra.mxu0 0
    %756 = vmatprep.subr.bf16.mxu0 0
    %757 = vmatpush1.bf16.msra.mxu0 0
    %758 = vmatprep.subr.bf16.mxu0 0
    %759 = vmatpush1.bf16.msra.mxu0 0
    %760 = vmatprep.subr.bf16.mxu0 0
    %761 = vmatpush1.bf16.msra.mxu0 0
    %762 = vmatprep.mubr.bf16.mxu0 0
    %763 = vmatmul.mubr.bf16.gmra.mrb[0].mxu0 %v729
    %v764 = vpop.f32.mrb[0].mxu0
    %v765 = vadd.f32 0.0, %v764
    %v766 = vpop.f32.mrb[0].mxu0
    %v767 = vpop.f32.mrb[0].mxu0
    %v768 = vpop.f32.mrb[0].mxu0
    %769 = vdwg.mxu0
    %v770 = vadd.f32 %v728, %v765
    %v771 = vtanh.pop %v770
    %s772 = scalar_lea.vmem [#allocation2], 12
    %v773 = vld [vmem:[%s772] sm:$0xf]
    %v774 = vunpack.c.l.bf16 %v773
    %v775 = vpack.c.bf16 %v687, %v687
    %776 = vmatprep.subr.bf16.mxu0 0
    %777 = vmatpush1.bf16.msra.mxu0 %v326
    %778 = vmatprep.subr.bf16.mxu0 0
    %779 = vmatpush1.bf16.msra.mxu0 %v327
    %780 = vmatprep.subr.bf16.mxu0 0
    %781 = vmatpush1.bf16.msra.mxu0 %v328
    %782 = vmatprep.subr.bf16.mxu0 0
    %783 = vmatpush1.bf16.msra.mxu0 %v329
    %784 = vmatprep.subr.bf16.mxu0 0
    %785 = vmatpush1.bf16.msra.mxu0 %v330
    %786 = vmatprep.subr.bf16.mxu0 0
    %787 = vmatpush1.bf16.msra.mxu0 %v331
    %788 = vmatprep.subr.bf16.mxu0 0
    %789 = vmatpush1.bf16.msra.mxu0 %v332
    %790 = vmatprep.subr.bf16.mxu0 0
    %791 = vmatpush1.bf16.msra.mxu0 %v333
    %792 = vmatprep.subr.bf16.mxu0 0
    %793 = vmatpush1.bf16.msra.mxu0 0
    %794 = vmatprep.subr.bf16.mxu0 0
    %795 = vmatpush1.bf16.msra.mxu0 0
    %796 = vmatprep.subr.bf16.mxu0 0
    %797 = vmatpush1.bf16.msra.mxu0 0
    %798 = vmatprep.subr.bf16.mxu0 0
    %799 = vmatpush1.bf16.msra.mxu0 0
    %800 = vmatprep.subr.bf16.mxu0 0
    %801 = vmatpush1.bf16.msra.mxu0 0
    %802 = vmatprep.subr.bf16.mxu0 0
    %803 = vmatpush1.bf16.msra.mxu0 0
    %804 = vmatprep.subr.bf16.mxu0 0
    %805 = vmatpush1.bf16.msra.mxu0 0
    %806 = vmatprep.subr.bf16.mxu0 0
    %807 = vmatpush1.bf16.msra.mxu0 0
    %808 = vmatprep.mubr.bf16.mxu0 0
    %809 = vmatmul.mubr.bf16.gmra.mrb[0].mxu0 %v775
    %v810 = vpop.f32.mrb[0].mxu0
    %v811 = vadd.f32 0.0, %v810
    %v812 = vpop.f32.mrb[0].mxu0
    %v813 = vpop.f32.mrb[0].mxu0
    %v814 = vpop.f32.mrb[0].mxu0
    %815 = vdwg.mxu0
    %v816 = vadd.f32 %v774, %v811
    %v817 = vtanh.pop %v816
    %818 = vmatprep.subr.bf16.mxu0 0
    %819 = vmatpush1.bf16.msra.mxu0 %v478
    %820 = vmatprep.subr.bf16.mxu0 0
    %821 = vmatpush1.bf16.msra.mxu0 %v479
    %822 = vmatprep.subr.bf16.mxu0 0
    %823 = vmatpush1.bf16.msra.mxu0 %v480
    %824 = vmatprep.subr.bf16.mxu0 0
    %825 = vmatpush1.bf16.msra.mxu0 %v481
    %826 = vmatprep.subr.bf16.mxu0 0
    %827 = vmatpush1.bf16.msra.mxu0 %v482
    %828 = vmatprep.subr.bf16.mxu0 0
    %829 = vmatpush1.bf16.msra.mxu0 %v483
    %830 = vmatprep.subr.bf16.mxu0 0
    %831 = vmatpush1.bf16.msra.mxu0 %v484
    %832 = vmatprep.subr.bf16.mxu0 0
    %833 = vmatpush1.bf16.msra.mxu0 %v485
    %834 = vmatprep.subr.bf16.mxu0 0
    %835 = vmatpush1.bf16.msra.mxu0 0
    %836 = vmatprep.subr.bf16.mxu0 0
    %837 = vmatpush1.bf16.msra.mxu0 0
    %838 = vmatprep.subr.bf16.mxu0 0
    %839 = vmatpush1.bf16.msra.mxu0 0
    %840 = vmatprep.subr.bf16.mxu0 0
    %841 = vmatpush1.bf16.msra.mxu0 0
    %842 = vmatprep.subr.bf16.mxu0 0
    %843 = vmatpush1.bf16.msra.mxu0 0
    %844 = vmatprep.subr.bf16.mxu0 0
    %845 = vmatpush1.bf16.msra.mxu0 0
    %846 = vmatprep.subr.bf16.mxu0 0
    %847 = vmatpush1.bf16.msra.mxu0 0
    %848 = vmatprep.subr.bf16.mxu0 0
    %849 = vmatpush1.bf16.msra.mxu0 0
    %850 = vmatprep.mubr.bf16.mxu0 0
    %851 = vmatmul.mubr.bf16.gmra.mrb[0].mxu0 %v775
    %v852 = vpop.f32.mrb[0].mxu0
    %v853 = vadd.f32 0.0, %v852
    %v854 = vpop.f32.mrb[0].mxu0
    %v855 = vpop.f32.mrb[0].mxu0
    %v856 = vpop.f32.mrb[0].mxu0
    %857 = vdwg.mxu0
    %v858 = vadd.f32 %v274, %v853
    %v859 = vpack.c.bf16 %v771, %v771
    %860 = vmatprep.subr.bf16.mxu0 0
    %861 = vmatpush1.bf16.msra.mxu0 %v584
    %862 = vmatprep.subr.bf16.mxu0 0
    %863 = vmatpush1.bf16.msra.mxu0 %v585
    %864 = vmatprep.subr.bf16.mxu0 0
    %865 = vmatpush1.bf16.msra.mxu0 %v586
    %866 = vmatprep.subr.bf16.mxu0 0
    %867 = vmatpush1.bf16.msra.mxu0 %v587
    %868 = vmatprep.subr.bf16.mxu0 0
    %869 = vmatpush1.bf16.msra.mxu0 %v588
    %870 = vmatprep.subr.bf16.mxu0 0
    %871 = vmatpush1.bf16.msra.mxu0 %v589
    %872 = vmatprep.subr.bf16.mxu0 0
    %873 = vmatpush1.bf16.msra.mxu0 %v590
    %874 = vmatprep.subr.bf16.mxu0 0
    %875 = vmatpush1.bf16.msra.mxu0 %v591
    %876 = vmatprep.subr.bf16.mxu0 0
    %877 = vmatpush1.bf16.msra.mxu0 0
    %878 = vmatprep.subr.bf16.mxu0 0
    %879 = vmatpush1.bf16.msra.mxu0 0
    %880 = vmatprep.subr.bf16.mxu0 0
    %881 = vmatpush1.bf16.msra.mxu0 0
    %882 = vmatprep.subr.bf16.mxu0 0
    %883 = vmatpush1.bf16.msra.mxu0 0
    %884 = vmatprep.subr.bf16.mxu0 0
    %885 = vmatpush1.bf16.msra.mxu0 0
    %886 = vmatprep.subr.bf16.mxu0 0
    %887 = vmatpush1.bf16.msra.mxu0 0
    %888 = vmatprep.subr.bf16.mxu0 0
    %889 = vmatpush1.bf16.msra.mxu0 0
    %890 = vmatprep.subr.bf16.mxu0 0
    %891 = vmatpush1.bf16.msra.mxu0 0
    %892 = vmatprep.mubr.bf16.mxu0 0
    %893 = vmatmul.mubr.bf16.gmra.mrb[0].mxu0 %v859
    %v894 = vpop.f32.mrb[0].mxu0
    %v895 = vadd.f32 0.0, %v894
    %v896 = vpop.f32.mrb[0].mxu0
    %v897 = vpop.f32.mrb[0].mxu0
    %v898 = vpop.f32.mrb[0].mxu0
    %899 = vdwg.mxu0
    %v900 = vadd.f32 %v858, %v895
    %v901 = vtanh.pop %v900
    %s902 = scalar_lea.vmem [#allocation2], 16
    %v903 = vld [vmem:[%s902] sm:$0xf]
    %v904 = vunpack.c.l.bf16 %v903
    %v905 = vpack.c.bf16 %v817, %v817
    %906 = vmatprep.subr.bf16.mxu0 0
    %907 = vmatpush1.bf16.msra.mxu0 %v326
    %908 = vmatprep.subr.bf16.mxu0 0
    %909 = vmatpush1.bf16.msra.mxu0 %v327
    %910 = vmatprep.subr.bf16.mxu0 0
    %911 = vmatpush1.bf16.msra.mxu0 %v328
    %912 = vmatprep.subr.bf16.mxu0 0
    %913 = vmatpush1.bf16.msra.mxu0 %v329
    %914 = vmatprep.subr.bf16.mxu0 0
    %915 = vmatpush1.bf16.msra.mxu0 %v330
    %916 = vmatprep.subr.bf16.mxu0 0
    %917 = vmatpush1.bf16.msra.mxu0 %v331
    %918 = vmatprep.subr.bf16.mxu0 0
    %919 = vmatpush1.bf16.msra.mxu0 %v332
    %920 = vmatprep.subr.bf16.mxu0 0
    %921 = vmatpush1.bf16.msra.mxu0 %v333
    %922 = vmatprep.subr.bf16.mxu0 0
    %923 = vmatpush1.bf16.msra.mxu0 0
    %924 = vmatprep.subr.bf16.mxu0 0
    %925 = vmatpush1.bf16.msra.mxu0 0
    %926 = vmatprep.subr.bf16.mxu0 0
    %927 = vmatpush1.bf16.msra.mxu0 0
    %928 = vmatprep.subr.bf16.mxu0 0
    %929 = vmatpush1.bf16.msra.mxu0 0
    %930 = vmatprep.subr.bf16.mxu0 0
    %931 = vmatpush1.bf16.msra.mxu0 0
    %932 = vmatprep.subr.bf16.mxu0 0
    %933 = vmatpush1.bf16.msra.mxu0 0
    %934 = vmatprep.subr.bf16.mxu0 0
    %935 = vmatpush1.bf16.msra.mxu0 0
    %936 = vmatprep.subr.bf16.mxu0 0
    %937 = vmatpush1.bf16.msra.mxu0 0
    %938 = vmatprep.mubr.bf16.mxu0 0
    %939 = vmatmul.mubr.bf16.gmra.mrb[0].mxu0 %v905
    %v940 = vpop.f32.mrb[0].mxu0
    %v941 = vadd.f32 0.0, %v940
    %v942 = vpop.f32.mrb[0].mxu0
    %v943 = vpop.f32.mrb[0].mxu0
    %v944 = vpop.f32.mrb[0].mxu0
    %945 = vdwg.mxu0
    %v946 = vadd.f32 %v904, %v941
    %v947 = vtanh.pop %v946
    %948 = vmatprep.subr.bf16.mxu0 0
    %949 = vmatpush1.bf16.msra.mxu0 %v478
    %950 = vmatprep.subr.bf16.mxu0 0
    %951 = vmatpush1.bf16.msra.mxu0 %v479
    %952 = vmatprep.subr.bf16.mxu0 0
    %953 = vmatpush1.bf16.msra.mxu0 %v480
    %954 = vmatprep.subr.bf16.mxu0 0
    %955 = vmatpush1.bf16.msra.mxu0 %v481
    %956 = vmatprep.subr.bf16.mxu0 0
    %957 = vmatpush1.bf16.msra.mxu0 %v482
    %958 = vmatprep.subr.bf16.mxu0 0
    %959 = vmatpush1.bf16.msra.mxu0 %v483
    %960 = vmatprep.subr.bf16.mxu0 0
    %961 = vmatpush1.bf16.msra.mxu0 %v484
    %962 = vmatprep.subr.bf16.mxu0 0
    %963 = vmatpush1.bf16.msra.mxu0 %v485
    %964 = vmatprep.subr.bf16.mxu0 0
    %965 = vmatpush1.bf16.msra.mxu0 0
    %966 = vmatprep.subr.bf16.mxu0 0
    %967 = vmatpush1.bf16.msra.mxu0 0
    %968 = vmatprep.subr.bf16.mxu0 0
    %969 = vmatpush1.bf16.msra.mxu0 0
    %970 = vmatprep.subr.bf16.mxu0 0
    %971 = vmatpush1.bf16.msra.mxu0 0
    %972 = vmatprep.subr.bf16.mxu0 0
    %973 = vmatpush1.bf16.msra.mxu0 0
    %974 = vmatprep.subr.bf16.mxu0 0
    %975 = vmatpush1.bf16.msra.mxu0 0
    %976 = vmatprep.subr.bf16.mxu0 0
    %977 = vmatpush1.bf16.msra.mxu0 0
    %978 = vmatprep.subr.bf16.mxu0 0
    %979 = vmatpush1.bf16.msra.mxu0 0
    %980 = vmatprep.mubr.bf16.mxu0 0
    %981 = vmatmul.mubr.bf16.gmra.mrb[0].mxu0 %v905
    %v982 = vpop.f32.mrb[0].mxu0
    %v983 = vadd.f32 0.0, %v982
    %v984 = vpop.f32.mrb[0].mxu0
    %v985 = vpop.f32.mrb[0].mxu0
    %v986 = vpop.f32.mrb[0].mxu0
    %987 = vdwg.mxu0
    %v988 = vadd.f32 %v274, %v983
    %v989 = vpack.c.bf16 %v901, %v901
    %990 = vmatprep.subr.bf16.mxu0 0
    %991 = vmatpush1.bf16.msra.mxu0 %v584
    %992 = vmatprep.subr.bf16.mxu0 0
    %993 = vmatpush1.bf16.msra.mxu0 %v585
    %994 = vmatprep.subr.bf16.mxu0 0
    %995 = vmatpush1.bf16.msra.mxu0 %v586
    %996 = vmatprep.subr.bf16.mxu0 0
    %997 = vmatpush1.bf16.msra.mxu0 %v587
    %998 = vmatprep.subr.bf16.mxu0 0
    %999 = vmatpush1.bf16.msra.mxu0 %v588
    %1000 = vmatprep.subr.bf16.mxu0 0
    %1001 = vmatpush1.bf16.msra.mxu0 %v589
    %1002 = vmatprep.subr.bf16.mxu0 0
    %1003 = vmatpush1.bf16.msra.mxu0 %v590
    %1004 = vmatprep.subr.bf16.mxu0 0
    %1005 = vmatpush1.bf16.msra.mxu0 %v591
    %1006 = vmatprep.subr.bf16.mxu0 0
    %1007 = vmatpush1.bf16.msra.mxu0 0
    %1008 = vmatprep.subr.bf16.mxu0 0
    %1009 = vmatpush1.bf16.msra.mxu0 0
    %1010 = vmatprep.subr.bf16.mxu0 0
    %1011 = vmatpush1.bf16.msra.mxu0 0
    %1012 = vmatprep.subr.bf16.mxu0 0
    %1013 = vmatpush1.bf16.msra.mxu0 0
    %1014 = vmatprep.subr.bf16.mxu0 0
    %1015 = vmatpush1.bf16.msra.mxu0 0
    %1016 = vmatprep.subr.bf16.mxu0 0
    %1017 = vmatpush1.bf16.msra.mxu0 0
    %1018 = vmatprep.subr.bf16.mxu0 0
    %1019 = vmatpush1.bf16.msra.mxu0 0
    %1020 = vmatprep.subr.bf16.mxu0 0
    %1021 = vmatpush1.bf16.msra.mxu0 0
    %1022 = vmatprep.mubr.bf16.mxu0 0
    %1023 = vmatmul.mubr.bf16.gmra.mrb[0].mxu0 %v989
    %v1024 = vpop.f32.mrb[0].mxu0
    %v1025 = vadd.f32 0.0, %v1024
    %v1026 = vpop.f32.mrb[0].mxu0
    %v1027 = vpop.f32.mrb[0].mxu0
    %v1028 = vpop.f32.mrb[0].mxu0
    %1029 = vdwg.mxu0
    %v1030 = vadd.f32 %v988, %v1025
    %v1031 = vtanh.pop %v1030
    %s1032 = scalar_lea.vmem [#allocation2], 20
    %v1033 = vld [vmem:[%s1032] sm:$0xf]
    %v1034 = vunpack.c.l.bf16 %v1033
    %v1035 = vpack.c.bf16 %v947, %v947
    %1036 = vmatprep.subr.bf16.mxu0 0
    %1037 = vmatpush1.bf16.msra.mxu0 %v326
    %1038 = vmatprep.subr.bf16.mxu0 0
    %1039 = vmatpush1.bf16.msra.mxu0 %v327
    %1040 = vmatprep.subr.bf16.mxu0 0
    %1041 = vmatpush1.bf16.msra.mxu0 %v328
    %1042 = vmatprep.subr.bf16.mxu0 0
    %1043 = vmatpush1.bf16.msra.mxu0 %v329
    %1044 = vmatprep.subr.bf16.mxu0 0
    %1045 = vmatpush1.bf16.msra.mxu0 %v330
    %1046 = vmatprep.subr.bf16.mxu0 0
    %1047 = vmatpush1.bf16.msra.mxu0 %v331
    %1048 = vmatprep.subr.bf16.mxu0 0
    %1049 = vmatpush1.bf16.msra.mxu0 %v332
    %1050 = vmatprep.subr.bf16.mxu0 0
    %1051 = vmatpush1.bf16.msra.mxu0 %v333
    %1052 = vmatprep.subr.bf16.mxu0 0
    %1053 = vmatpush1.bf16.msra.mxu0 0
    %1054 = vmatprep.subr.bf16.mxu0 0
    %1055 = vmatpush1.bf16.msra.mxu0 0
    %1056 = vmatprep.subr.bf16.mxu0 0
    %1057 = vmatpush1.bf16.msra.mxu0 0
    %1058 = vmatprep.subr.bf16.mxu0 0
    %1059 = vmatpush1.bf16.msra.mxu0 0
    %1060 = vmatprep.subr.bf16.mxu0 0
    %1061 = vmatpush1.bf16.msra.mxu0 0
    %1062 = vmatprep.subr.bf16.mxu0 0
    %1063 = vmatpush1.bf16.msra.mxu0 0
    %1064 = vmatprep.subr.bf16.mxu0 0
    %1065 = vmatpush1.bf16.msra.mxu0 0
    %1066 = vmatprep.subr.bf16.mxu0 0
    %1067 = vmatpush1.bf16.msra.mxu0 0
    %1068 = vmatprep.mubr.bf16.mxu0 0
    %1069 = vmatmul.mubr.bf16.gmra.mrb[0].mxu0 %v1035
    %v1070 = vpop.f32.mrb[0].mxu0
    %v1071 = vadd.f32 0.0, %v1070
    %v1072 = vpop.f32.mrb[0].mxu0
    %v1073 = vpop.f32.mrb[0].mxu0
    %v1074 = vpop.f32.mrb[0].mxu0
    %1075 = vdwg.mxu0
    %v1076 = vadd.f32 %v1034, %v1071
    %v1077 = vtanh.pop %v1076
    %1078 = vmatprep.subr.bf16.mxu0 0
    %1079 = vmatpush1.bf16.msra.mxu0 %v478
    %1080 = vmatprep.subr.bf16.mxu0 0
    %1081 = vmatpush1.bf16.msra.mxu0 %v479
    %1082 = vmatprep.subr.bf16.mxu0 0
    %1083 = vmatpush1.bf16.msra.mxu0 %v480
    %1084 = vmatprep.subr.bf16.mxu0 0
    %1085 = vmatpush1.bf16.msra.mxu0 %v481
    %1086 = vmatprep.subr.bf16.mxu0 0
    %1087 = vmatpush1.bf16.msra.mxu0 %v482
    %1088 = vmatprep.subr.bf16.mxu0 0
    %1089 = vmatpush1.bf16.msra.mxu0 %v483
    %1090 = vmatprep.subr.bf16.mxu0 0
    %1091 = vmatpush1.bf16.msra.mxu0 %v484
    %1092 = vmatprep.subr.bf16.mxu0 0
    %1093 = vmatpush1.bf16.msra.mxu0 %v485
    %1094 = vmatprep.subr.bf16.mxu0 0
    %1095 = vmatpush1.bf16.msra.mxu0 0
    %1096 = vmatprep.subr.bf16.mxu0 0
    %1097 = vmatpush1.bf16.msra.mxu0 0
    %1098 = vmatprep.subr.bf16.mxu0 0
    %1099 = vmatpush1.bf16.msra.mxu0 0
    %1100 = vmatprep.subr.bf16.mxu0 0
    %1101 = vmatpush1.bf16.msra.mxu0 0
    %1102 = vmatprep.subr.bf16.mxu0 0
    %1103 = vmatpush1.bf16.msra.mxu0 0
    %1104 = vmatprep.subr.bf16.mxu0 0
    %1105 = vmatpush1.bf16.msra.mxu0 0
    %1106 = vmatprep.subr.bf16.mxu0 0
    %1107 = vmatpush1.bf16.msra.mxu0 0
    %1108 = vmatprep.subr.bf16.mxu0 0
    %1109 = vmatpush1.bf16.msra.mxu0 0
    %1110 = vmatprep.mubr.bf16.mxu0 0
    %1111 = vmatmul.mubr.bf16.gmra.mrb[0].mxu0 %v1035
    %v1112 = vpop.f32.mrb[0].mxu0
    %v1113 = vadd.f32 0.0, %v1112
    %v1114 = vpop.f32.mrb[0].mxu0
    %v1115 = vpop.f32.mrb[0].mxu0
    %v1116 = vpop.f32.mrb[0].mxu0
    %1117 = vdwg.mxu0
    %v1118 = vadd.f32 %v274, %v1113
    %v1119 = vpack.c.bf16 %v1031, %v1031
    %1120 = vmatprep.subr.bf16.mxu0 0
    %1121 = vmatpush1.bf16.msra.mxu0 %v584
    %1122 = vmatprep.subr.bf16.mxu0 0
    %1123 = vmatpush1.bf16.msra.mxu0 %v585
    %1124 = vmatprep.subr.bf16.mxu0 0
    %1125 = vmatpush1.bf16.msra.mxu0 %v586
    %1126 = vmatprep.subr.bf16.mxu0 0
    %1127 = vmatpush1.bf16.msra.mxu0 %v587
    %1128 = vmatprep.subr.bf16.mxu0 0
    %1129 = vmatpush1.bf16.msra.mxu0 %v588
    %1130 = vmatprep.subr.bf16.mxu0 0
    %1131 = vmatpush1.bf16.msra.mxu0 %v589
    %1132 = vmatprep.subr.bf16.mxu0 0
    %1133 = vmatpush1.bf16.msra.mxu0 %v590
    %1134 = vmatprep.subr.bf16.mxu0 0
    %1135 = vmatpush1.bf16.msra.mxu0 %v591
    %1136 = vmatprep.subr.bf16.mxu0 0
    %1137 = vmatpush1.bf16.msra.mxu0 0
    %1138 = vmatprep.subr.bf16.mxu0 0
    %1139 = vmatpush1.bf16.msra.mxu0 0
    %1140 = vmatprep.subr.bf16.mxu0 0
    %1141 = vmatpush1.bf16.msra.mxu0 0
    %1142 = vmatprep.subr.bf16.mxu0 0
    %1143 = vmatpush1.bf16.msra.mxu0 0
    %1144 = vmatprep.subr.bf16.mxu0 0
    %1145 = vmatpush1.bf16.msra.mxu0 0
    %1146 = vmatprep.subr.bf16.mxu0 0
    %1147 = vmatpush1.bf16.msra.mxu0 0
    %1148 = vmatprep.subr.bf16.mxu0 0
    %1149 = vmatpush1.bf16.msra.mxu0 0
    %1150 = vmatprep.subr.bf16.mxu0 0
    %1151 = vmatpush1.bf16.msra.mxu0 0
    %1152 = vmatprep.mubr.bf16.mxu0 0
    %1153 = vmatmul.mubr.bf16.gmra.mrb[0].mxu0 %v1119
    %v1154 = vpop.f32.mrb[0].mxu0
    %v1155 = vadd.f32 0.0, %v1154
    %v1156 = vpop.f32.mrb[0].mxu0
    %v1157 = vpop.f32.mrb[0].mxu0
    %v1158 = vpop.f32.mrb[0].mxu0
    %1159 = vdwg.mxu0
    %v1160 = vadd.f32 %v1118, %v1155
    %v1161 = vtanh.pop %v1160
    %s1162 = scalar_lea.vmem [#allocation2], 24
    %v1163 = vld [vmem:[%s1162] sm:$0xf]
    %v1164 = vunpack.c.l.bf16 %v1163
    %v1165 = vpack.c.bf16 %v1077, %v1077
    %1166 = vmatprep.subr.bf16.mxu0 0
    %1167 = vmatpush1.bf16.msra.mxu0 %v326
    %1168 = vmatprep.subr.bf16.mxu0 0
    %1169 = vmatpush1.bf16.msra.mxu0 %v327
    %1170 = vmatprep.subr.bf16.mxu0 0
    %1171 = vmatpush1.bf16.msra.mxu0 %v328
    %1172 = vmatprep.subr.bf16.mxu0 0
    %1173 = vmatpush1.bf16.msra.mxu0 %v329
    %1174 = vmatprep.subr.bf16.mxu0 0
    %1175 = vmatpush1.bf16.msra.mxu0 %v330
    %1176 = vmatprep.subr.bf16.mxu0 0
    %1177 = vmatpush1.bf16.msra.mxu0 %v331
    %1178 = vmatprep.subr.bf16.mxu0 0
    %1179 = vmatpush1.bf16.msra.mxu0 %v332
    %1180 = vmatprep.subr.bf16.mxu0 0
    %1181 = vmatpush1.bf16.msra.mxu0 %v333
    %1182 = vmatprep.subr.bf16.mxu0 0
    %1183 = vmatpush1.bf16.msra.mxu0 0
    %1184 = vmatprep.subr.bf16.mxu0 0
    %1185 = vmatpush1.bf16.msra.mxu0 0
    %1186 = vmatprep.subr.bf16.mxu0 0
    %1187 = vmatpush1.bf16.msra.mxu0 0
    %1188 = vmatprep.subr.bf16.mxu0 0
    %1189 = vmatpush1.bf16.msra.mxu0 0
    %1190 = vmatprep.subr.bf16.mxu0 0
    %1191 = vmatpush1.bf16.msra.mxu0 0
    %1192 = vmatprep.subr.bf16.mxu0 0
    %1193 = vmatpush1.bf16.msra.mxu0 0
    %1194 = vmatprep.subr.bf16.mxu0 0
    %1195 = vmatpush1.bf16.msra.mxu0 0
    %1196 = vmatprep.subr.bf16.mxu0 0
    %1197 = vmatpush1.bf16.msra.mxu0 0
    %1198 = vmatprep.mubr.bf16.mxu0 0
    %1199 = vmatmul.mubr.bf16.gmra.mrb[0].mxu0 %v1165
    %v1200 = vpop.f32.mrb[0].mxu0
    %v1201 = vadd.f32 0.0, %v1200
    %v1202 = vpop.f32.mrb[0].mxu0
    %v1203 = vpop.f32.mrb[0].mxu0
    %v1204 = vpop.f32.mrb[0].mxu0
    %1205 = vdwg.mxu0
    %v1206 = vadd.f32 %v1164, %v1201
    %v1207 = vtanh.pop %v1206
    %1208 = vmatprep.subr.bf16.mxu0 0
    %1209 = vmatpush1.bf16.msra.mxu0 %v478
    %1210 = vmatprep.subr.bf16.mxu0 0
    %1211 = vmatpush1.bf16.msra.mxu0 %v479
    %1212 = vmatprep.subr.bf16.mxu0 0
    %1213 = vmatpush1.bf16.msra.mxu0 %v480
    %1214 = vmatprep.subr.bf16.mxu0 0
    %1215 = vmatpush1.bf16.msra.mxu0 %v481
    %1216 = vmatprep.subr.bf16.mxu0 0
    %1217 = vmatpush1.bf16.msra.mxu0 %v482
    %1218 = vmatprep.subr.bf16.mxu0 0
    %1219 = vmatpush1.bf16.msra.mxu0 %v483
    %1220 = vmatprep.subr.bf16.mxu0 0
    %1221 = vmatpush1.bf16.msra.mxu0 %v484
    %1222 = vmatprep.subr.bf16.mxu0 0
    %1223 = vmatpush1.bf16.msra.mxu0 %v485
    %1224 = vmatprep.subr.bf16.mxu0 0
    %1225 = vmatpush1.bf16.msra.mxu0 0
    %1226 = vmatprep.subr.bf16.mxu0 0
    %1227 = vmatpush1.bf16.msra.mxu0 0
    %1228 = vmatprep.subr.bf16.mxu0 0
    %1229 = vmatpush1.bf16.msra.mxu0 0
    %1230 = vmatprep.subr.bf16.mxu0 0
    %1231 = vmatpush1.bf16.msra.mxu0 0
    %1232 = vmatprep.subr.bf16.mxu0 0
    %1233 = vmatpush1.bf16.msra.mxu0 0
    %1234 = vmatprep.subr.bf16.mxu0 0
    %1235 = vmatpush1.bf16.msra.mxu0 0
    %1236 = vmatprep.subr.bf16.mxu0 0
    %1237 = vmatpush1.bf16.msra.mxu0 0
    %1238 = vmatprep.subr.bf16.mxu0 0
    %1239 = vmatpush1.bf16.msra.mxu0 0
    %1240 = vmatprep.mubr.bf16.mxu0 0
    %1241 = vmatmul.mubr.bf16.gmra.mrb[0].mxu0 %v1165
    %v1242 = vpop.f32.mrb[0].mxu0
    %v1243 = vadd.f32 0.0, %v1242
    %v1244 = vpop.f32.mrb[0].mxu0
    %v1245 = vpop.f32.mrb[0].mxu0
    %v1246 = vpop.f32.mrb[0].mxu0
    %1247 = vdwg.mxu0
    %v1248 = vadd.f32 %v274, %v1243
    %v1249 = vpack.c.bf16 %v1161, %v1161
    %1250 = vmatprep.subr.bf16.mxu0 0
    %1251 = vmatpush1.bf16.msra.mxu0 %v584
    %1252 = vmatprep.subr.bf16.mxu0 0
    %1253 = vmatpush1.bf16.msra.mxu0 %v585
    %1254 = vmatprep.subr.bf16.mxu0 0
    %1255 = vmatpush1.bf16.msra.mxu0 %v586
    %1256 = vmatprep.subr.bf16.mxu0 0
    %1257 = vmatpush1.bf16.msra.mxu0 %v587
    %1258 = vmatprep.subr.bf16.mxu0 0
    %1259 = vmatpush1.bf16.msra.mxu0 %v588
    %1260 = vmatprep.subr.bf16.mxu0 0
    %1261 = vmatpush1.bf16.msra.mxu0 %v589
    %1262 = vmatprep.subr.bf16.mxu0 0
    %1263 = vmatpush1.bf16.msra.mxu0 %v590
    %1264 = vmatprep.subr.bf16.mxu0 0
    %1265 = vmatpush1.bf16.msra.mxu0 %v591
    %1266 = vmatprep.subr.bf16.mxu0 0
    %1267 = vmatpush1.bf16.msra.mxu0 0
    %1268 = vmatprep.subr.bf16.mxu0 0
    %1269 = vmatpush1.bf16.msra.mxu0 0
    %1270 = vmatprep.subr.bf16.mxu0 0
    %1271 = vmatpush1.bf16.msra.mxu0 0
    %1272 = vmatprep.subr.bf16.mxu0 0
    %1273 = vmatpush1.bf16.msra.mxu0 0
    %1274 = vmatprep.subr.bf16.mxu0 0
    %1275 = vmatpush1.bf16.msra.mxu0 0
    %1276 = vmatprep.subr.bf16.mxu0 0
    %1277 = vmatpush1.bf16.msra.mxu0 0
    %1278 = vmatprep.subr.bf16.mxu0 0
    %1279 = vmatpush1.bf16.msra.mxu0 0
    %1280 = vmatprep.subr.bf16.mxu0 0
    %1281 = vmatpush1.bf16.msra.mxu0 0
    %1282 = vmatprep.mubr.bf16.mxu0 0
    %1283 = vmatmul.mubr.bf16.gmra.mrb[0].mxu0 %v1249
    %v1284 = vpop.f32.mrb[0].mxu0
    %v1285 = vadd.f32 0.0, %v1284
    %v1286 = vpop.f32.mrb[0].mxu0
    %v1287 = vpop.f32.mrb[0].mxu0
    %v1288 = vpop.f32.mrb[0].mxu0
    %1289 = vdwg.mxu0
    %v1290 = vadd.f32 %v1248, %v1285
    %v1291 = vtanh.pop %v1290
    %s1292 = scalar_lea.vmem [#allocation2], 28
    %v1293 = vld [vmem:[%s1292] sm:$0xf]
    %v1294 = vunpack.c.l.bf16 %v1293
    %v1295 = vpack.c.bf16 %v1207, %v1207
    %1296 = vmatprep.subr.bf16.mxu0 0
    %1297 = vmatpush1.bf16.msra.mxu0 %v326
    %1298 = vmatprep.subr.bf16.mxu0 0
    %1299 = vmatpush1.bf16.msra.mxu0 %v327
    %1300 = vmatprep.subr.bf16.mxu0 0
    %1301 = vmatpush1.bf16.msra.mxu0 %v328
    %1302 = vmatprep.subr.bf16.mxu0 0
    %1303 = vmatpush1.bf16.msra.mxu0 %v329
    %1304 = vmatprep.subr.bf16.mxu0 0
    %1305 = vmatpush1.bf16.msra.mxu0 %v330
    %1306 = vmatprep.subr.bf16.mxu0 0
    %1307 = vmatpush1.bf16.msra.mxu0 %v331
    %1308 = vmatprep.subr.bf16.mxu0 0
    %1309 = vmatpush1.bf16.msra.mxu0 %v332
    %1310 = vmatprep.subr.bf16.mxu0 0
    %1311 = vmatpush1.bf16.msra.mxu0 %v333
    %1312 = vmatprep.subr.bf16.mxu0 0
    %1313 = vmatpush1.bf16.msra.mxu0 0
    %1314 = vmatprep.subr.bf16.mxu0 0
    %1315 = vmatpush1.bf16.msra.mxu0 0
    %1316 = vmatprep.subr.bf16.mxu0 0
    %1317 = vmatpush1.bf16.msra.mxu0 0
    %1318 = vmatprep.subr.bf16.mxu0 0
    %1319 = vmatpush1.bf16.msra.mxu0 0
    %1320 = vmatprep.subr.bf16.mxu0 0
    %1321 = vmatpush1.bf16.msra.mxu0 0
    %1322 = vmatprep.subr.bf16.mxu0 0
    %1323 = vmatpush1.bf16.msra.mxu0 0
    %1324 = vmatprep.subr.bf16.mxu0 0
    %1325 = vmatpush1.bf16.msra.mxu0 0
    %1326 = vmatprep.subr.bf16.mxu0 0
    %1327 = vmatpush1.bf16.msra.mxu0 0
    %1328 = vmatprep.mubr.bf16.mxu0 0
    %1329 = vmatmul.mubr.bf16.gmra.mrb[0].mxu0 %v1295
    %v1330 = vpop.f32.mrb[0].mxu0
    %v1331 = vadd.f32 0.0, %v1330
    %v1332 = vpop.f32.mrb[0].mxu0
    %v1333 = vpop.f32.mrb[0].mxu0
    %v1334 = vpop.f32.mrb[0].mxu0
    %1335 = vdwg.mxu0
    %v1336 = vadd.f32 %v1294, %v1331
    %v1337 = vtanh.pop %v1336
    %1338 = vmatprep.subr.bf16.mxu0 0
    %1339 = vmatpush1.bf16.msra.mxu0 %v478
    %1340 = vmatprep.subr.bf16.mxu0 0
    %1341 = vmatpush1.bf16.msra.mxu0 %v479
    %1342 = vmatprep.subr.bf16.mxu0 0
    %1343 = vmatpush1.bf16.msra.mxu0 %v480
    %1344 = vmatprep.subr.bf16.mxu0 0
    %1345 = vmatpush1.bf16.msra.mxu0 %v481
    %1346 = vmatprep.subr.bf16.mxu0 0
    %1347 = vmatpush1.bf16.msra.mxu0 %v482
    %1348 = vmatprep.subr.bf16.mxu0 0
    %1349 = vmatpush1.bf16.msra.mxu0 %v483
    %1350 = vmatprep.subr.bf16.mxu0 0
    %1351 = vmatpush1.bf16.msra.mxu0 %v484
    %1352 = vmatprep.subr.bf16.mxu0 0
    %1353 = vmatpush1.bf16.msra.mxu0 %v485
    %1354 = vmatprep.subr.bf16.mxu0 0
    %1355 = vmatpush1.bf16.msra.mxu0 0
    %1356 = vmatprep.subr.bf16.mxu0 0
    %1357 = vmatpush1.bf16.msra.mxu0 0
    %1358 = vmatprep.subr.bf16.mxu0 0
    %1359 = vmatpush1.bf16.msra.mxu0 0
    %1360 = vmatprep.subr.bf16.mxu0 0
    %1361 = vmatpush1.bf16.msra.mxu0 0
    %1362 = vmatprep.subr.bf16.mxu0 0
    %1363 = vmatpush1.bf16.msra.mxu0 0
    %1364 = vmatprep.subr.bf16.mxu0 0
    %1365 = vmatpush1.bf16.msra.mxu0 0
    %1366 = vmatprep.subr.bf16.mxu0 0
    %1367 = vmatpush1.bf16.msra.mxu0 0
    %1368 = vmatprep.subr.bf16.mxu0 0
    %1369 = vmatpush1.bf16.msra.mxu0 0
    %1370 = vmatprep.mubr.bf16.mxu0 0
    %1371 = vmatmul.mubr.bf16.gmra.mrb[0].mxu0 %v1295
    %v1372 = vpop.f32.mrb[0].mxu0
    %v1373 = vadd.f32 0.0, %v1372
    %v1374 = vpop.f32.mrb[0].mxu0
    %v1375 = vpop.f32.mrb[0].mxu0
    %v1376 = vpop.f32.mrb[0].mxu0
    %1377 = vdwg.mxu0
    %v1378 = vadd.f32 %v274, %v1373
    %v1379 = vpack.c.bf16 %v1291, %v1291
    %1380 = vmatprep.subr.bf16.mxu0 0
    %1381 = vmatpush1.bf16.msra.mxu0 %v584
    %1382 = vmatprep.subr.bf16.mxu0 0
    %1383 = vmatpush1.bf16.msra.mxu0 %v585
    %1384 = vmatprep.subr.bf16.mxu0 0
    %1385 = vmatpush1.bf16.msra.mxu0 %v586
    %1386 = vmatprep.subr.bf16.mxu0 0
    %1387 = vmatpush1.bf16.msra.mxu0 %v587
    %1388 = vmatprep.subr.bf16.mxu0 0
    %1389 = vmatpush1.bf16.msra.mxu0 %v588
    %1390 = vmatprep.subr.bf16.mxu0 0
    %1391 = vmatpush1.bf16.msra.mxu0 %v589
    %1392 = vmatprep.subr.bf16.mxu0 0
    %1393 = vmatpush1.bf16.msra.mxu0 %v590
    %1394 = vmatprep.subr.bf16.mxu0 0
    %1395 = vmatpush1.bf16.msra.mxu0 %v591
    %1396 = vmatprep.subr.bf16.mxu0 0
    %1397 = vmatpush1.bf16.msra.mxu0 0
    %1398 = vmatprep.subr.bf16.mxu0 0
    %1399 = vmatpush1.bf16.msra.mxu0 0
    %1400 = vmatprep.subr.bf16.mxu0 0
    %1401 = vmatpush1.bf16.msra.mxu0 0
    %1402 = vmatprep.subr.bf16.mxu0 0
    %1403 = vmatpush1.bf16.msra.mxu0 0
    %1404 = vmatprep.subr.bf16.mxu0 0
    %1405 = vmatpush1.bf16.msra.mxu0 0
    %1406 = vmatprep.subr.bf16.mxu0 0
    %1407 = vmatpush1.bf16.msra.mxu0 0
    %1408 = vmatprep.subr.bf16.mxu0 0
    %1409 = vmatpush1.bf16.msra.mxu0 0
    %1410 = vmatprep.subr.bf16.mxu0 0
    %1411 = vmatpush1.bf16.msra.mxu0 0
    %1412 = vmatprep.mubr.bf16.mxu0 0
    %1413 = vmatmul.mubr.bf16.gmra.mrb[0].mxu0 %v1379
    %v1414 = vpop.f32.mrb[0].mxu0
    %v1415 = vadd.f32 0.0, %v1414
    %v1416 = vpop.f32.mrb[0].mxu0
    %v1417 = vpop.f32.mrb[0].mxu0
    %v1418 = vpop.f32.mrb[0].mxu0
    %1419 = vdwg.mxu0
    %v1420 = vadd.f32 %v1378, %v1415
    %v1421 = vtanh.pop %v1420
    %v1422 = vpack.c.bf16 %v1337, %v1337
    %1423 = vmatprep.subr.bf16.mxu0 0
    %1424 = vmatpush1.bf16.msra.mxu0 %v478
    %1425 = vmatprep.subr.bf16.mxu0 0
    %1426 = vmatpush1.bf16.msra.mxu0 %v479
    %1427 = vmatprep.subr.bf16.mxu0 0
    %1428 = vmatpush1.bf16.msra.mxu0 %v480
    %1429 = vmatprep.subr.bf16.mxu0 0
    %1430 = vmatpush1.bf16.msra.mxu0 %v481
    %1431 = vmatprep.subr.bf16.mxu0 0
    %1432 = vmatpush1.bf16.msra.mxu0 %v482
    %1433 = vmatprep.subr.bf16.mxu0 0
    %1434 = vmatpush1.bf16.msra.mxu0 %v483
    %1435 = vmatprep.subr.bf16.mxu0 0
    %1436 = vmatpush1.bf16.msra.mxu0 %v484
    %1437 = vmatprep.subr.bf16.mxu0 0
    %1438 = vmatpush1.bf16.msra.mxu0 %v485
    %1439 = vmatprep.subr.bf16.mxu0 0
    %1440 = vmatpush1.bf16.msra.mxu0 0
    %1441 = vmatprep.subr.bf16.mxu0 0
    %1442 = vmatpush1.bf16.msra.mxu0 0
    %1443 = vmatprep.subr.bf16.mxu0 0
    %1444 = vmatpush1.bf16.msra.mxu0 0
    %1445 = vmatprep.subr.bf16.mxu0 0
    %1446 = vmatpush1.bf16.msra.mxu0 0
    %1447 = vmatprep.subr.bf16.mxu0 0
    %1448 = vmatpush1.bf16.msra.mxu0 0
    %1449 = vmatprep.subr.bf16.mxu0 0
    %1450 = vmatpush1.bf16.msra.mxu0 0
    %1451 = vmatprep.subr.bf16.mxu0 0
    %1452 = vmatpush1.bf16.msra.mxu0 0
    %1453 = vmatprep.subr.bf16.mxu0 0
    %1454 = vmatpush1.bf16.msra.mxu0 0
    %1455 = vmatprep.mubr.bf16.mxu0 0
    %1456 = vmatmul.mubr.bf16.gmra.mrb[0].mxu0 %v1422
    %v1457 = vpop.f32.mrb[0].mxu0
    %v1458 = vadd.f32 0.0, %v1457
    %v1459 = vpop.f32.mrb[0].mxu0
    %v1460 = vpop.f32.mrb[0].mxu0
    %v1461 = vpop.f32.mrb[0].mxu0
    %1462 = vdwg.mxu0
    %v1463 = vadd.f32 %v274, %v1458
    %v1464 = vpack.c.bf16 %v1421, %v1421
    %1465 = vmatprep.subr.bf16.mxu0 0
    %1466 = vmatpush1.bf16.msra.mxu0 %v584
    %1467 = vmatprep.subr.bf16.mxu0 0
    %1468 = vmatpush1.bf16.msra.mxu0 %v585
    %1469 = vmatprep.subr.bf16.mxu0 0
    %1470 = vmatpush1.bf16.msra.mxu0 %v586
    %1471 = vmatprep.subr.bf16.mxu0 0
    %1472 = vmatpush1.bf16.msra.mxu0 %v587
    %1473 = vmatprep.subr.bf16.mxu0 0
    %1474 = vmatpush1.bf16.msra.mxu0 %v588
    %1475 = vmatprep.subr.bf16.mxu0 0
    %1476 = vmatpush1.bf16.msra.mxu0 %v589
    %1477 = vmatprep.subr.bf16.mxu0 0
    %1478 = vmatpush1.bf16.msra.mxu0 %v590
    %1479 = vmatprep.subr.bf16.mxu0 0
    %1480 = vmatpush1.bf16.msra.mxu0 %v591
    %1481 = vmatprep.subr.bf16.mxu0 0
    %1482 = vmatpush1.bf16.msra.mxu0 0
    %1483 = vmatprep.subr.bf16.mxu0 0
    %1484 = vmatpush1.bf16.msra.mxu0 0
    %1485 = vmatprep.subr.bf16.mxu0 0
    %1486 = vmatpush1.bf16.msra.mxu0 0
    %1487 = vmatprep.subr.bf16.mxu0 0
    %1488 = vmatpush1.bf16.msra.mxu0 0
    %1489 = vmatprep.subr.bf16.mxu0 0
    %1490 = vmatpush1.bf16.msra.mxu0 0
    %1491 = vmatprep.subr.bf16.mxu0 0
    %1492 = vmatpush1.bf16.msra.mxu0 0
    %1493 = vmatprep.subr.bf16.mxu0 0
    %1494 = vmatpush1.bf16.msra.mxu0 0
    %1495 = vmatprep.subr.bf16.mxu0 0
    %1496 = vmatpush1.bf16.msra.mxu0 0
    %1497 = vmatprep.mubr.bf16.mxu0 0
    %1498 = vmatmul.mubr.bf16.gmra.mrb[0].mxu0 %v1464
    %v1499 = vpop.f32.mrb[0].mxu0
    %v1500 = vadd.f32 0.0, %v1499
    %v1501 = vpop.f32.mrb[0].mxu0
    %v1502 = vpop.f32.mrb[0].mxu0
    %v1503 = vpop.f32.mrb[0].mxu0
    %1504 = vdwg.mxu0
    %v1505 = vadd.f32 %v1463, %v1500
    %v1506 = vtanh.pop %v1505
    %v1507 = vmax.f32 %v1506, 0.0
    %v1508 = vpack.c.bf16 %v1507, %v1507
    %v1509 = vld [vmem:[#allocation11] sm:$0xf]
    %v1510 = vld [vmem:[#allocation11 + $0x4] sm:$0xf]
    %v1511 = vld [vmem:[#allocation11 + $0x8] sm:$0xf]
    %v1512 = vld [vmem:[#allocation11 + $0xc] sm:$0xf]
    %v1513 = vld [vmem:[#allocation11 + $0x10] sm:$0xf]
    %v1514 = vld [vmem:[#allocation11 + $0x14] sm:$0xf]
    %v1515 = vld [vmem:[#allocation11 + $0x18] sm:$0xf]
    %v1516 = vld [vmem:[#allocation11 + $0x1c] sm:$0xf]
    %v1517 = vld [vmem:[#allocation11 + $0x20] sm:$0xf]
    %v1518 = vld [vmem:[#allocation11 + $0x24] sm:$0xf]
    %v1519 = vld [vmem:[#allocation11 + $0x28] sm:$0xf]
    %v1520 = vld [vmem:[#allocation11 + $0x2c] sm:$0xf]
    %v1521 = vld [vmem:[#allocation11 + $0x30] sm:$0xf]
    %v1522 = vld [vmem:[#allocation11 + $0x34] sm:$0xf]
    %v1523 = vld [vmem:[#allocation11 + $0x38] sm:$0xf]
    %v1524 = vld [vmem:[#allocation11 + $0x3c] sm:$0xf]
    %v1525 = vld [vmem:[%s7] sm:$0x1]
    %v1527 = vlaneseq
    %v1528 = vshrl.u32 %v1527, 7
    %v1529 = vsub.s32 0, %v1528
    %v1530 = vrot.slane %v1525, %v1529
    %v1548 = vunpack.c.l.b16 %v1509
    %v1549 = vunpack.c.l.b16 %v1510
    %v1550 = vunpack.c.l.b16 %v1511
    %v1551 = vunpack.c.l.b16 %v1512
    %v1552 = vunpack.c.l.b16 %v1513
    %v1553 = vunpack.c.l.b16 %v1514
    %v1554 = vunpack.c.l.b16 %v1515
    %v1555 = vunpack.c.l.b16 %v1516
    %v1556 = vunpack.c.l.b16 %v1517
    %v1557 = vunpack.c.l.b16 %v1518
    %v1558 = vunpack.c.l.b16 %v1519
    %v1559 = vunpack.c.l.b16 %v1520
    %v1560 = vunpack.c.l.b16 %v1521
    %v1561 = vunpack.c.l.b16 %v1522
    %v1562 = vunpack.c.l.b16 %v1523
    %v1563 = vunpack.c.l.b16 %v1524
    %v1564 = vpack.c.b16 %v1549, %v1548
    %v1565 = vpack.c.b16 %v1551, %v1550
    %v1566 = vpack.c.b16 %v1553, %v1552
    %v1567 = vpack.c.b16 %v1555, %v1554
    %v1568 = vpack.c.b16 %v1557, %v1556
    %v1569 = vpack.c.b16 %v1559, %v1558
    %v1570 = vpack.c.b16 %v1561, %v1560
    %v1571 = vpack.c.b16 %v1563, %v1562
    %1580 = vmatprep.subr.bf16.mxu0 0
    %1581 = vmatpush1.bf16.msra.mxu0 %v1564
    %1582 = vmatprep.subr.bf16.mxu0 0
    %1583 = vmatpush1.bf16.msra.mxu0 %v1565
    %1584 = vmatprep.subr.bf16.mxu0 0
    %1585 = vmatpush1.bf16.msra.mxu0 %v1566
    %1586 = vmatprep.subr.bf16.mxu0 0
    %1587 = vmatpush1.bf16.msra.mxu0 %v1567
    %1588 = vmatprep.subr.bf16.mxu0 0
    %1589 = vmatpush1.bf16.msra.mxu0 %v1568
    %1590 = vmatprep.subr.bf16.mxu0 0
    %1591 = vmatpush1.bf16.msra.mxu0 %v1569
    %1592 = vmatprep.subr.bf16.mxu0 0
    %1593 = vmatpush1.bf16.msra.mxu0 %v1570
    %1594 = vmatprep.subr.bf16.mxu0 0
    %1595 = vmatpush1.bf16.msra.mxu0 %v1571
    %1596 = vmatprep.subr.bf16.mxu0 0
    %1597 = vmatpush1.bf16.msra.mxu0 0
    %1598 = vmatprep.subr.bf16.mxu0 0
    %1599 = vmatpush1.bf16.msra.mxu0 0
    %1600 = vmatprep.subr.bf16.mxu0 0
    %1601 = vmatpush1.bf16.msra.mxu0 0
    %1602 = vmatprep.subr.bf16.mxu0 0
    %1603 = vmatpush1.bf16.msra.mxu0 0
    %1604 = vmatprep.subr.bf16.mxu0 0
    %1605 = vmatpush1.bf16.msra.mxu0 0
    %1606 = vmatprep.subr.bf16.mxu0 0
    %1607 = vmatpush1.bf16.msra.mxu0 0
    %1608 = vmatprep.subr.bf16.mxu0 0
    %1609 = vmatpush1.bf16.msra.mxu0 0
    %1610 = vmatprep.subr.bf16.mxu0 0
    %1611 = vmatpush1.bf16.msra.mxu0 0
    %1612 = vmatprep.mubr.bf16.mxu0 0
    %1613 = vmatmul.mubr.bf16.gmra.mrb[0].mxu0 %v1508
    %v1614 = vpop.f32.mrb[0].mxu0
    %v1615 = vadd.f32 %v1530, %v1614
    %v1616 = vpop.f32.mrb[0].mxu0
    %v1617 = vpop.f32.mrb[0].mxu0
    %v1618 = vpop.f32.mrb[0].mxu0
    %1619 = vdwg.mxu0
    %1620 = vst [vmem:[#allocation12] sm:$0xff] %v1615
    // Predicated region
    $region54: #{tpu_custom_call.1} parent=1 // pred_check
      _
    $region55: #{tpu_custom_call.1} parent=1 // pred_check_branch
      %1622 = sbr.rel (0) target = $region57
    $region56: #{tpu_custom_call.1} parent=1 // pred_region
      %s1624 = ssub.s32 128, 128
      %1625 = vsyncadd [#allocation5], %s1624
      %s1627 = sshll.u32 [#allocation12], 4
      %s1628 = int_to_ptr.vmem [resolvable:$true] %s1627
      %1630 = dma.vmem_to_hbm [thread:$0]  %s1628, 128, %s8, [#allocation5]
    $region57: #{tpu_custom_call.1} parent=1 // pred_fallthru
      _
    // Predicated region
    $region58: #{tpu_custom_call.1} parent=1 // pred_check
      _
    $region59: #{tpu_custom_call.1} parent=1 // pred_check_branch
      %1632 = sbr.rel (0) target = $region61
    $region60: #{tpu_custom_call.1} parent=1 // pred_region
      %1633 = dma.done [#allocation5], 128
    $region61: #{tpu_custom_call.1} parent=1 // pred_fallthru
      _
    %1634 = vsyncpa [#allocation4], 1
    %1635 = vsyncpa [#allocation7], 1
    %1636 = vsyncpa [#allocation10], 1
    %1637 = vsyncpa [#allocation5], 1

</llo_original>
